<compile_context>
chip_gen: v7x
topology: tpu7x:2x2x1
jax: 0.10.0
libtpu: 0.0.40
codegen_flags: <defaults>
</compile_context>

<pallas_src>
import functools
import numpy as np
import jax
import jax.numpy as jnp
from jax.experimental import pallas as pl
from jax.experimental.pallas import tpu as pltpu

_VMEM = pl.BlockSpec(memory_space=pltpu.MemorySpace.VMEM)


# ------------------------------ Pallas kernels -------------------------------

def _conv_fused_kernel(*refs, use_bn, leaky, add_res, eps):
    """Lane-dense conv matmul (Cout,K)@(K,M), fused with training-mode
    BatchNorm + LeakyReLU(0.1) + optional shortcut residual add."""
    if add_res:
        p_ref, w_ref, b_ref, g_ref, bt_ref, res_ref, o_ref = refs
    else:
        p_ref, w_ref, b_ref, g_ref, bt_ref, o_ref = refs
    # bf16 operands, f32 accumulation on the MXU.
    z = jnp.dot(w_ref[...], p_ref[...], preferred_element_type=jnp.float32)
    if use_bn:
        # nn.BatchNorm2d (training mode): batch stats over (N, Ho, Wo) == lanes.
        # Conv2d has bias=False in this case, so no dead bias add.
        mu = jnp.mean(z, axis=1, keepdims=True)
        var = jnp.mean(jnp.square(z - mu), axis=1, keepdims=True)
        z = (z - mu) * jax.lax.rsqrt(var + eps)
        z = z * g_ref[...] + bt_ref[...]
    else:
        z = z + b_ref[...]                      # (Cout, 1) broadcast over lanes
    if leaky:
        z = jnp.where(z >= 0.0, z, 0.1 * z)
    if add_res:
        z = z + res_ref[...]                    # fused shortcut add
    o_ref[...] = z


def _upsample_kernel(x_ref, uh_ref, uwt_ref, o_ref):
    """Bilinear x2 (align_corners=False) in one kernel: width pass then height
    pass per image, intermediate stays in VMEM / vregs."""
    uh = uh_ref[...]                            # (2H, H)
    uwt = uwt_ref[...]                          # (W, 2W)
    for b in range(x_ref.shape[0]):             # small static unroll (C*N)
        img = x_ref[b]                          # (H, W)
        t = jnp.dot(img, uwt, preferred_element_type=jnp.float32)
        o_ref[b] = jnp.dot(uh, t, preferred_element_type=jnp.float32)


def _add_kernel(a_ref, b_ref, o_ref):
    o_ref[...] = a_ref[...] + b_ref[...]


def _yolo_head_kernel(*refs, n_in, nA, stride, fuse_conv):
    """Fused 1x1 head conv (summed over the virtual route-concat inputs) +
    YOLO decode. Rows are pre-permuted into [xy | wh | conf/class] groups so
    sigmoid is applied only to xy/conf/class rows and exp only to w/h rows."""
    if fuse_conv:
        xs = refs[:n_in]
        ws = refs[n_in:2 * n_in]
        b_ref = refs[2 * n_in]
        offs_ref = refs[2 * n_in + 1]
        anch_ref = refs[2 * n_in + 2]
        o_ref = refs[2 * n_in + 3]
        z = jnp.dot(ws[0][...], xs[0][...], preferred_element_type=jnp.float32)
        for i in range(1, n_in):
            z = z + jnp.dot(ws[i][...], xs[i][...],
                            preferred_element_type=jnp.float32)
        z = z + b_ref[...]
    else:
        z_ref, offs_ref, anch_ref, o_ref = refs
        z = z_ref[...]
    C = o_ref.shape[0]
    nxy = 2 * nA
    # x, y rows: sigmoid + grid offset, scaled by stride.
    z_xy = z[0:nxy, :]
    o_ref[0:nxy, :] = (jax.nn.sigmoid(z_xy) + offs_ref[...]) * stride
    # w, h rows: exp * anchor size (pixel units).
    z_wh = z[nxy:2 * nxy, :]
    o_ref[nxy:2 * nxy, :] = jnp.exp(z_wh) * anch_ref[...]
    # objectness + class rows: sigmoid.
    z_rest = z[2 * nxy:C, :]
    o_ref[2 * nxy:C, :] = jax.nn.sigmoid(z_rest)


# ------------------------------ layer wrappers --------------------------------

def conv_layer(x, w, b, g, bt, *, stride, pad, use_bn, leaky, residual=None):
    """x: (Cin, N, H, W) f32 -> (Cout, N, Ho, Wo) f32."""
    Cin, N, H, W = x.shape
    Cout, _, k, _ = w.shape
    Ho = (H + 2 * pad - k) // stride + 1
    Wo = (W + 2 * pad - k) // stride + 1
    M = N * Ho * Wo
    if k == 1 and stride == 1 and pad == 0:
        p = x.reshape(Cin, M)                   # free reshape, no expansion
        wmat = w.reshape(Cout, Cin)
        K = Cin
    else:
        # TODO(synk): k*k-expanded im2col is still materialized by XLA here;
        # for real YOLO resolutions fold the shifted-window gather into the
        # kernel (per-tap accumulate) to cut HBM traffic ~k*k x.
        xp = jnp.pad(x, ((0, 0), (0, 0), (pad, pad), (pad, pad)))
        taps = [xp[:, :, di:di + stride * Ho:stride, dj:dj + stride * Wo:stride]
                for di in range(k) for dj in range(k)]
        p = jnp.stack(taps, axis=0).reshape(k * k * Cin, M)
        wmat = jnp.transpose(w, (0, 2, 3, 1)).reshape(Cout, k * k * Cin)
        K = k * k * Cin
    p = p.astype(jnp.bfloat16)
    wmat = wmat.astype(jnp.bfloat16)
    args = [p, wmat, b.reshape(Cout, 1), g.reshape(Cout, 1), bt.reshape(Cout, 1)]
    add_res = residual is not None
    if add_res:
        args.append(residual.reshape(Cout, M))
    kern = functools.partial(_conv_fused_kernel, use_bn=use_bn, leaky=leaky,
                             add_res=add_res, eps=1e-5)
    bytes_accessed = 2 * (K * M + Cout * K) + 4 * Cout * (M + 3) \
        + (4 * Cout * M if add_res else 0)
    cost = pl.CostEstimate(flops=2 * Cout * K * M + 8 * Cout * M,
                           transcendentals=Cout if use_bn else 0,
                           bytes_accessed=int(bytes_accessed))
    out = pl.pallas_call(
        kern,
        out_shape=jax.ShapeDtypeStruct((Cout, M), jnp.float32),
        in_specs=[_VMEM] * len(args),
        out_specs=_VMEM,
        cost_estimate=cost,
    )(*args)
    return out.reshape(Cout, N, Ho, Wo)


def _upsample2x_matrix(n):
    # bilinear, scale_factor=2, align_corners=False (PyTorch nn.Upsample default)
    m = np.zeros((2 * n, n), np.float32)
    for o in range(2 * n):
        src = (o + 0.5) / 2.0 - 0.5
        i0 = int(np.floor(src))
        frac = src - i0
        lo = min(max(i0, 0), n - 1)
        hi = min(max(i0 + 1, 0), n - 1)
        m[o, lo] += 1.0 - frac
        m[o, hi] += frac
    return m


def upsample_bilinear_2x(x):
    C, N, H, W = x.shape
    uh = jnp.asarray(_upsample2x_matrix(H))          # (2H, H)
    uwt = jnp.asarray(_upsample2x_matrix(W).T)       # (W, 2W)
    out = pl.pallas_call(
        _upsample_kernel,
        out_shape=jax.ShapeDtypeStruct((C * N, 2 * H, 2 * W), jnp.float32),
        in_specs=[_VMEM, _VMEM, _VMEM],
        out_specs=_VMEM,
    )(x.reshape(C * N, H, W), uh, uwt)
    return out.reshape(C, N, 2 * H, 2 * W)


def shortcut_add(a, b):
    # Fallback only; the shortcut is normally fused into the preceding conv.
    return pl.pallas_call(
        _add_kernel,
        out_shape=jax.ShapeDtypeStruct(a.shape, a.dtype),
        in_specs=[_VMEM, _VMEM],
        out_specs=_VMEM,
    )(a, b)


# ------------------------------ YOLO decode -----------------------------------

def _yolo_layout(nA, A):
    """Row permutation grouping channels as [xy(2*nA) | wh(2*nA) | rest]."""
    C = nA * A
    perm = np.zeros(C, np.int32)
    inv = np.zeros((nA, A), np.int32)
    for a in range(nA):
        for attr in range(A):
            if attr < 2:
                row = 2 * a + attr
            elif attr < 4:
                row = 2 * nA + 2 * a + (attr - 2)
            else:
                row = 4 * nA + a * (A - 4) + (attr - 4)
            perm[row] = a * A + attr
            inv[a, attr] = row
    return perm, inv


def _yolo_consts(nA, G, N, anchors):
    M = N * G * G
    g = np.arange(M) % (G * G)
    gx = (g % G).astype(np.float32)
    gy = (g // G).astype(np.float32)
    offs = np.zeros((2 * nA, M), np.float32)
    offs[0::2, :] = gx[None, :]
    offs[1::2, :] = gy[None, :]
    anch = np.zeros((2 * nA, 1), np.float32)
    for a, (aw, ah) in enumerate(anchors):
        anch[2 * a, 0] = float(aw)
        anch[2 * a + 1, 0] = float(ah)
    return jnp.asarray(offs), jnp.asarray(anch)


def _yolo_finalize(dec, inv, N, G, nA, A):
    C = nA * A
    arranged = dec.reshape(C, N, G * G).transpose(1, 2, 0)    # (N, G*G, C)
    det = arranged[:, :, inv.reshape(-1)]                     # (N, G*G, nA*A)
    return det.reshape(N, G * G * nA, A)


def yolo_head_fused(x_parts, w, b, anchors, num_classes, input_dim):
    """Fused 1x1 head conv (over a virtual route-concat) + YOLO decode."""
    nA = len(anchors)
    A = 5 + num_classes
    C = nA * A
    _, N, G, _ = x_parts[0].shape
    stride = input_dim // G
    M = N * G * G
    perm, inv = _yolo_layout(nA, A)
    wp = w.reshape(C, -1)[perm]                  # (C, sum(Cin)), rows permuted
    bp = b[perm].reshape(C, 1)
    parts = [xp.reshape(xp.shape[0], M).astype(jnp.bfloat16) for xp in x_parts]
    w_splits = []
    off = 0
    for xp in x_parts:
        cin = xp.shape[0]
        w_splits.append(wp[:, off:off + cin].astype(jnp.bfloat16))
        off += cin
    offs, anch = _yolo_consts(nA, G, N, anchors)
    kern = functools.partial(_yolo_head_kernel, n_in=len(parts), nA=nA,
                             stride=float(stride), fuse_conv=True)
    cost = pl.CostEstimate(
        flops=2 * C * off * M + 6 * C * M,
        transcendentals=C * M,
        bytes_accessed=int(2 * (off * M + C * off) + 4 * C * (M + 1)
                           + 4 * 2 * nA * (M + 1)))
    dec = pl.pallas_call(
        kern,
        out_shape=jax.ShapeDtypeStruct((C, M), jnp.float32),
        in_specs=[_VMEM] * (2 * len(parts) + 3),
        out_specs=_VMEM,
        cost_estimate=cost,
    )(*(parts + w_splits + [bp, offs, anch]))
    return _yolo_finalize(dec, inv, N, G, nA, A)


def yolo_decode(fmap, anchors, num_classes, input_dim):
    """Standalone decode of an already-computed head feature map (fallback)."""
    C, N, G, _ = fmap.shape
    nA = len(anchors)
    A = 5 + num_classes
    assert C == nA * A
    stride = input_dim // G
    M = N * G * G
    perm, inv = _yolo_layout(nA, A)
    z = fmap.reshape(C, M)[perm]
    offs, anch = _yolo_consts(nA, G, N, anchors)
    kern = functools.partial(_yolo_head_kernel, n_in=1, nA=nA,
                             stride=float(stride), fuse_conv=False)
    dec = pl.pallas_call(
        kern,
        out_shape=jax.ShapeDtypeStruct((C, M), jnp.float32),
        in_specs=[_VMEM] * 3,
        out_specs=_VMEM,
    )(z, offs, anch)
    return _yolo_finalize(dec, inv, N, G, nA, A)


# ------------------------------ network definition ----------------------------

def build_structure():
    # Synthetic mini-YOLOv3 "parsed cfg" (stands in for parse_structure_object()
    # reading ./yolov3.cfg.txt, which cannot be loaded here).
    anchors_str = '2,3, 4,5, 6,8, 8,10, 10,12, 12,14'
    return [
        {'name': 'net', 'height': '16', 'width': '16', 'channels': '3'},
        {'name': 'convolutional', 'batch_normalize': '1', 'filters': '8',
         'size': '3', 'stride': '1', 'pad': '1', 'activation': 'leaky'},   # 0
        {'name': 'convolutional', 'batch_normalize': '1', 'filters': '8',
         'size': '3', 'stride': '1', 'pad': '1', 'activation': 'leaky'},   # 1
        {'name': 'convolutional', 'batch_normalize': '1', 'filters': '16',
         'size': '3', 'stride': '2', 'pad': '1', 'activation': 'leaky'},   # 2
        {'name': 'convolutional', 'batch_normalize': '1', 'filters': '8',
         'size': '1', 'stride': '1', 'pad': '0', 'activation': 'leaky'},   # 3
        {'name': 'convolutional', 'batch_normalize': '1', 'filters': '16',
         'size': '3', 'stride': '1', 'pad': '1', 'activation': 'leaky'},   # 4
        {'name': 'shortcut', 'from': '-3', 'activation': 'linear'},        # 5
        {'name': 'convolutional', 'filters': '21', 'size': '1',
         'stride': '1', 'pad': '0', 'activation': 'linear'},               # 6
        {'name': 'yolo', 'mask': '3,4,5', 'anchors': anchors_str,
         'classes': '2', 'num': '6'},                                      # 7
        {'name': 'route', 'layers': '-3'},                                 # 8
        {'name': 'convolutional', 'batch_normalize': '1', 'filters': '8',
         'size': '1', 'stride': '1', 'pad': '0', 'activation': 'leaky'},   # 9
        {'name': 'upsample', 'stride': '2'},                               # 10
        {'name': 'route', 'layers': '-1,1'},                               # 11
        {'name': 'convolutional', 'filters': '21', 'size': '1',
         'stride': '1', 'pad': '0', 'activation': 'linear'},               # 12
        {'name': 'yolo', 'mask': '0,1,2', 'anchors': anchors_str,
         'classes': '2', 'num': '6'},                                      # 13
    ]


def init_params(key, structure, in_channels=3):
    layers = structure[1:]
    params = []
    filters = []
    last = in_channels
    for i, layer in enumerate(layers):
        name = layer['name']
        layer_filters = last
        if name == 'convolutional':
            cout = int(layer['filters'])
            k = int(layer['size'])
            use_bn = 'batch_normalize' in layer
            key, kw, kb, kg, kbt = jax.random.split(key, 5)
            w = 0.1 * jax.random.normal(kw, (cout, last, k, k), jnp.float32)
            if use_bn:
                b = jnp.zeros((cout,), jnp.float32)       # Conv2d(bias=False)
                g = 1.0 + 0.1 * jax.random.normal(kg, (cout,), jnp.float32)
                bt = 0.1 * jax.random.normal(kbt, (cout,), jnp.float32)
            else:
                b = 0.1 * jax.random.normal(kb, (cout,), jnp.float32)
                g = jnp.ones((cout,), jnp.float32)
                bt = jnp.zeros((cout,), jnp.float32)
            params.append({'w': w, 'b': b, 'g': g, 'bt': bt})
            layer_filters = cout
        elif name == 'route':
            idxs = [int(a) for a in layer['layers'].split(',')]
            start = idxs[0]
            end = idxs[1] if len(idxs) > 1 else 0
            if start > 0:
                start -= i
            if end > 0:
                end -= i
            layer_filters = filters[i + start] + (filters[i + end] if end < 0 else 0)
            params.append(None)
        else:
            params.append(None)
        filters.append(layer_filters)
        last = layer_filters
    return params


def _parse_anchors(layer):
    mask = [int(m) for m in layer['mask'].split(',')]
    vals = [int(a) for a in layer['anchors'].split(',')]
    pairs = [(vals[i], vals[i + 1]) for i in range(0, len(vals), 2)]
    return [pairs[i] for i in mask]


def _as_parts(x):
    return list(x) if isinstance(x, tuple) else [x]


def _as_array(x):
    if isinstance(x, tuple):
        return jnp.concatenate(list(x), axis=0)
    return x


def object_recognizer_forward(x, structure, params):
    net_info = structure[0]
    layers = structure[1:]
    input_dim = int(net_info['height'])

    # Which layer outputs are read later by route / shortcut layers (used to
    # guard the kernel fusions so semantics of outputs[] stay intact).
    consumers = {}
    for i, layer in enumerate(layers):
        if layer['name'] == 'route':
            for v in [int(a) for a in layer['layers'].split(',')]:
                src = v if v > 0 else i + v
                consumers.setdefault(src, set()).add(i)
        elif layer['name'] == 'shortcut':
            consumers.setdefault(i - 1, set()).add(i)
            consumers.setdefault(i + int(layer['from']), set()).add(i)

    x = jnp.transpose(x.astype(jnp.float32), (1, 0, 2, 3))   # NCHW -> (C,N,H,W)
    outputs = {}
    detections = None
    skip = set()

    for i, layer in enumerate(layers):
        if i in skip:
            continue
        name = layer['name']
        nxt = layers[i + 1] if i + 1 < len(layers) else None
        if name == 'convolutional':
            pr = params[i]
            cons = consumers.get(i, set())
            use_bn = 'batch_normalize' in layer
            leaky = layer['activation'] == 'leaky'
            k = int(layer['size'])
            st = int(layer['stride'])
            pd = int(layer['pad'])
            # --- fusion: 1x1 linear head conv + yolo decode (+ route concat) --
            if (nxt is not None and nxt['name'] == 'yolo' and not cons
                    and k == 1 and st == 1 and pd == 0
                    and not use_bn and not leaky):
                det = yolo_head_fused(_as_parts(x), pr['w'], pr['b'],
                                      _parse_anchors(nxt), int(nxt['classes']),
                                      input_dim)
                x = det
                outputs[i] = det          # head fmap never referenced (guarded)
                outputs[i + 1] = det
                detections = det if detections is None else \
                    jnp.concatenate([detections, det], axis=1)
                skip.add(i + 1)
                continue
            xin = _as_array(x)
            # --- fusion: following shortcut add folded into this conv --------
            residual = None
            if nxt is not None and nxt['name'] == 'shortcut' and cons <= {i + 1}:
                cand = _as_array(outputs[i + 1 + int(nxt['from'])])
                cout = int(layer['filters'])
                ho = (xin.shape[2] + 2 * pd - k) // st + 1
                wo = (xin.shape[3] + 2 * pd - k) // st + 1
                if cand.shape == (cout, xin.shape[1], ho, wo):
                    residual = cand
                    skip.add(i + 1)
            out = conv_layer(xin, pr['w'], pr['b'], pr['g'], pr['bt'],
                             stride=st, pad=pd, use_bn=use_bn, leaky=leaky,
                             residual=residual)
            x = out
            outputs[i] = out
            if residual is not None:
                outputs[i + 1] = out
        elif name == 'upsample':
            x = upsample_bilinear_2x(_as_array(x))
            outputs[i] = x
        elif name == 'route':
            # TODO(synk): reference forward() iterates the 'layers' string char
            # by char and indexes outputs with layer[0]; intended YOLOv3 route
            # semantics (concat of referenced outputs) implemented instead.
            idxs = [int(a) for a in layer['layers'].split(',')]
            if idxs[0] > 0:
                idxs[0] -= i
            if len(idxs) == 1:
                x = outputs[i + idxs[0]]
            else:
                if idxs[1] > 0:
                    idxs[1] -= i
                # virtual concat: kept as a tuple so the following 1x1 head
                # conv can consume the parts without an HBM concat.
                x = tuple(_as_parts(outputs[i + idxs[0]]) +
                          _as_parts(outputs[i + idxs[1]]))
            outputs[i] = x
        elif name == 'shortcut':
            frm = int(layer['from'])
            x = shortcut_add(_as_array(outputs[i - 1]),
                             _as_array(outputs[i + frm]))
            outputs[i] = x
        elif name == 'yolo':
            # TODO(synk): reference feature_map_to_tensor is unrunnable
            # (missing self, mutates the 4-D map); intended YOLOv3 decode used.
            det = yolo_decode(_as_array(x), _parse_anchors(layer),
                              int(layer['classes']), input_dim)
            x = det
            outputs[i] = det
            detections = det if detections is None else \
                jnp.concatenate([detections, det], axis=1)
        else:
            outputs[i] = x
    return detections if detections is not None else 0


# --------------------------------- main ---------------------------------------

if __name__ == "__main__":
    structure = build_structure()
    key = jax.random.PRNGKey(0)
    kx, kp = jax.random.split(key)
    x = jax.random.normal(kx, (2, 3, 16, 16), dtype=jnp.float32)
    params = init_params(kp, structure, in_channels=3)

    fwd = jax.jit(lambda inp: object_recognizer_forward(inp, structure, params))
    det = jax.block_until_ready(fwd(x))

    expected_boxes = 8 * 8 * 3 + 16 * 16 * 3   # stride-2 head + stride-1 head
    assert det.shape == (2, expected_boxes, 7), det.shape
    assert bool(jnp.all(jnp.isfinite(det)))
    print("KERNEL_OK")
</pallas_src>

<mosaic_0001>
module attributes {stable_mosaic.version = 11 : i64} {
  func.func @_conv_fused_kernel(%arg0: memref<27x512xbf16, #tpu.memory_space<vmem>>, %arg1: memref<8x27xbf16, #tpu.memory_space<vmem>>, %arg2: memref<8x1xf32, #tpu.memory_space<vmem>>, %arg3: memref<8x1xf32, #tpu.memory_space<vmem>>, %arg4: memref<8x1xf32, #tpu.memory_space<vmem>>, %arg5: memref<8x512xf32, #tpu.memory_space<vmem>>) attributes {dimension_semantics = [], scalar_prefetch = 0 : i64, scratch_operands = 0 : i64, tpu.core_type = #tpu.core_type<tc>} {
    %c0 = arith.constant 0 : index
    %c0_0 = arith.constant 0 : index
    %0 = vector.load %arg1[%c0, %c0_0] : memref<8x27xbf16, #tpu.memory_space<vmem>>, vector<8x27xbf16>
    %c0_1 = arith.constant 0 : index
    %c0_2 = arith.constant 0 : index
    %1 = vector.load %arg0[%c0_1, %c0_2] : memref<27x512xbf16, #tpu.memory_space<vmem>>, vector<27x512xbf16>
    %cst = arith.constant dense<0.000000e+00> : vector<8x512xf32>
    %2 = tpu.matmul %0, %1, %cst {dimension_numbers = #tpu.dot_dimension_numbers<[1], [0], [0], [1], [0, 0, 1, 1], [], []>} : vector<8x27xbf16>, vector<27x512xbf16>, vector<8x512xf32> -> vector<8x512xf32>
    %cst_3 = arith.constant dense<0.000000e+00> : vector<8xf32>
    %3 = vector.multi_reduction <add>, %2, %cst_3 [1] : vector<8x512xf32> to vector<8xf32>
    %4 = vector.shape_cast %3 : vector<8xf32> to vector<8x1xf32>
    %cst_4 = arith.constant 5.120000e+02 : f32
    %5 = vector.broadcast %cst_4 : f32 to vector<8x1xf32>
    %6 = arith.divf %4, %5 : vector<8x1xf32>
    %7 = vector.broadcast %6 : vector<8x1xf32> to vector<8x512xf32>
    %8 = arith.subf %2, %7 : vector<8x512xf32>
    %9 = arith.mulf %8, %8 : vector<8x512xf32>
    %cst_5 = arith.constant dense<0.000000e+00> : vector<8xf32>
    %10 = vector.multi_reduction <add>, %9, %cst_5 [1] : vector<8x512xf32> to vector<8xf32>
    %11 = vector.shape_cast %10 : vector<8xf32> to vector<8x1xf32>
    %cst_6 = arith.constant 5.120000e+02 : f32
    %12 = vector.broadcast %cst_6 : f32 to vector<8x1xf32>
    %13 = arith.divf %11, %12 : vector<8x1xf32>
    %14 = vector.broadcast %6 : vector<8x1xf32> to vector<8x512xf32>
    %15 = arith.subf %2, %14 : vector<8x512xf32>
    %cst_7 = arith.constant 9.99999974E-6 : f32
    %16 = vector.broadcast %cst_7 : f32 to vector<8x1xf32>
    %17 = arith.addf %13, %16 : vector<8x1xf32>
    %18 = math.rsqrt %17 : vector<8x1xf32>
    %19 = vector.broadcast %18 : vector<8x1xf32> to vector<8x512xf32>
    %20 = arith.mulf %15, %19 : vector<8x512xf32>
    %c0_8 = arith.constant 0 : index
    %c0_9 = arith.constant 0 : index
    %21 = vector.load %arg3[%c0_8, %c0_9] : memref<8x1xf32, #tpu.memory_space<vmem>>, vector<8x1xf32>
    %22 = vector.broadcast %21 : vector<8x1xf32> to vector<8x512xf32>
    %23 = arith.mulf %20, %22 : vector<8x512xf32>
    %c0_10 = arith.constant 0 : index
    %c0_11 = arith.constant 0 : index
    %24 = vector.load %arg4[%c0_10, %c0_11] : memref<8x1xf32, #tpu.memory_space<vmem>>, vector<8x1xf32>
    %25 = vector.broadcast %24 : vector<8x1xf32> to vector<8x512xf32>
    %26 = arith.addf %23, %25 : vector<8x512xf32>
    %cst_12 = arith.constant 0.000000e+00 : f32
    %27 = vector.broadcast %cst_12 : f32 to vector<8x512xf32>
    %28 = arith.cmpf oge, %26, %27 : vector<8x512xf32>
    %cst_13 = arith.constant 1.000000e-01 : f32
    %29 = vector.broadcast %cst_13 : f32 to vector<8x512xf32>
    %30 = arith.mulf %29, %26 : vector<8x512xf32>
    %31 = arith.select %28, %26, %30 : vector<8x512xi1>, vector<8x512xf32>
    %c0_14 = arith.constant 0 : index
    %c0_15 = arith.constant 0 : index
    %32 = vector.load %arg5[%c0_14, %c0_15] : memref<8x512xf32, #tpu.memory_space<vmem>>, vector<8x512xf32>
    tpu.vector_store %arg5[%c0_14, %c0_15], %31 {strides = array<i32>} : memref<8x512xf32, #tpu.memory_space<vmem>>, vector<8x512xf32>,
    return
  }
}

module attributes {stable_mosaic.version = 11 : i64} {
  func.func @_conv_fused_kernel(%arg0: memref<72x512xbf16, #tpu.memory_space<vmem>>, %arg1: memref<8x72xbf16, #tpu.memory_space<vmem>>, %arg2: memref<8x1xf32, #tpu.memory_space<vmem>>, %arg3: memref<8x1xf32, #tpu.memory_space<vmem>>, %arg4: memref<8x1xf32, #tpu.memory_space<vmem>>, %arg5: memref<8x512xf32, #tpu.memory_space<vmem>>) attributes {dimension_semantics = [], scalar_prefetch = 0 : i64, scratch_operands = 0 : i64, tpu.core_type = #tpu.core_type<tc>} {
    %c0 = arith.constant 0 : index
    %c0_0 = arith.constant 0 : index
    %0 = vector.load %arg1[%c0, %c0_0] : memref<8x72xbf16, #tpu.memory_space<vmem>>, vector<8x72xbf16>
    %c0_1 = arith.constant 0 : index
    %c0_2 = arith.constant 0 : index
    %1 = vector.load %arg0[%c0_1, %c0_2] : memref<72x512xbf16, #tpu.memory_space<vmem>>, vector<72x512xbf16>
    %cst = arith.constant dense<0.000000e+00> : vector<8x512xf32>
    %2 = tpu.matmul %0, %1, %cst {dimension_numbers = #tpu.dot_dimension_numbers<[1], [0], [0], [1], [0, 0, 1, 1], [], []>} : vector<8x72xbf16>, vector<72x512xbf16>, vector<8x512xf32> -> vector<8x512xf32>
    %cst_3 = arith.constant dense<0.000000e+00> : vector<8xf32>
    %3 = vector.multi_reduction <add>, %2, %cst_3 [1] : vector<8x512xf32> to vector<8xf32>
    %4 = vector.shape_cast %3 : vector<8xf32> to vector<8x1xf32>
    %cst_4 = arith.constant 5.120000e+02 : f32
    %5 = vector.broadcast %cst_4 : f32 to vector<8x1xf32>
    %6 = arith.divf %4, %5 : vector<8x1xf32>
    %7 = vector.broadcast %6 : vector<8x1xf32> to vector<8x512xf32>
    %8 = arith.subf %2, %7 : vector<8x512xf32>
    %9 = arith.mulf %8, %8 : vector<8x512xf32>
    %cst_5 = arith.constant dense<0.000000e+00> : vector<8xf32>
    %10 = vector.multi_reduction <add>, %9, %cst_5 [1] : vector<8x512xf32> to vector<8xf32>
    %11 = vector.shape_cast %10 : vector<8xf32> to vector<8x1xf32>
    %cst_6 = arith.constant 5.120000e+02 : f32
    %12 = vector.broadcast %cst_6 : f32 to vector<8x1xf32>
    %13 = arith.divf %11, %12 : vector<8x1xf32>
    %14 = vector.broadcast %6 : vector<8x1xf32> to vector<8x512xf32>
    %15 = arith.subf %2, %14 : vector<8x512xf32>
    %cst_7 = arith.constant 9.99999974E-6 : f32
    %16 = vector.broadcast %cst_7 : f32 to vector<8x1xf32>
    %17 = arith.addf %13, %16 : vector<8x1xf32>
    %18 = math.rsqrt %17 : vector<8x1xf32>
    %19 = vector.broadcast %18 : vector<8x1xf32> to vector<8x512xf32>
    %20 = arith.mulf %15, %19 : vector<8x512xf32>
    %c0_8 = arith.constant 0 : index
    %c0_9 = arith.constant 0 : index
    %21 = vector.load %arg3[%c0_8, %c0_9] : memref<8x1xf32, #tpu.memory_space<vmem>>, vector<8x1xf32>
    %22 = vector.broadcast %21 : vector<8x1xf32> to vector<8x512xf32>
    %23 = arith.mulf %20, %22 : vector<8x512xf32>
    %c0_10 = arith.constant 0 : index
    %c0_11 = arith.constant 0 : index
    %24 = vector.load %arg4[%c0_10, %c0_11] : memref<8x1xf32, #tpu.memory_space<vmem>>, vector<8x1xf32>
    %25 = vector.broadcast %24 : vector<8x1xf32> to vector<8x512xf32>
    %26 = arith.addf %23, %25 : vector<8x512xf32>
    %cst_12 = arith.constant 0.000000e+00 : f32
    %27 = vector.broadcast %cst_12 : f32 to vector<8x512xf32>
    %28 = arith.cmpf oge, %26, %27 : vector<8x512xf32>
    %cst_13 = arith.constant 1.000000e-01 : f32
    %29 = vector.broadcast %cst_13 : f32 to vector<8x512xf32>
    %30 = arith.mulf %29, %26 : vector<8x512xf32>
    %31 = arith.select %28, %26, %30 : vector<8x512xi1>, vector<8x512xf32>
    %c0_14 = arith.constant 0 : index
    %c0_15 = arith.constant 0 : index
    %32 = vector.load %arg5[%c0_14, %c0_15] : memref<8x512xf32, #tpu.memory_space<vmem>>, vector<8x512xf32>
    tpu.vector_store %arg5[%c0_14, %c0_15], %31 {strides = array<i32>} : memref<8x512xf32, #tpu.memory_space<vmem>>, vector<8x512xf32>,
    return
  }
}

module attributes {stable_mosaic.version = 11 : i64} {
  func.func @_conv_fused_kernel(%arg0: memref<16x128xbf16, #tpu.memory_space<vmem>>, %arg1: memref<8x16xbf16, #tpu.memory_space<vmem>>, %arg2: memref<8x1xf32, #tpu.memory_space<vmem>>, %arg3: memref<8x1xf32, #tpu.memory_space<vmem>>, %arg4: memref<8x1xf32, #tpu.memory_space<vmem>>, %arg5: memref<8x128xf32, #tpu.memory_space<vmem>>) attributes {dimension_semantics = [], scalar_prefetch = 0 : i64, scratch_operands = 0 : i64, tpu.core_type = #tpu.core_type<tc>} {
    %c0 = arith.constant 0 : index
    %c0_0 = arith.constant 0 : index
    %0 = vector.load %arg1[%c0, %c0_0] : memref<8x16xbf16, #tpu.memory_space<vmem>>, vector<8x16xbf16>
    %c0_1 = arith.constant 0 : index
    %c0_2 = arith.constant 0 : index
    %1 = vector.load %arg0[%c0_1, %c0_2] : memref<16x128xbf16, #tpu.memory_space<vmem>>, vector<16x128xbf16>
    %cst = arith.constant dense<0.000000e+00> : vector<8x128xf32>
    %2 = tpu.matmul %0, %1, %cst {dimension_numbers = #tpu.dot_dimension_numbers<[1], [0], [0], [1], [0, 0, 1, 1], [], []>} : vector<8x16xbf16>, vector<16x128xbf16>, vector<8x128xf32> -> vector<8x128xf32>
    %cst_3 = arith.constant dense<0.000000e+00> : vector<8xf32>
    %3 = vector.multi_reduction <add>, %2, %cst_3 [1] : vector<8x128xf32> to vector<8xf32>
    %4 = vector.shape_cast %3 : vector<8xf32> to vector<8x1xf32>
    %cst_4 = arith.constant 1.280000e+02 : f32
    %5 = vector.broadcast %cst_4 : f32 to vector<8x1xf32>
    %6 = arith.divf %4, %5 : vector<8x1xf32>
    %7 = vector.broadcast %6 : vector<8x1xf32> to vector<8x128xf32>
    %8 = arith.subf %2, %7 : vector<8x128xf32>
    %9 = arith.mulf %8, %8 : vector<8x128xf32>
    %cst_5 = arith.constant dense<0.000000e+00> : vector<8xf32>
    %10 = vector.multi_reduction <add>, %9, %cst_5 [1] : vector<8x128xf32> to vector<8xf32>
    %11 = vector.shape_cast %10 : vector<8xf32> to vector<8x1xf32>
    %cst_6 = arith.constant 1.280000e+02 : f32
    %12 = vector.broadcast %cst_6 : f32 to vector<8x1xf32>
    %13 = arith.divf %11, %12 : vector<8x1xf32>
    %14 = vector.broadcast %6 : vector<8x1xf32> to vector<8x128xf32>
    %15 = arith.subf %2, %14 : vector<8x128xf32>
    %cst_7 = arith.constant 9.99999974E-6 : f32
    %16 = vector.broadcast %cst_7 : f32 to vector<8x1xf32>
    %17 = arith.addf %13, %16 : vector<8x1xf32>
    %18 = math.rsqrt %17 : vector<8x1xf32>
    %19 = vector.broadcast %18 : vector<8x1xf32> to vector<8x128xf32>
    %20 = arith.mulf %15, %19 : vector<8x128xf32>
    %c0_8 = arith.constant 0 : index
    %c0_9 = arith.constant 0 : index
    %21 = vector.load %arg3[%c0_8, %c0_9] : memref<8x1xf32, #tpu.memory_space<vmem>>, vector<8x1xf32>
    %22 = vector.broadcast %21 : vector<8x1xf32> to vector<8x128xf32>
    %23 = arith.mulf %20, %22 : vector<8x128xf32>
    %c0_10 = arith.constant 0 : index
    %c0_11 = arith.constant 0 : index
    %24 = vector.load %arg4[%c0_10, %c0_11] : memref<8x1xf32, #tpu.memory_space<vmem>>, vector<8x1xf32>
    %25 = vector.broadcast %24 : vector<8x1xf32> to vector<8x128xf32>
    %26 = arith.addf %23, %25 : vector<8x128xf32>
    %cst_12 = arith.constant 0.000000e+00 : f32
    %27 = vector.broadcast %cst_12 : f32 to vector<8x128xf32>
    %28 = arith.cmpf oge, %26, %27 : vector<8x128xf32>
    %cst_13 = arith.constant 1.000000e-01 : f32
    %29 = vector.broadcast %cst_13 : f32 to vector<8x128xf32>
    %30 = arith.mulf %29, %26 : vector<8x128xf32>
    %31 = arith.select %28, %26, %30 : vector<8x128xi1>, vector<8x128xf32>
    %c0_14 = arith.constant 0 : index
    %c0_15 = arith.constant 0 : index
    %32 = vector.load %arg5[%c0_14, %c0_15] : memref<8x128xf32, #tpu.memory_space<vmem>>, vector<8x128xf32>
    tpu.vector_store %arg5[%c0_14, %c0_15], %31 {strides = array<i32>} : memref<8x128xf32, #tpu.memory_space<vmem>>, vector<8x128xf32>,
    return
  }
}

module attributes {stable_mosaic.version = 11 : i64} {
  func.func @_conv_fused_kernel(%arg0: memref<72x128xbf16, #tpu.memory_space<vmem>>, %arg1: memref<16x72xbf16, #tpu.memory_space<vmem>>, %arg2: memref<16x1xf32, #tpu.memory_space<vmem>>, %arg3: memref<16x1xf32, #tpu.memory_space<vmem>>, %arg4: memref<16x1xf32, #tpu.memory_space<vmem>>, %arg5: memref<16x128xf32, #tpu.memory_space<vmem>>) attributes {dimension_semantics = [], scalar_prefetch = 0 : i64, scratch_operands = 0 : i64, tpu.core_type = #tpu.core_type<tc>} {
    %c0 = arith.constant 0 : index
    %c0_0 = arith.constant 0 : index
    %0 = vector.load %arg1[%c0, %c0_0] : memref<16x72xbf16, #tpu.memory_space<vmem>>, vector<16x72xbf16>
    %c0_1 = arith.constant 0 : index
    %c0_2 = arith.constant 0 : index
    %1 = vector.load %arg0[%c0_1, %c0_2] : memref<72x128xbf16, #tpu.memory_space<vmem>>, vector<72x128xbf16>
    %cst = arith.constant dense<0.000000e+00> : vector<16x128xf32>
    %2 = tpu.matmul %0, %1, %cst {dimension_numbers = #tpu.dot_dimension_numbers<[1], [0], [0], [1], [0, 0, 1, 1], [], []>} : vector<16x72xbf16>, vector<72x128xbf16>, vector<16x128xf32> -> vector<16x128xf32>
    %cst_3 = arith.constant dense<0.000000e+00> : vector<16xf32>
    %3 = vector.multi_reduction <add>, %2, %cst_3 [1] : vector<16x128xf32> to vector<16xf32>
    %4 = vector.shape_cast %3 : vector<16xf32> to vector<16x1xf32>
    %cst_4 = arith.constant 1.280000e+02 : f32
    %5 = vector.broadcast %cst_4 : f32 to vector<16x1xf32>
    %6 = arith.divf %4, %5 : vector<16x1xf32>
    %7 = vector.broadcast %6 : vector<16x1xf32> to vector<16x128xf32>
    %8 = arith.subf %2, %7 : vector<16x128xf32>
    %9 = arith.mulf %8, %8 : vector<16x128xf32>
    %cst_5 = arith.constant dense<0.000000e+00> : vector<16xf32>
    %10 = vector.multi_reduction <add>, %9, %cst_5 [1] : vector<16x128xf32> to vector<16xf32>
    %11 = vector.shape_cast %10 : vector<16xf32> to vector<16x1xf32>
    %cst_6 = arith.constant 1.280000e+02 : f32
    %12 = vector.broadcast %cst_6 : f32 to vector<16x1xf32>
    %13 = arith.divf %11, %12 : vector<16x1xf32>
    %14 = vector.broadcast %6 : vector<16x1xf32> to vector<16x128xf32>
    %15 = arith.subf %2, %14 : vector<16x128xf32>
    %cst_7 = arith.constant 9.99999974E-6 : f32
    %16 = vector.broadcast %cst_7 : f32 to vector<16x1xf32>
    %17 = arith.addf %13, %16 : vector<16x1xf32>
    %18 = math.rsqrt %17 : vector<16x1xf32>
    %19 = vector.broadcast %18 : vector<16x1xf32> to vector<16x128xf32>
    %20 = arith.mulf %15, %19 : vector<16x128xf32>
    %c0_8 = arith.constant 0 : index
    %c0_9 = arith.constant 0 : index
    %21 = vector.load %arg3[%c0_8, %c0_9] : memref<16x1xf32, #tpu.memory_space<vmem>>, vector<16x1xf32>
    %22 = vector.broadcast %21 : vector<16x1xf32> to vector<16x128xf32>
    %23 = arith.mulf %20, %22 : vector<16x128xf32>
    %c0_10 = arith.constant 0 : index
    %c0_11 = arith.constant 0 : index
    %24 = vector.load %arg4[%c0_10, %c0_11] : memref<16x1xf32, #tpu.memory_space<vmem>>, vector<16x1xf32>
    %25 = vector.broadcast %24 : vector<16x1xf32> to vector<16x128xf32>
    %26 = arith.addf %23, %25 : vector<16x128xf32>
    %cst_12 = arith.constant 0.000000e+00 : f32
    %27 = vector.broadcast %cst_12 : f32 to vector<16x128xf32>
    %28 = arith.cmpf oge, %26, %27 : vector<16x128xf32>
    %cst_13 = arith.constant 1.000000e-01 : f32
    %29 = vector.broadcast %cst_13 : f32 to vector<16x128xf32>
    %30 = arith.mulf %29, %26 : vector<16x128xf32>
    %31 = arith.select %28, %26, %30 : vector<16x128xi1>, vector<16x128xf32>
    %c0_14 = arith.constant 0 : index
    %c0_15 = arith.constant 0 : index
    %32 = vector.load %arg5[%c0_14, %c0_15] : memref<16x128xf32, #tpu.memory_space<vmem>>, vector<16x128xf32>
    tpu.vector_store %arg5[%c0_14, %c0_15], %31 {strides = array<i32>} : memref<16x128xf32, #tpu.memory_space<vmem>>, vector<16x128xf32>,
    return
  }
}

module attributes {stable_mosaic.version = 11 : i64} {
  func.func @_upsample_kernel(%arg0: memref<16x8x8xf32, #tpu.memory_space<vmem>>, %arg1: memref<16x8xf32, #tpu.memory_space<vmem>>, %arg2: memref<8x16xf32, #tpu.memory_space<vmem>>, %arg3: memref<16x16x16xf32, #tpu.memory_space<vmem>>) attributes {dimension_semantics = [], scalar_prefetch = 0 : i64, scratch_operands = 0 : i64, tpu.core_type = #tpu.core_type<tc>} {
    %c0 = arith.constant 0 : index
    %c0_0 = arith.constant 0 : index
    %0 = vector.load %arg1[%c0, %c0_0] : memref<16x8xf32, #tpu.memory_space<vmem>>, vector<16x8xf32>
    %c0_1 = arith.constant 0 : index
    %c0_2 = arith.constant 0 : index
    %1 = vector.load %arg2[%c0_1, %c0_2] : memref<8x16xf32, #tpu.memory_space<vmem>>, vector<8x16xf32>
    %c0_3 = arith.constant 0 : index
    %c0_4 = arith.constant 0 : index
    %c0_5 = arith.constant 0 : index
    %2 = vector.load %arg0[%c0_3, %c0_4, %c0_5] : memref<16x8x8xf32, #tpu.memory_space<vmem>>, vector<1x8x8xf32>
    %3 = vector.shape_cast %2 : vector<1x8x8xf32> to vector<8x8xf32>
    %cst = arith.constant dense<0.000000e+00> : vector<8x16xf32>
    %4 = tpu.matmul %3, %1, %cst {dimension_numbers = #tpu.dot_dimension_numbers<[1], [0], [0], [1], [0, 0, 1, 1], [], []>} : vector<8x8xf32>, vector<8x16xf32>, vector<8x16xf32> -> vector<8x16xf32>
    %cst_6 = arith.constant dense<0.000000e+00> : vector<16x16xf32>
    %5 = tpu.matmul %0, %4, %cst_6 {dimension_numbers = #tpu.dot_dimension_numbers<[1], [0], [0], [1], [0, 0, 1, 1], [], []>} : vector<16x8xf32>, vector<8x16xf32>, vector<16x16xf32> -> vector<16x16xf32>
    %c0_7 = arith.constant 0 : index
    %c0_8 = arith.constant 0 : index
    %c0_9 = arith.constant 0 : index
    %6 = vector.load %arg3[%c0_7, %c0_8, %c0_9] : memref<16x16x16xf32, #tpu.memory_space<vmem>>, vector<1x16x16xf32>
    %7 = vector.shape_cast %6 : vector<1x16x16xf32> to vector<16x16xf32>
    %8 = vector.shape_cast %5 : vector<16x16xf32> to vector<1x16x16xf32>
    tpu.vector_store %arg3[%c0_7, %c0_8, %c0_9], %8 {strides = array<i32>} : memref<16x16x16xf32, #tpu.memory_space<vmem>>, vector<1x16x16xf32>,
    %c1 = arith.constant 1 : index
    %c0_10 = arith.constant 0 : index
    %c0_11 = arith.constant 0 : index
    %9 = vector.load %arg0[%c1, %c0_10, %c0_11] : memref<16x8x8xf32, #tpu.memory_space<vmem>>, vector<1x8x8xf32>
    %10 = vector.shape_cast %9 : vector<1x8x8xf32> to vector<8x8xf32>
    %cst_12 = arith.constant dense<0.000000e+00> : vector<8x16xf32>
    %11 = tpu.matmul %10, %1, %cst_12 {dimension_numbers = #tpu.dot_dimension_numbers<[1], [0], [0], [1], [0, 0, 1, 1], [], []>} : vector<8x8xf32>, vector<8x16xf32>, vector<8x16xf32> -> vector<8x16xf32>
    %cst_13 = arith.constant dense<0.000000e+00> : vector<16x16xf32>
    %12 = tpu.matmul %0, %11, %cst_13 {dimension_numbers = #tpu.dot_dimension_numbers<[1], [0], [0], [1], [0, 0, 1, 1], [], []>} : vector<16x8xf32>, vector<8x16xf32>, vector<16x16xf32> -> vector<16x16xf32>
    %c1_14 = arith.constant 1 : index
    %c0_15 = arith.constant 0 : index
    %c0_16 = arith.constant 0 : index
    %13 = vector.load %arg3[%c1_14, %c0_15, %c0_16] : memref<16x16x16xf32, #tpu.memory_space<vmem>>, vector<1x16x16xf32>
    %14 = vector.shape_cast %13 : vector<1x16x16xf32> to vector<16x16xf32>
    %15 = vector.shape_cast %12 : vector<16x16xf32> to vector<1x16x16xf32>
    tpu.vector_store %arg3[%c1_14, %c0_15, %c0_16], %15 {strides = array<i32>} : memref<16x16x16xf32, #tpu.memory_space<vmem>>, vector<1x16x16xf32>,
    %c2 = arith.constant 2 : index
    %c0_17 = arith.constant 0 : index
    %c0_18 = arith.constant 0 : index
    %16 = vector.load %arg0[%c2, %c0_17, %c0_18] : memref<16x8x8xf32, #tpu.memory_space<vmem>>, vector<1x8x8xf32>
    %17 = vector.shape_cast %16 : vector<1x8x8xf32> to vector<8x8xf32>
    %cst_19 = arith.constant dense<0.000000e+00> : vector<8x16xf32>
    %18 = tpu.matmul %17, %1, %cst_19 {dimension_numbers = #tpu.dot_dimension_numbers<[1], [0], [0], [1], [0, 0, 1, 1], [], []>} : vector<8x8xf32>, vector<8x16xf32>, vector<8x16xf32> -> vector<8x16xf32>
    %cst_20 = arith.constant dense<0.000000e+00> : vector<16x16xf32>
    %19 = tpu.matmul %0, %18, %cst_20 {dimension_numbers = #tpu.dot_dimension_numbers<[1], [0], [0], [1], [0, 0, 1, 1], [], []>} : vector<16x8xf32>, vector<8x16xf32>, vector<16x16xf32> -> vector<16x16xf32>
    %c2_21 = arith.constant 2 : index
    %c0_22 = arith.constant 0 : index
    %c0_23 = arith.constant 0 : index
    %20 = vector.load %arg3[%c2_21, %c0_22, %c0_23] : memref<16x16x16xf32, #tpu.memory_space<vmem>>, vector<1x16x16xf32>
    %21 = vector.shape_cast %20 : vector<1x16x16xf32> to vector<16x16xf32>
    %22 = vector.shape_cast %19 : vector<16x16xf32> to vector<1x16x16xf32>
    tpu.vector_store %arg3[%c2_21, %c0_22, %c0_23], %22 {strides = array<i32>} : memref<16x16x16xf32, #tpu.memory_space<vmem>>, vector<1x16x16xf32>,
    %c3 = arith.constant 3 : index
    %c0_24 = arith.constant 0 : index
    %c0_25 = arith.constant 0 : index
    %23 = vector.load %arg0[%c3, %c0_24, %c0_25] : memref<16x8x8xf32, #tpu.memory_space<vmem>>, vector<1x8x8xf32>
    %24 = vector.shape_cast %23 : vector<1x8x8xf32> to vector<8x8xf32>
    %cst_26 = arith.constant dense<0.000000e+00> : vector<8x16xf32>
    %25 = tpu.matmul %24, %1, %cst_26 {dimension_numbers = #tpu.dot_dimension_numbers<[1], [0], [0], [1], [0, 0, 1, 1], [], []>} : vector<8x8xf32>, vector<8x16xf32>, vector<8x16xf32> -> vector<8x16xf32>
    %cst_27 = arith.constant dense<0.000000e+00> : vector<16x16xf32>
    %26 = tpu.matmul %0, %25, %cst_27 {dimension_numbers = #tpu.dot_dimension_numbers<[1], [0], [0], [1], [0, 0, 1, 1], [], []>} : vector<16x8xf32>, vector<8x16xf32>, vector<16x16xf32> -> vector<16x16xf32>
    %c3_28 = arith.constant 3 : index
    %c0_29 = arith.constant 0 : index
    %c0_30 = arith.constant 0 : index
    %27 = vector.load %arg3[%c3_28, %c0_29, %c0_30] : memref<16x16x16xf32, #tpu.memory_space<vmem>>, vector<1x16x16xf32>
    %28 = vector.shape_cast %27 : vector<1x16x16xf32> to vector<16x16xf32>
    %29 = vector.shape_cast %26 : vector<16x16xf32> to vector<1x16x16xf32>
    tpu.vector_store %arg3[%c3_28, %c0_29, %c0_30], %29 {strides = array<i32>} : memref<16x16x16xf32, #tpu.memory_space<vmem>>, vector<1x16x16xf32>,
    %c4 = arith.constant 4 : index
    %c0_31 = arith.constant 0 : index
    %c0_32 = arith.constant 0 : index
    %30 = vector.load %arg0[%c4, %c0_31, %c0_32] : memref<16x8x8xf32, #tpu.memory_space<vmem>>, vector<1x8x8xf32>
    %31 = vector.shape_cast %30 : vector<1x8x8xf32> to vector<8x8xf32>
    %cst_33 = arith.constant dense<0.000000e+00> : vector<8x16xf32>
    %32 = tpu.matmul %31, %1, %cst_33 {dimension_numbers = #tpu.dot_dimension_numbers<[1], [0], [0], [1], [0, 0, 1, 1], [], []>} : vector<8x8xf32>, vector<8x16xf32>, vector<8x16xf32> -> vector<8x16xf32>
    %cst_34 = arith.constant dense<0.000000e+00> : vector<16x16xf32>
    %33 = tpu.matmul %0, %32, %cst_34 {dimension_numbers = #tpu.dot_dimension_numbers<[1], [0], [0], [1], [0, 0, 1, 1], [], []>} : vector<16x8xf32>, vector<8x16xf32>, vector<16x16xf32> -> vector<16x16xf32>
    %c4_35 = arith.constant 4 : index
    %c0_36 = arith.constant 0 : index
    %c0_37 = arith.constant 0 : index
    %34 = vector.load %arg3[%c4_35, %c0_36, %c0_37] : memref<16x16x16xf32, #tpu.memory_space<vmem>>, vector<1x16x16xf32>
    %35 = vector.shape_cast %34 : vector<1x16x16xf32> to vector<16x16xf32>
    %36 = vector.shape_cast %33 : vector<16x16xf32> to vector<1x16x16xf32>
    tpu.vector_store %arg3[%c4_35, %c0_36, %c0_37], %36 {strides = array<i32>} : memref<16x16x16xf32, #tpu.memory_space<vmem>>, vector<1x16x16xf32>,
    %c5 = arith.constant 5 : index
    %c0_38 = arith.constant 0 : index
    %c0_39 = arith.constant 0 : index
    %37 = vector.load %arg0[%c5, %c0_38, %c0_39] : memref<16x8x8xf32, #tpu.memory_space<vmem>>, vector<1x8x8xf32>
    %38 = vector.shape_cast %37 : vector<1x8x8xf32> to vector<8x8xf32>
    %cst_40 = arith.constant dense<0.000000e+00> : vector<8x16xf32>
    %39 = tpu.matmul %38, %1, %cst_40 {dimension_numbers = #tpu.dot_dimension_numbers<[1], [0], [0], [1], [0, 0, 1, 1], [], []>} : vector<8x8xf32>, vector<8x16xf32>, vector<8x16xf32> -> vector<8x16xf32>
    %cst_41 = arith.constant dense<0.000000e+00> : vector<16x16xf32>
    %40 = tpu.matmul %0, %39, %cst_41 {dimension_numbers = #tpu.dot_dimension_numbers<[1], [0], [0], [1], [0, 0, 1, 1], [], []>} : vector<16x8xf32>, vector<8x16xf32>, vector<16x16xf32> -> vector<16x16xf32>
    %c5_42 = arith.constant 5 : index
    %c0_43 = arith.constant 0 : index
    %c0_44 = arith.constant 0 : index
    %41 = vector.load %arg3[%c5_42, %c0_43, %c0_44] : memref<16x16x16xf32, #tpu.memory_space<vmem>>, vector<1x16x16xf32>
    %42 = vector.shape_cast %41 : vector<1x16x16xf32> to vector<16x16xf32>
    %43 = vector.shape_cast %40 : vector<16x16xf32> to vector<1x16x16xf32>
    tpu.vector_store %arg3[%c5_42, %c0_43, %c0_44], %43 {strides = array<i32>} : memref<16x16x16xf32, #tpu.memory_space<vmem>>, vector<1x16x16xf32>,
    %c6 = arith.constant 6 : index
    %c0_45 = arith.constant 0 : index
    %c0_46 = arith.constant 0 : index
    %44 = vector.load %arg0[%c6, %c0_45, %c0_46] : memref<16x8x8xf32, #tpu.memory_space<vmem>>, vector<1x8x8xf32>
    %45 = vector.shape_cast %44 : vector<1x8x8xf32> to vector<8x8xf32>
    %cst_47 = arith.constant dense<0.000000e+00> : vector<8x16xf32>
    %46 = tpu.matmul %45, %1, %cst_47 {dimension_numbers = #tpu.dot_dimension_numbers<[1], [0], [0], [1], [0, 0, 1, 1], [], []>} : vector<8x8xf32>, vector<8x16xf32>, vector<8x16xf32> -> vector<8x16xf32>
    %cst_48 = arith.constant dense<0.000000e+00> : vector<16x16xf32>
    %47 = tpu.matmul %0, %46, %cst_48 {dimension_numbers = #tpu.dot_dimension_numbers<[1], [0], [0], [1], [0, 0, 1, 1], [], []>} : vector<16x8xf32>, vector<8x16xf32>, vector<16x16xf32> -> vector<16x16xf32>
    %c6_49 = arith.constant 6 : index
    %c0_50 = arith.constant 0 : index
    %c0_51 = arith.constant 0 : index
    %48 = vector.load %arg3[%c6_49, %c0_50, %c0_51] : memref<16x16x16xf32, #tpu.memory_space<vmem>>, vector<1x16x16xf32>
    %49 = vector.shape_cast %48 : vector<1x16x16xf32> to vector<16x16xf32>
    %50 = vector.shape_cast %47 : vector<16x16xf32> to vector<1x16x16xf32>
    tpu.vector_store %arg3[%c6_49, %c0_50, %c0_51], %50 {strides = array<i32>} : memref<16x16x16xf32, #tpu.memory_space<vmem>>, vector<1x16x16xf32>,
    %c7 = arith.constant 7 : index
    %c0_52 = arith.constant 0 : index
    %c0_53 = arith.constant 0 : index
    %51 = vector.load %arg0[%c7, %c0_52, %c0_53] : memref<16x8x8xf32, #tpu.memory_space<vmem>>, vector<1x8x8xf32>
    %52 = vector.shape_cast %51 : vector<1x8x8xf32> to vector<8x8xf32>
    %cst_54 = arith.constant dense<0.000000e+00> : vector<8x16xf32>
    %53 = tpu.matmul %52, %1, %cst_54 {dimension_numbers = #tpu.dot_dimension_numbers<[1], [0], [0], [1], [0, 0, 1, 1], [], []>} : vector<8x8xf32>, vector<8x16xf32>, vector<8x16xf32> -> vector<8x16xf32>
    %cst_55 = arith.constant dense<0.000000e+00> : vector<16x16xf32>
    %54 = tpu.matmul %0, %53, %cst_55 {dimension_numbers = #tpu.dot_dimension_numbers<[1], [0], [0], [1], [0, 0, 1, 1], [], []>} : vector<16x8xf32>, vector<8x16xf32>, vector<16x16xf32> -> vector<16x16xf32>
    %c7_56 = arith.constant 7 : index
    %c0_57 = arith.constant 0 : index
    %c0_58 = arith.constant 0 : index
    %55 = vector.load %arg3[%c7_56, %c0_57, %c0_58] : memref<16x16x16xf32, #tpu.memory_space<vmem>>, vector<1x16x16xf32>
    %56 = vector.shape_cast %55 : vector<1x16x16xf32> to vector<16x16xf32>
    %57 = vector.shape_cast %54 : vector<16x16xf32> to vector<1x16x16xf32>
    tpu.vector_store %arg3[%c7_56, %c0_57, %c0_58], %57 {strides = array<i32>} : memref<16x16x16xf32, #tpu.memory_space<vmem>>, vector<1x16x16xf32>,
    %c8 = arith.constant 8 : index
    %c0_59 = arith.constant 0 : index
    %c0_60 = arith.constant 0 : index
    %58 = vector.load %arg0[%c8, %c0_59, %c0_60] : memref<16x8x8xf32, #tpu.memory_space<vmem>>, vector<1x8x8xf32>
    %59 = vector.shape_cast %58 : vector<1x8x8xf32> to vector<8x8xf32>
    %cst_61 = arith.constant dense<0.000000e+00> : vector<8x16xf32>
    %60 = tpu.matmul %59, %1, %cst_61 {dimension_numbers = #tpu.dot_dimension_numbers<[1], [0], [0], [1], [0, 0, 1, 1], [], []>} : vector<8x8xf32>, vector<8x16xf32>, vector<8x16xf32> -> vector<8x16xf32>
    %cst_62 = arith.constant dense<0.000000e+00> : vector<16x16xf32>
    %61 = tpu.matmul %0, %60, %cst_62 {dimension_numbers = #tpu.dot_dimension_numbers<[1], [0], [0], [1], [0, 0, 1, 1], [], []>} : vector<16x8xf32>, vector<8x16xf32>, vector<16x16xf32> -> vector<16x16xf32>
    %c8_63 = arith.constant 8 : index
    %c0_64 = arith.constant 0 : index
    %c0_65 = arith.constant 0 : index
    %62 = vector.load %arg3[%c8_63, %c0_64, %c0_65] : memref<16x16x16xf32, #tpu.memory_space<vmem>>, vector<1x16x16xf32>
    %63 = vector.shape_cast %62 : vector<1x16x16xf32> to vector<16x16xf32>
    %64 = vector.shape_cast %61 : vector<16x16xf32> to vector<1x16x16xf32>
    tpu.vector_store %arg3[%c8_63, %c0_64, %c0_65], %64 {strides = array<i32>} : memref<16x16x16xf32, #tpu.memory_space<vmem>>, vector<1x16x16xf32>,
    %c9 = arith.constant 9 : index
    %c0_66 = arith.constant 0 : index
    %c0_67 = arith.constant 0 : index
    %65 = vector.load %arg0[%c9, %c0_66, %c0_67] : memref<16x8x8xf32, #tpu.memory_space<vmem>>, vector<1x8x8xf32>
    %66 = vector.shape_cast %65 : vector<1x8x8xf32> to vector<8x8xf32>
    %cst_68 = arith.constant dense<0.000000e+00> : vector<8x16xf32>
    %67 = tpu.matmul %66, %1, %cst_68 {dimension_numbers = #tpu.dot_dimension_numbers<[1], [0], [0], [1], [0, 0, 1, 1], [], []>} : vector<8x8xf32>, vector<8x16xf32>, vector<8x16xf32> -> vector<8x16xf32>
    %cst_69 = arith.constant dense<0.000000e+00> : vector<16x16xf32>
    %68 = tpu.matmul %0, %67, %cst_69 {dimension_numbers = #tpu.dot_dimension_numbers<[1], [0], [0], [1], [0, 0, 1, 1], [], []>} : vector<16x8xf32>, vector<8x16xf32>, vector<16x16xf32> -> vector<16x16xf32>
    %c9_70 = arith.constant 9 : index
    %c0_71 = arith.constant 0 : index
    %c0_72 = arith.constant 0 : index
    %69 = vector.load %arg3[%c9_70, %c0_71, %c0_72] : memref<16x16x16xf32, #tpu.memory_space<vmem>>, vector<1x16x16xf32>
    %70 = vector.shape_cast %69 : vector<1x16x16xf32> to vector<16x16xf32>
    %71 = vector.shape_cast %68 : vector<16x16xf32> to vector<1x16x16xf32>
    tpu.vector_store %arg3[%c9_70, %c0_71, %c0_72], %71 {strides = array<i32>} : memref<16x16x16xf32, #tpu.memory_space<vmem>>, vector<1x16x16xf32>,
    %c10 = arith.constant 10 : index
    %c0_73 = arith.constant 0 : index
    %c0_74 = arith.constant 0 : index
    %72 = vector.load %arg0[%c10, %c0_73, %c0_74] : memref<16x8x8xf32, #tpu.memory_space<vmem>>, vector<1x8x8xf32>
    %73 = vector.shape_cast %72 : vector<1x8x8xf32> to vector<8x8xf32>
    %cst_75 = arith.constant dense<0.000000e+00> : vector<8x16xf32>
    %74 = tpu.matmul %73, %1, %cst_75 {dimension_numbers = #tpu.dot_dimension_numbers<[1], [0], [0], [1], [0, 0, 1, 1], [], []>} : vector<8x8xf32>, vector<8x16xf32>, vector<8x16xf32> -> vector<8x16xf32>
    %cst_76 = arith.constant dense<0.000000e+00> : vector<16x16xf32>
    %75 = tpu.matmul %0, %74, %cst_76 {dimension_numbers = #tpu.dot_dimension_numbers<[1], [0], [0], [1], [0, 0, 1, 1], [], []>} : vector<16x8xf32>, vector<8x16xf32>, vector<16x16xf32> -> vector<16x16xf32>
    %c10_77 = arith.constant 10 : index
    %c0_78 = arith.constant 0 : index
    %c0_79 = arith.constant 0 : index
    %76 = vector.load %arg3[%c10_77, %c0_78, %c0_79] : memref<16x16x16xf32, #tpu.memory_space<vmem>>, vector<1x16x16xf32>
    %77 = vector.shape_cast %76 : vector<1x16x16xf32> to vector<16x16xf32>
    %78 = vector.shape_cast %75 : vector<16x16xf32> to vector<1x16x16xf32>
    tpu.vector_store %arg3[%c10_77, %c0_78, %c0_79], %78 {strides = array<i32>} : memref<16x16x16xf32, #tpu.memory_space<vmem>>, vector<1x16x16xf32>,
    %c11 = arith.constant 11 : index
    %c0_80 = arith.constant 0 : index
    %c0_81 = arith.constant 0 : index
    %79 = vector.load %arg0[%c11, %c0_80, %c0_81] : memref<16x8x8xf32, #tpu.memory_space<vmem>>, vector<1x8x8xf32>
    %80 = vector.shape_cast %79 : vector<1x8x8xf32> to vector<8x8xf32>
    %cst_82 = arith.constant dense<0.000000e+00> : vector<8x16xf32>
    %81 = tpu.matmul %80, %1, %cst_82 {dimension_numbers = #tpu.dot_dimension_numbers<[1], [0], [0], [1], [0, 0, 1, 1], [], []>} : vector<8x8xf32>, vector<8x16xf32>, vector<8x16xf32> -> vector<8x16xf32>
    %cst_83 = arith.constant dense<0.000000e+00> : vector<16x16xf32>
    %82 = tpu.matmul %0, %81, %cst_83 {dimension_numbers = #tpu.dot_dimension_numbers<[1], [0], [0], [1], [0, 0, 1, 1], [], []>} : vector<16x8xf32>, vector<8x16xf32>, vector<16x16xf32> -> vector<16x16xf32>
    %c11_84 = arith.constant 11 : index
    %c0_85 = arith.constant 0 : index
    %c0_86 = arith.constant 0 : index
    %83 = vector.load %arg3[%c11_84, %c0_85, %c0_86] : memref<16x16x16xf32, #tpu.memory_space<vmem>>, vector<1x16x16xf32>
    %84 = vector.shape_cast %83 : vector<1x16x16xf32> to vector<16x16xf32>
    %85 = vector.shape_cast %82 : vector<16x16xf32> to vector<1x16x16xf32>
    tpu.vector_store %arg3[%c11_84, %c0_85, %c0_86], %85 {strides = array<i32>} : memref<16x16x16xf32, #tpu.memory_space<vmem>>, vector<1x16x16xf32>,
    %c12 = arith.constant 12 : index
    %c0_87 = arith.constant 0 : index
    %c0_88 = arith.constant 0 : index
    %86 = vector.load %arg0[%c12, %c0_87, %c0_88] : memref<16x8x8xf32, #tpu.memory_space<vmem>>, vector<1x8x8xf32>
    %87 = vector.shape_cast %86 : vector<1x8x8xf32> to vector<8x8xf32>
    %cst_89 = arith.constant dense<0.000000e+00> : vector<8x16xf32>
    %88 = tpu.matmul %87, %1, %cst_89 {dimension_numbers = #tpu.dot_dimension_numbers<[1], [0], [0], [1], [0, 0, 1, 1], [], []>} : vector<8x8xf32>, vector<8x16xf32>, vector<8x16xf32> -> vector<8x16xf32>
    %cst_90 = arith.constant dense<0.000000e+00> : vector<16x16xf32>
    %89 = tpu.matmul %0, %88, %cst_90 {dimension_numbers = #tpu.dot_dimension_numbers<[1], [0], [0], [1], [0, 0, 1, 1], [], []>} : vector<16x8xf32>, vector<8x16xf32>, vector<16x16xf32> -> vector<16x16xf32>
    %c12_91 = arith.constant 12 : index
    %c0_92 = arith.constant 0 : index
    %c0_93 = arith.constant 0 : index
    %90 = vector.load %arg3[%c12_91, %c0_92, %c0_93] : memref<16x16x16xf32, #tpu.memory_space<vmem>>, vector<1x16x16xf32>
    %91 = vector.shape_cast %90 : vector<1x16x16xf32> to vector<16x16xf32>
    %92 = vector.shape_cast %89 : vector<16x16xf32> to vector<1x16x16xf32>
    tpu.vector_store %arg3[%c12_91, %c0_92, %c0_93], %92 {strides = array<i32>} : memref<16x16x16xf32, #tpu.memory_space<vmem>>, vector<1x16x16xf32>,
    %c13 = arith.constant 13 : index
    %c0_94 = arith.constant 0 : index
    %c0_95 = arith.constant 0 : index
    %93 = vector.load %arg0[%c13, %c0_94, %c0_95] : memref<16x8x8xf32, #tpu.memory_space<vmem>>, vector<1x8x8xf32>
    %94 = vector.shape_cast %93 : vector<1x8x8xf32> to vector<8x8xf32>
    %cst_96 = arith.constant dense<0.000000e+00> : vector<8x16xf32>
    %95 = tpu.matmul %94, %1, %cst_96 {dimension_numbers = #tpu.dot_dimension_numbers<[1], [0], [0], [1], [0, 0, 1, 1], [], []>} : vector<8x8xf32>, vector<8x16xf32>, vector<8x16xf32> -> vector<8x16xf32>
    %cst_97 = arith.constant dense<0.000000e+00> : vector<16x16xf32>
    %96 = tpu.matmul %0, %95, %cst_97 {dimension_numbers = #tpu.dot_dimension_numbers<[1], [0], [0], [1], [0, 0, 1, 1], [], []>} : vector<16x8xf32>, vector<8x16xf32>, vector<16x16xf32> -> vector<16x16xf32>
    %c13_98 = arith.constant 13 : index
    %c0_99 = arith.constant 0 : index
    %c0_100 = arith.constant 0 : index
    %97 = vector.load %arg3[%c13_98, %c0_99, %c0_100] : memref<16x16x16xf32, #tpu.memory_space<vmem>>, vector<1x16x16xf32>
    %98 = vector.shape_cast %97 : vector<1x16x16xf32> to vector<16x16xf32>
    %99 = vector.shape_cast %96 : vector<16x16xf32> to vector<1x16x16xf32>
    tpu.vector_store %arg3[%c13_98, %c0_99, %c0_100], %99 {strides = array<i32>} : memref<16x16x16xf32, #tpu.memory_space<vmem>>, vector<1x16x16xf32>,
    %c14 = arith.constant 14 : index
    %c0_101 = arith.constant 0 : index
    %c0_102 = arith.constant 0 : index
    %100 = vector.load %arg0[%c14, %c0_101, %c0_102] : memref<16x8x8xf32, #tpu.memory_space<vmem>>, vector<1x8x8xf32>
    %101 = vector.shape_cast %100 : vector<1x8x8xf32> to vector<8x8xf32>
    %cst_103 = arith.constant dense<0.000000e+00> : vector<8x16xf32>
    %102 = tpu.matmul %101, %1, %cst_103 {dimension_numbers = #tpu.dot_dimension_numbers<[1], [0], [0], [1], [0, 0, 1, 1], [], []>} : vector<8x8xf32>, vector<8x16xf32>, vector<8x16xf32> -> vector<8x16xf32>
    %cst_104 = arith.constant dense<0.000000e+00> : vector<16x16xf32>
    %103 = tpu.matmul %0, %102, %cst_104 {dimension_numbers = #tpu.dot_dimension_numbers<[1], [0], [0], [1], [0, 0, 1, 1], [], []>} : vector<16x8xf32>, vector<8x16xf32>, vector<16x16xf32> -> vector<16x16xf32>
    %c14_105 = arith.constant 14 : index
    %c0_106 = arith.constant 0 : index
    %c0_107 = arith.constant 0 : index
    %104 = vector.load %arg3[%c14_105, %c0_106, %c0_107] : memref<16x16x16xf32, #tpu.memory_space<vmem>>, vector<1x16x16xf32>
    %105 = vector.shape_cast %104 : vector<1x16x16xf32> to vector<16x16xf32>
    %106 = vector.shape_cast %103 : vector<16x16xf32> to vector<1x16x16xf32>
    tpu.vector_store %arg3[%c14_105, %c0_106, %c0_107], %106 {strides = array<i32>} : memref<16x16x16xf32, #tpu.memory_space<vmem>>, vector<1x16x16xf32>,
    %c15 = arith.constant 15 : index
    %c0_108 = arith.constant 0 : index
    %c0_109 = arith.constant 0 : index
    %107 = vector.load %arg0[%c15, %c0_108, %c0_109] : memref<16x8x8xf32, #tpu.memory_space<vmem>>, vector<1x8x8xf32>
    %108 = vector.shape_cast %107 : vector<1x8x8xf32> to vector<8x8xf32>
    %cst_110 = arith.constant dense<0.000000e+00> : vector<8x16xf32>
    %109 = tpu.matmul %108, %1, %cst_110 {dimension_numbers = #tpu.dot_dimension_numbers<[1], [0], [0], [1], [0, 0, 1, 1], [], []>} : vector<8x8xf32>, vector<8x16xf32>, vector<8x16xf32> -> vector<8x16xf32>
    %cst_111 = arith.constant dense<0.000000e+00> : vector<16x16xf32>
    %110 = tpu.matmul %0, %109, %cst_111 {dimension_numbers = #tpu.dot_dimension_numbers<[1], [0], [0], [1], [0, 0, 1, 1], [], []>} : vector<16x8xf32>, vector<8x16xf32>, vector<16x16xf32> -> vector<16x16xf32>
    %c15_112 = arith.constant 15 : index
    %c0_113 = arith.constant 0 : index
    %c0_114 = arith.constant 0 : index
    %111 = vector.load %arg3[%c15_112, %c0_113, %c0_114] : memref<16x16x16xf32, #tpu.memory_space<vmem>>, vector<1x16x16xf32>
    %112 = vector.shape_cast %111 : vector<1x16x16xf32> to vector<16x16xf32>
    %113 = vector.shape_cast %110 : vector<16x16xf32> to vector<1x16x16xf32>
    tpu.vector_store %arg3[%c15_112, %c0_113, %c0_114], %113 {strides = array<i32>} : memref<16x16x16xf32, #tpu.memory_space<vmem>>, vector<1x16x16xf32>,
    return
  }
}

module attributes {stable_mosaic.version = 11 : i64} {
  func.func @_conv_fused_kernel(%arg0: memref<72x128xbf16, #tpu.memory_space<vmem>>, %arg1: memref<16x72xbf16, #tpu.memory_space<vmem>>, %arg2: memref<16x1xf32, #tpu.memory_space<vmem>>, %arg3: memref<16x1xf32, #tpu.memory_space<vmem>>, %arg4: memref<16x1xf32, #tpu.memory_space<vmem>>, %arg5: memref<16x128xf32, #tpu.memory_space<vmem>>, %arg6: memref<16x128xf32, #tpu.memory_space<vmem>>) attributes {dimension_semantics = [], scalar_prefetch = 0 : i64, scratch_operands = 0 : i64, tpu.core_type = #tpu.core_type<tc>} {
    %c0 = arith.constant 0 : index
    %c0_0 = arith.constant 0 : index
    %0 = vector.load %arg1[%c0, %c0_0] : memref<16x72xbf16, #tpu.memory_space<vmem>>, vector<16x72xbf16>
    %c0_1 = arith.constant 0 : index
    %c0_2 = arith.constant 0 : index
    %1 = vector.load %arg0[%c0_1, %c0_2] : memref<72x128xbf16, #tpu.memory_space<vmem>>, vector<72x128xbf16>
    %cst = arith.constant dense<0.000000e+00> : vector<16x128xf32>
    %2 = tpu.matmul %0, %1, %cst {dimension_numbers = #tpu.dot_dimension_numbers<[1], [0], [0], [1], [0, 0, 1, 1], [], []>} : vector<16x72xbf16>, vector<72x128xbf16>, vector<16x128xf32> -> vector<16x128xf32>
    %cst_3 = arith.constant dense<0.000000e+00> : vector<16xf32>
    %3 = vector.multi_reduction <add>, %2, %cst_3 [1] : vector<16x128xf32> to vector<16xf32>
    %4 = vector.shape_cast %3 : vector<16xf32> to vector<16x1xf32>
    %cst_4 = arith.constant 1.280000e+02 : f32
    %5 = vector.broadcast %cst_4 : f32 to vector<16x1xf32>
    %6 = arith.divf %4, %5 : vector<16x1xf32>
    %7 = vector.broadcast %6 : vector<16x1xf32> to vector<16x128xf32>
    %8 = arith.subf %2, %7 : vector<16x128xf32>
    %9 = arith.mulf %8, %8 : vector<16x128xf32>
    %cst_5 = arith.constant dense<0.000000e+00> : vector<16xf32>
    %10 = vector.multi_reduction <add>, %9, %cst_5 [1] : vector<16x128xf32> to vector<16xf32>
    %11 = vector.shape_cast %10 : vector<16xf32> to vector<16x1xf32>
    %cst_6 = arith.constant 1.280000e+02 : f32
    %12 = vector.broadcast %cst_6 : f32 to vector<16x1xf32>
    %13 = arith.divf %11, %12 : vector<16x1xf32>
    %14 = vector.broadcast %6 : vector<16x1xf32> to vector<16x128xf32>
    %15 = arith.subf %2, %14 : vector<16x128xf32>
    %cst_7 = arith.constant 9.99999974E-6 : f32
    %16 = vector.broadcast %cst_7 : f32 to vector<16x1xf32>
    %17 = arith.addf %13, %16 : vector<16x1xf32>
    %18 = math.rsqrt %17 : vector<16x1xf32>
    %19 = vector.broadcast %18 : vector<16x1xf32> to vector<16x128xf32>
    %20 = arith.mulf %15, %19 : vector<16x128xf32>
    %c0_8 = arith.constant 0 : index
    %c0_9 = arith.constant 0 : index
    %21 = vector.load %arg3[%c0_8, %c0_9] : memref<16x1xf32, #tpu.memory_space<vmem>>, vector<16x1xf32>
    %22 = vector.broadcast %21 : vector<16x1xf32> to vector<16x128xf32>
    %23 = arith.mulf %20, %22 : vector<16x128xf32>
    %c0_10 = arith.constant 0 : index
    %c0_11 = arith.constant 0 : index
    %24 = vector.load %arg4[%c0_10, %c0_11] : memref<16x1xf32, #tpu.memory_space<vmem>>, vector<16x1xf32>
    %25 = vector.broadcast %24 : vector<16x1xf32> to vector<16x128xf32>
    %26 = arith.addf %23, %25 : vector<16x128xf32>
    %cst_12 = arith.constant 0.000000e+00 : f32
    %27 = vector.broadcast %cst_12 : f32 to vector<16x128xf32>
    %28 = arith.cmpf oge, %26, %27 : vector<16x128xf32>
    %cst_13 = arith.constant 1.000000e-01 : f32
    %29 = vector.broadcast %cst_13 : f32 to vector<16x128xf32>
    %30 = arith.mulf %29, %26 : vector<16x128xf32>
    %31 = arith.select %28, %26, %30 : vector<16x128xi1>, vector<16x128xf32>
    %c0_14 = arith.constant 0 : index
    %c0_15 = arith.constant 0 : index
    %32 = vector.load %arg5[%c0_14, %c0_15] : memref<16x128xf32, #tpu.memory_space<vmem>>, vector<16x128xf32>
    %33 = arith.addf %31, %32 : vector<16x128xf32>
    %c0_16 = arith.constant 0 : index
    %c0_17 = arith.constant 0 : index
    %34 = vector.load %arg6[%c0_16, %c0_17] : memref<16x128xf32, #tpu.memory_space<vmem>>, vector<16x128xf32>
    tpu.vector_store %arg6[%c0_16, %c0_17], %33 {strides = array<i32>} : memref<16x128xf32, #tpu.memory_space<vmem>>, vector<16x128xf32>,
    return
  }
}

module attributes {stable_mosaic.version = 11 : i64} {
  func.func @_yolo_head_kernel(%arg0: memref<8x512xbf16, #tpu.memory_space<vmem>>, %arg1: memref<8x512xbf16, #tpu.memory_space<vmem>>, %arg2: memref<21x8xbf16, #tpu.memory_space<vmem>>, %arg3: memref<21x8xbf16, #tpu.memory_space<vmem>>, %arg4: memref<21x1xf32, #tpu.memory_space<vmem>>, %arg5: memref<6x512xf32, #tpu.memory_space<vmem>>, %arg6: memref<6x1xf32, #tpu.memory_space<vmem>>, %arg7: memref<21x512xf32, #tpu.memory_space<vmem>>) attributes {dimension_semantics = [], scalar_prefetch = 0 : i64, scratch_operands = 0 : i64, tpu.core_type = #tpu.core_type<tc>} {
    %c0 = arith.constant 0 : index
    %c0_0 = arith.constant 0 : index
    %0 = vector.load %arg2[%c0, %c0_0] : memref<21x8xbf16, #tpu.memory_space<vmem>>, vector<21x8xbf16>
    %c0_1 = arith.constant 0 : index
    %c0_2 = arith.constant 0 : index
    %1 = vector.load %arg0[%c0_1, %c0_2] : memref<8x512xbf16, #tpu.memory_space<vmem>>, vector<8x512xbf16>
    %cst = arith.constant dense<0.000000e+00> : vector<21x512xf32>
    %2 = tpu.matmul %0, %1, %cst {dimension_numbers = #tpu.dot_dimension_numbers<[1], [0], [0], [1], [0, 0, 1, 1], [], []>} : vector<21x8xbf16>, vector<8x512xbf16>, vector<21x512xf32> -> vector<21x512xf32>
    %c0_3 = arith.constant 0 : index
    %c0_4 = arith.constant 0 : index
    %3 = vector.load %arg3[%c0_3, %c0_4] : memref<21x8xbf16, #tpu.memory_space<vmem>>, vector<21x8xbf16>
    %c0_5 = arith.constant 0 : index
    %c0_6 = arith.constant 0 : index
    %4 = vector.load %arg1[%c0_5, %c0_6] : memref<8x512xbf16, #tpu.memory_space<vmem>>, vector<8x512xbf16>
    %cst_7 = arith.constant dense<0.000000e+00> : vector<21x512xf32>
    %5 = tpu.matmul %3, %4, %cst_7 {dimension_numbers = #tpu.dot_dimension_numbers<[1], [0], [0], [1], [0, 0, 1, 1], [], []>} : vector<21x8xbf16>, vector<8x512xbf16>, vector<21x512xf32> -> vector<21x512xf32>
    %6 = arith.addf %2, %5 : vector<21x512xf32>
    %c0_8 = arith.constant 0 : index
    %c0_9 = arith.constant 0 : index
    %7 = vector.load %arg4[%c0_8, %c0_9] : memref<21x1xf32, #tpu.memory_space<vmem>>, vector<21x1xf32>
    %8 = vector.broadcast %7 : vector<21x1xf32> to vector<21x512xf32>
    %9 = arith.addf %6, %8 : vector<21x512xf32>
    %10 = vector.extract_strided_slice %9 {offsets = [0, 0], sizes = [6, 512], strides = [1, 1]} : vector<21x512xf32> to vector<6x512xf32>
    %11 = arith.negf %10 : vector<6x512xf32>
    %12 = math.exp %11 : vector<6x512xf32>
    %cst_10 = arith.constant 1.000000e+00 : f32
    %13 = vector.broadcast %cst_10 : f32 to vector<6x512xf32>
    %14 = arith.addf %13, %12 : vector<6x512xf32>
    %15 = arith.divf %13, %14 : vector<6x512xf32>
    %c0_11 = arith.constant 0 : index
    %c0_12 = arith.constant 0 : index
    %16 = vector.load %arg5[%c0_11, %c0_12] : memref<6x512xf32, #tpu.memory_space<vmem>>, vector<6x512xf32>
    %17 = arith.addf %15, %16 : vector<6x512xf32>
    %cst_13 = arith.constant 1.000000e+00 : f32
    %18 = vector.broadcast %cst_13 : f32 to vector<6x512xf32>
    %19 = arith.mulf %17, %18 : vector<6x512xf32>
    %c0_14 = arith.constant 0 : index
    %c0_15 = arith.constant 0 : index
    %20 = vector.load %arg7[%c0_14, %c0_15] : memref<21x512xf32, #tpu.memory_space<vmem>>, vector<6x512xf32>
    tpu.vector_store %arg7[%c0_14, %c0_15], %19 {strides = array<i32>} : memref<21x512xf32, #tpu.memory_space<vmem>>, vector<6x512xf32>,
    %21 = vector.extract_strided_slice %9 {offsets = [6, 0], sizes = [6, 512], strides = [1, 1]} : vector<21x512xf32> to vector<6x512xf32>
    %22 = math.exp %21 : vector<6x512xf32>
    %c0_16 = arith.constant 0 : index
    %c0_17 = arith.constant 0 : index
    %23 = vector.load %arg6[%c0_16, %c0_17] : memref<6x1xf32, #tpu.memory_space<vmem>>, vector<6x1xf32>
    %24 = vector.broadcast %23 : vector<6x1xf32> to vector<6x512xf32>
    %25 = arith.mulf %22, %24 : vector<6x512xf32>
    %c6 = arith.constant 6 : index
    %c0_18 = arith.constant 0 : index
    %26 = vector.load %arg7[%c6, %c0_18] : memref<21x512xf32, #tpu.memory_space<vmem>>, vector<6x512xf32>
    tpu.vector_store %arg7[%c6, %c0_18], %25 {strides = array<i32>} : memref<21x512xf32, #tpu.memory_space<vmem>>, vector<6x512xf32>,
    %27 = vector.extract_strided_slice %9 {offsets = [12, 0], sizes = [9, 512], strides = [1, 1]} : vector<21x512xf32> to vector<9x512xf32>
    %28 = arith.negf %27 : vector<9x512xf32>
    %29 = math.exp %28 : vector<9x512xf32>
    %cst_19 = arith.constant 1.000000e+00 : f32
    %30 = vector.broadcast %cst_19 : f32 to vector<9x512xf32>
    %31 = arith.addf %30, %29 : vector<9x512xf32>
    %32 = arith.divf %30, %31 : vector<9x512xf32>
    %c12 = arith.constant 12 : index
    %c0_20 = arith.constant 0 : index
    %33 = vector.load %arg7[%c12, %c0_20] : memref<21x512xf32, #tpu.memory_space<vmem>>, vector<9x512xf32>
    tpu.vector_store %arg7[%c12, %c0_20], %32 {strides = array<i32>} : memref<21x512xf32, #tpu.memory_space<vmem>>, vector<9x512xf32>,
    return
  }
}

module attributes {stable_mosaic.version = 11 : i64} {
  func.func @_yolo_head_kernel(%arg0: memref<16x128xbf16, #tpu.memory_space<vmem>>, %arg1: memref<21x16xbf16, #tpu.memory_space<vmem>>, %arg2: memref<21x1xf32, #tpu.memory_space<vmem>>, %arg3: memref<6x128xf32, #tpu.memory_space<vmem>>, %arg4: memref<6x1xf32, #tpu.memory_space<vmem>>, %arg5: memref<21x128xf32, #tpu.memory_space<vmem>>) attributes {dimension_semantics = [], scalar_prefetch = 0 : i64, scratch_operands = 0 : i64, tpu.core_type = #tpu.core_type<tc>} {
    %c0 = arith.constant 0 : index
    %c0_0 = arith.constant 0 : index
    %0 = vector.load %arg1[%c0, %c0_0] : memref<21x16xbf16, #tpu.memory_space<vmem>>, vector<21x16xbf16>
    %c0_1 = arith.constant 0 : index
    %c0_2 = arith.constant 0 : index
    %1 = vector.load %arg0[%c0_1, %c0_2] : memref<16x128xbf16, #tpu.memory_space<vmem>>, vector<16x128xbf16>
    %cst = arith.constant dense<0.000000e+00> : vector<21x128xf32>
    %2 = tpu.matmul %0, %1, %cst {dimension_numbers = #tpu.dot_dimension_numbers<[1], [0], [0], [1], [0, 0, 1, 1], [], []>} : vector<21x16xbf16>, vector<16x128xbf16>, vector<21x128xf32> -> vector<21x128xf32>
    %c0_3 = arith.constant 0 : index
    %c0_4 = arith.constant 0 : index
    %3 = vector.load %arg2[%c0_3, %c0_4] : memref<21x1xf32, #tpu.memory_space<vmem>>, vector<21x1xf32>
    %4 = vector.broadcast %3 : vector<21x1xf32> to vector<21x128xf32>
    %5 = arith.addf %2, %4 : vector<21x128xf32>
    %6 = vector.extract_strided_slice %5 {offsets = [0, 0], sizes = [6, 128], strides = [1, 1]} : vector<21x128xf32> to vector<6x128xf32>
    %7 = arith.negf %6 : vector<6x128xf32>
    %8 = math.exp %7 : vector<6x128xf32>
    %cst_5 = arith.constant 1.000000e+00 : f32
    %9 = vector.broadcast %cst_5 : f32 to vector<6x128xf32>
    %10 = arith.addf %9, %8 : vector<6x128xf32>
    %11 = arith.divf %9, %10 : vector<6x128xf32>
    %c0_6 = arith.constant 0 : index
    %c0_7 = arith.constant 0 : index
    %12 = vector.load %arg3[%c0_6, %c0_7] : memref<6x128xf32, #tpu.memory_space<vmem>>, vector<6x128xf32>
    %13 = arith.addf %11, %12 : vector<6x128xf32>
    %cst_8 = arith.constant 2.000000e+00 : f32
    %14 = vector.broadcast %cst_8 : f32 to vector<6x128xf32>
    %15 = arith.mulf %13, %14 : vector<6x128xf32>
    %c0_9 = arith.constant 0 : index
    %c0_10 = arith.constant 0 : index
    %16 = vector.load %arg5[%c0_9, %c0_10] : memref<21x128xf32, #tpu.memory_space<vmem>>, vector<6x128xf32>
    tpu.vector_store %arg5[%c0_9, %c0_10], %15 {strides = array<i32>} : memref<21x128xf32, #tpu.memory_space<vmem>>, vector<6x128xf32>,
    %17 = vector.extract_strided_slice %5 {offsets = [6, 0], sizes = [6, 128], strides = [1, 1]} : vector<21x128xf32> to vector<6x128xf32>
    %18 = math.exp %17 : vector<6x128xf32>
    %c0_11 = arith.constant 0 : index
    %c0_12 = arith.constant 0 : index
    %19 = vector.load %arg4[%c0_11, %c0_12] : memref<6x1xf32, #tpu.memory_space<vmem>>, vector<6x1xf32>
    %20 = vector.broadcast %19 : vector<6x1xf32> to vector<6x128xf32>
    %21 = arith.mulf %18, %20 : vector<6x128xf32>
    %c6 = arith.constant 6 : index
    %c0_13 = arith.constant 0 : index
    %22 = vector.load %arg5[%c6, %c0_13] : memref<21x128xf32, #tpu.memory_space<vmem>>, vector<6x128xf32>
    tpu.vector_store %arg5[%c6, %c0_13], %21 {strides = array<i32>} : memref<21x128xf32, #tpu.memory_space<vmem>>, vector<6x128xf32>,
    %23 = vector.extract_strided_slice %5 {offsets = [12, 0], sizes = [9, 128], strides = [1, 1]} : vector<21x128xf32> to vector<9x128xf32>
    %24 = arith.negf %23 : vector<9x128xf32>
    %25 = math.exp %24 : vector<9x128xf32>
    %cst_14 = arith.constant 1.000000e+00 : f32
    %26 = vector.broadcast %cst_14 : f32 to vector<9x128xf32>
    %27 = arith.addf %26, %25 : vector<9x128xf32>
    %28 = arith.divf %26, %27 : vector<9x128xf32>
    %c12 = arith.constant 12 : index
    %c0_15 = arith.constant 0 : index
    %29 = vector.load %arg5[%c12, %c0_15] : memref<21x128xf32, #tpu.memory_space<vmem>>, vector<9x128xf32>
    tpu.vector_store %arg5[%c12, %c0_15], %28 {strides = array<i32>} : memref<21x128xf32, #tpu.memory_space<vmem>>, vector<9x128xf32>,
    return
  }
}

</mosaic_0001>

<llo_original>
// kernel: _lambda_.9
$region0: #{_lambda_.9}
  #allocation0 [shape = 'u32[]', space=smem, size = 0x4, offset = 0x4, fixed_abs, tag = 'smem constant byte address 0x4 - core index']
  #allocation1 [shape = 'u32[144,128]{1,0:T(1,128)}', space=vmem, size = 0x12000, scoped, tag = 'internal scratch']
  %s0 = inlined_call_operand.vmem [shape: bf16[27,512], index: 0, kind: input, shape index: {}]
  %s1 = inlined_call_operand.vmem [shape: bf16[8,27], index: 1, kind: input, shape index: {}]
  %s2 = inlined_call_operand.vmem [shape: f32[8,1], index: 2, kind: input, shape index: {}]
  %s3 = inlined_call_operand.vmem [shape: f32[8,1], index: 3, kind: input, shape index: {}]
  %s4 = inlined_call_operand.vmem [shape: f32[8,1], index: 4, kind: input, shape index: {}]
  %s5 = inlined_call_operand.vmem [shape: f32[8,512], index: 5, kind: output, shape index: {}]
  %s6 = sld [smem:[#allocation0]]
  $region30: #{_lambda_.9} parent=0
    _
  %s8 = ssub.s32 1, %s6
  %s9 = scalar_select 0, %s8, %s6
  // Predicated region
  $region2: #{_lambda_.9} parent=0 // pred_check
    _
  $region3: #{_lambda_.9} parent=0 // pred_check_branch
    %11 = sbr.rel (0) target = $region5
  $region4: #{_lambda_.9} parent=0 // pred_region
    _
  $region5: #{_lambda_.9} parent=0 // pred_fallthru
    _
  // Predicated region
  $region6: #{_lambda_.9} parent=0 // pred_check
    _
  $region7: #{_lambda_.9} parent=0 // pred_check_branch
    %13 = sbr.rel (0) target = $region9
  $region8: #{_lambda_.9} parent=0 // pred_region
    _
  $region9: #{_lambda_.9} parent=0 // pred_fallthru
    _
  // Predicated region
  $region10: #{_lambda_.9} parent=0 // pred_check
    _
  $region11: #{_lambda_.9} parent=0 // pred_check_branch
    %15 = sbr.rel (0) target = $region13
  $region12: #{_lambda_.9} parent=0 // pred_region
    _
  $region13: #{_lambda_.9} parent=0 // pred_fallthru
    _
  // Predicated region
  $region14: #{_lambda_.9} parent=0 // pred_check
    _
  $region15: #{_lambda_.9} parent=0 // pred_check_branch
    %17 = sbr.rel (0) target = $region17
  $region16: #{_lambda_.9} parent=0 // pred_region
    _
  $region17: #{_lambda_.9} parent=0 // pred_fallthru
    _
  // Predicated region
  $region18: #{_lambda_.9} parent=0 // pred_check
    _
  $region19: #{_lambda_.9} parent=0 // pred_check_branch
    %19 = sbr.rel (0) target = $region21
  $region20: #{_lambda_.9} parent=0 // pred_region
    _
  $region21: #{_lambda_.9} parent=0 // pred_fallthru
    _
  %v21 = vld [vmem:[%s1] sm:$0xf]
  %v22 = vld [vmem:[%s0] sm:$0xff]
  %v23 = vld [vmem:[%s0 + $0x8] sm:$0xff]
  %v24 = vld [vmem:[%s0 + $0x10] sm:$0xff]
  %v25 = vld [vmem:[%s0 + $0x18] sm:$0xff]
  %v26 = vld [vmem:[%s0 + $0x20] sm:$0xff]
  %v27 = vld [vmem:[%s0 + $0x28] sm:$0xff]
  %v28 = vld [vmem:[%s0 + $0x30] sm:$0x33]
  %v29 = vld [vmem:[%s0 + $0x38] sm:$0x33]
  %v38 = vunpack.c.l.b16 %v22
  %v39 = vunpack.c.h.b16 %v22
  %v40 = vunpack.c.l.b16 %v23
  %v41 = vunpack.c.h.b16 %v23
  %v42 = vunpack.c.l.b16 %v24
  %v43 = vunpack.c.h.b16 %v24
  %v44 = vunpack.c.l.b16 %v25
  %v45 = vunpack.c.h.b16 %v25
  %v46 = vunpack.c.l.b16 %v26
  %v47 = vunpack.c.h.b16 %v26
  %v48 = vunpack.c.l.b16 %v27
  %v49 = vunpack.c.h.b16 %v27
  %v50 = vunpack.c.l.b16 %v28
  %v51 = vunpack.c.h.b16 %v28
  %v52 = vunpack.c.l.b16 %v29
  %v53 = vunpack.c.h.b16 %v29
  %v54 = vpack.c.b16 %v42, %v38
  %v55 = vpack.c.b16 %v43, %v39
  %v56 = vpack.c.b16 %v44, %v40
  %v57 = vpack.c.b16 %v45, %v41
  %v58 = vpack.c.b16 %v50, %v46
  %v59 = vpack.c.b16 %v51, %v47
  %v60 = vpack.c.b16 %v52, %v48
  %v61 = vpack.c.b16 %v53, %v49
  %vm66 = vcmask 220160
  %v68 = vsel %vm66, %v21, 0
  %vm70 = vcmask 1044480
  %vm71 = vcmask 1045504
  %v72 = vsel %vm70, 4294967295, 65535
  %v73 = vsel %vm71, %v72, 0
  %v75 = vand.u32 %v58, %v73
  %v78 = vand.u32 %v59, %v73
  %v81 = vand.u32 %v60, %v73
  %v84 = vand.u32 %v61, %v73
  %86 = vmatprep.subr.bf16.mxu0 %v55
  %87 = vmatpush1.bf16.msra.mxu0 %v54
  %88 = vmatprep.subr.bf16.mxu0 %v78
  %89 = vmatpush1.bf16.msra.mxu0 %v75
  %90 = vmatprep.subr.bf16.mxu0 0
  %91 = vmatpush1.bf16.msra.mxu0 0
  %92 = vmatprep.subr.bf16.mxu0 0
  %93 = vmatpush1.bf16.msra.mxu0 0
  %94 = vmatprep.subr.bf16.mxu0 0
  %95 = vmatpush1.bf16.msra.mxu0 0
  %96 = vmatprep.subr.bf16.mxu0 0
  %97 = vmatpush1.bf16.msra.mxu0 0
  %98 = vmatprep.subr.bf16.mxu0 0
  %99 = vmatpush1.bf16.msra.mxu0 0
  %100 = vmatprep.subr.bf16.mxu0 0
  %101 = vmatpush1.bf16.msra.mxu0 0
  %102 = vmatprep.subr.bf16.mxu0 0
  %103 = vmatpush1.bf16.msra.mxu0 0
  %104 = vmatprep.subr.bf16.mxu0 0
  %105 = vmatpush1.bf16.msra.mxu0 0
  %106 = vmatprep.subr.bf16.mxu0 0
  %107 = vmatpush1.bf16.msra.mxu0 0
  %108 = vmatprep.subr.bf16.mxu0 0
  %109 = vmatpush1.bf16.msra.mxu0 0
  %110 = vmatprep.subr.bf16.mxu0 0
  %111 = vmatpush1.bf16.msra.mxu0 0
  %112 = vmatprep.subr.bf16.mxu0 0
  %113 = vmatpush1.bf16.msra.mxu0 0
  %114 = vmatprep.subr.bf16.mxu0 0
  %115 = vmatpush1.bf16.msra.mxu0 0
  %116 = vmatprep.subr.bf16.mxu0 0
  %117 = vmatpush1.bf16.msra.mxu0 0
  %118 = vmatprep.mubr.bf16.mxu0 0
  %119 = vmatmul.mubr.bf16.gmra.mrb[0].mxu0 %v68
  %v120 = vpop.f32.mrb[0].mxu0
  %v121 = vadd.f32 0.0, %v120
  %v122 = vpop.f32.mrb[0].mxu0
  %v123 = vadd.f32 0.0, %v122
  %v124 = vpop.f32.mrb[0].mxu0
  %v125 = vpop.f32.mrb[0].mxu0
  %126 = vdwg.mxu0
  %127 = vmatprep.subr.bf16.mxu0 %v57
  %128 = vmatpush1.bf16.msra.mxu0 %v56
  %129 = vmatprep.subr.bf16.mxu0 %v84
  %130 = vmatpush1.bf16.msra.mxu0 %v81
  %131 = vmatprep.subr.bf16.mxu0 0
  %132 = vmatpush1.bf16.msra.mxu0 0
  %133 = vmatprep.subr.bf16.mxu0 0
  %134 = vmatpush1.bf16.msra.mxu0 0
  %135 = vmatprep.subr.bf16.mxu0 0
  %136 = vmatpush1.bf16.msra.mxu0 0
  %137 = vmatprep.subr.bf16.mxu0 0
  %138 = vmatpush1.bf16.msra.mxu0 0
  %139 = vmatprep.subr.bf16.mxu0 0
  %140 = vmatpush1.bf16.msra.mxu0 0
  %141 = vmatprep.subr.bf16.mxu0 0
  %142 = vmatpush1.bf16.msra.mxu0 0
  %143 = vmatprep.subr.bf16.mxu0 0
  %144 = vmatpush1.bf16.msra.mxu0 0
  %145 = vmatprep.subr.bf16.mxu0 0
  %146 = vmatpush1.bf16.msra.mxu0 0
  %147 = vmatprep.subr.bf16.mxu0 0
  %148 = vmatpush1.bf16.msra.mxu0 0
  %149 = vmatprep.subr.bf16.mxu0 0
  %150 = vmatpush1.bf16.msra.mxu0 0
  %151 = vmatprep.subr.bf16.mxu0 0
  %152 = vmatpush1.bf16.msra.mxu0 0
  %153 = vmatprep.subr.bf16.mxu0 0
  %154 = vmatpush1.bf16.msra.mxu0 0
  %155 = vmatprep.subr.bf16.mxu0 0
  %156 = vmatpush1.bf16.msra.mxu0 0
  %157 = vmatprep.subr.bf16.mxu0 0
  %158 = vmatpush1.bf16.msra.mxu0 0
  %159 = vmatprep.mubr.bf16.mxu0 0
  %160 = vmatmul.mubr.bf16.gmra.mrb[0].mxu0 %v68
  %v161 = vpop.f32.mrb[0].mxu0
  %v162 = vadd.f32 0.0, %v161
  %v163 = vpop.f32.mrb[0].mxu0
  %v164 = vadd.f32 0.0, %v163
  %v165 = vpop.f32.mrb[0].mxu0
  %v166 = vpop.f32.mrb[0].mxu0
  %167 = vdwg.mxu0
  %v168 = vadd.f32 %v121, %v123
  %v169 = vadd.f32 %v168, %v162
  %v170 = vadd.f32 %v169, %v164
  %171 = vadd.xlane.f32.xlu0 %v170
  %v172 = vpop.xlane.xlu0 %171
  %v173 = vrcp.pop 512.0
  %v174 = vmul.f32 %v172, %v173
  %v175 = vsub.f32 %v121, %v174
  %v176 = vsub.f32 %v123, %v174
  %v177 = vsub.f32 %v162, %v174
  %v178 = vsub.f32 %v164, %v174
  %v179 = vmul.f32 %v175, %v175
  %v180 = vmul.f32 %v176, %v176
  %v181 = vmul.f32 %v177, %v177
  %v182 = vmul.f32 %v178, %v178
  %v183 = vadd.f32 %v179, %v180
  %v184 = vadd.f32 %v183, %v181
  %v185 = vadd.f32 %v184, %v182
  %186 = vadd.xlane.f32.xlu0 %v185
  %v187 = vpop.xlane.xlu0 %186
  %v188 = vmul.f32 %v187, %v173
  %v189 = vadd.f32 %v188, 1e-05
  %v190 = vrsqrt.pop %v189
  %v191 = vmul.f32 %v175, %v190
  %v192 = vmul.f32 %v176, %v190
  %v193 = vmul.f32 %v177, %v190
  %v194 = vmul.f32 %v178, %v190
  %v195 = vld [vmem:[%s3] sm:$0xff]
  %197 = vset.pattern.permute.xlu0 0
  %198 = vperm.xlu0 %197, %v195
  %v199 = vpop.permute.xlu0 %198
  %v201 = vmul.f32 %v191, %v199
  %v202 = vmul.f32 %v192, %v199
  %v203 = vmul.f32 %v193, %v199
  %v204 = vmul.f32 %v194, %v199
  %v205 = vld [vmem:[%s4] sm:$0xff]
  %207 = vset.pattern.permute.xlu0 0
  %208 = vperm.xlu0 %207, %v205
  %v209 = vpop.permute.xlu0 %208
  %v211 = vadd.f32 %v201, %v209
  %v212 = vadd.f32 %v202, %v209
  %v213 = vadd.f32 %v203, %v209
  %v214 = vadd.f32 %v204, %v209
  %vm215 = vcmp.ge.f32.partialorder %v211, 0.0
  %vm216 = vcmp.ge.f32.partialorder %v212, 0.0
  %vm217 = vcmp.ge.f32.partialorder %v213, 0.0
  %vm218 = vcmp.ge.f32.partialorder %v214, 0.0
  %v219 = vmul.f32 %v211, 0.1
  %v220 = vmul.f32 %v212, 0.1
  %v221 = vmul.f32 %v213, 0.1
  %v222 = vmul.f32 %v214, 0.1
  %v223 = vsel %vm215, %v211, %v219
  %v224 = vsel %vm216, %v212, %v220
  %v225 = vsel %vm217, %v213, %v221
  %v226 = vsel %vm218, %v214, %v222
  %227 = vst [vmem:[%s5] sm:$0xff] %v223
  %228 = vst [vmem:[%s5 + $0x8] sm:$0xff] %v224
  %229 = vst [vmem:[%s5 + $0x10] sm:$0xff] %v225
  %230 = vst [vmem:[%s5 + $0x18] sm:$0xff] %v226
  // Predicated region
  $region22: #{_lambda_.9} parent=0 // pred_check
    _
  $region23: #{_lambda_.9} parent=0 // pred_check_branch
    %232 = sbr.rel (0) target = $region25
  $region24: #{_lambda_.9} parent=0 // pred_region
    _
  $region25: #{_lambda_.9} parent=0 // pred_fallthru
    _
  // Predicated region
  $region26: #{_lambda_.9} parent=0 // pred_check
    _
  $region27: #{_lambda_.9} parent=0 // pred_check_branch
    %234 = sbr.rel (0) target = $region29
  $region28: #{_lambda_.9} parent=0 // pred_region
    _
  $region29: #{_lambda_.9} parent=0 // pred_fallthru
    _

// kernel: _lambda_.10
$region0: #{_lambda_.10}
  #allocation0 [shape = 'u32[]', space=smem, size = 0x4, offset = 0x4, fixed_abs, tag = 'smem constant byte address 0x4 - core index']
  #allocation1 [shape = 'u32[144,128]{1,0:T(1,128)}', space=vmem, size = 0x12000, scoped, tag = 'internal scratch']
  %s0 = inlined_call_operand.vmem [shape: bf16[72,512], index: 0, kind: input, shape index: {}]
  %s1 = inlined_call_operand.vmem [shape: bf16[8,72], index: 1, kind: input, shape index: {}]
  %s2 = inlined_call_operand.vmem [shape: f32[8,1], index: 2, kind: input, shape index: {}]
  %s3 = inlined_call_operand.vmem [shape: f32[8,1], index: 3, kind: input, shape index: {}]
  %s4 = inlined_call_operand.vmem [shape: f32[8,1], index: 4, kind: input, shape index: {}]
  %s5 = inlined_call_operand.vmem [shape: f32[8,512], index: 5, kind: output, shape index: {}]
  %s6 = sld [smem:[#allocation0]]
  $region30: #{_lambda_.10} parent=0
    _
  %s8 = ssub.s32 1, %s6
  %s9 = scalar_select 0, %s8, %s6
  // Predicated region
  $region2: #{_lambda_.10} parent=0 // pred_check
    _
  $region3: #{_lambda_.10} parent=0 // pred_check_branch
    %11 = sbr.rel (0) target = $region5
  $region4: #{_lambda_.10} parent=0 // pred_region
    _
  $region5: #{_lambda_.10} parent=0 // pred_fallthru
    _
  // Predicated region
  $region6: #{_lambda_.10} parent=0 // pred_check
    _
  $region7: #{_lambda_.10} parent=0 // pred_check_branch
    %13 = sbr.rel (0) target = $region9
  $region8: #{_lambda_.10} parent=0 // pred_region
    _
  $region9: #{_lambda_.10} parent=0 // pred_fallthru
    _
  // Predicated region
  $region10: #{_lambda_.10} parent=0 // pred_check
    _
  $region11: #{_lambda_.10} parent=0 // pred_check_branch
    %15 = sbr.rel (0) target = $region13
  $region12: #{_lambda_.10} parent=0 // pred_region
    _
  $region13: #{_lambda_.10} parent=0 // pred_fallthru
    _
  // Predicated region
  $region14: #{_lambda_.10} parent=0 // pred_check
    _
  $region15: #{_lambda_.10} parent=0 // pred_check_branch
    %17 = sbr.rel (0) target = $region17
  $region16: #{_lambda_.10} parent=0 // pred_region
    _
  $region17: #{_lambda_.10} parent=0 // pred_fallthru
    _
  // Predicated region
  $region18: #{_lambda_.10} parent=0 // pred_check
    _
  $region19: #{_lambda_.10} parent=0 // pred_check_branch
    %19 = sbr.rel (0) target = $region21
  $region20: #{_lambda_.10} parent=0 // pred_region
    _
  $region21: #{_lambda_.10} parent=0 // pred_fallthru
    _
  %v21 = vld [vmem:[%s1] sm:$0xf]
  %v22 = vld [vmem:[%s0] sm:$0xff]
  %v23 = vld [vmem:[%s0 + $0x8] sm:$0xff]
  %v24 = vld [vmem:[%s0 + $0x10] sm:$0xff]
  %v25 = vld [vmem:[%s0 + $0x18] sm:$0xff]
  %v26 = vld [vmem:[%s0 + $0x20] sm:$0xff]
  %v27 = vld [vmem:[%s0 + $0x28] sm:$0xff]
  %v28 = vld [vmem:[%s0 + $0x30] sm:$0xff]
  %v29 = vld [vmem:[%s0 + $0x38] sm:$0xff]
  %v30 = vld [vmem:[%s0 + $0x40] sm:$0xff]
  %v31 = vld [vmem:[%s0 + $0x48] sm:$0xff]
  %v32 = vld [vmem:[%s0 + $0x50] sm:$0xff]
  %v33 = vld [vmem:[%s0 + $0x58] sm:$0xff]
  %v34 = vld [vmem:[%s0 + $0x60] sm:$0xff]
  %v35 = vld [vmem:[%s0 + $0x68] sm:$0xff]
  %v36 = vld [vmem:[%s0 + $0x70] sm:$0xff]
  %v37 = vld [vmem:[%s0 + $0x78] sm:$0xff]
  %v38 = vld [vmem:[%s0 + $0x80] sm:$0xff]
  %v39 = vld [vmem:[%s0 + $0x88] sm:$0xff]
  %v58 = vunpack.c.l.b16 %v22
  %v59 = vunpack.c.h.b16 %v22
  %v60 = vunpack.c.l.b16 %v23
  %v61 = vunpack.c.h.b16 %v23
  %v62 = vunpack.c.l.b16 %v24
  %v63 = vunpack.c.h.b16 %v24
  %v64 = vunpack.c.l.b16 %v25
  %v65 = vunpack.c.h.b16 %v25
  %v66 = vunpack.c.l.b16 %v26
  %v67 = vunpack.c.h.b16 %v26
  %v68 = vunpack.c.l.b16 %v27
  %v69 = vunpack.c.h.b16 %v27
  %v70 = vunpack.c.l.b16 %v28
  %v71 = vunpack.c.h.b16 %v28
  %v72 = vunpack.c.l.b16 %v29
  %v73 = vunpack.c.h.b16 %v29
  %v74 = vunpack.c.l.b16 %v30
  %v75 = vunpack.c.h.b16 %v30
  %v76 = vunpack.c.l.b16 %v31
  %v77 = vunpack.c.h.b16 %v31
  %v78 = vunpack.c.l.b16 %v32
  %v79 = vunpack.c.h.b16 %v32
  %v80 = vunpack.c.l.b16 %v33
  %v81 = vunpack.c.h.b16 %v33
  %v82 = vunpack.c.l.b16 %v34
  %v83 = vunpack.c.h.b16 %v34
  %v84 = vunpack.c.l.b16 %v35
  %v85 = vunpack.c.h.b16 %v35
  %v86 = vunpack.c.l.b16 %v36
  %v87 = vunpack.c.h.b16 %v36
  %v88 = vunpack.c.l.b16 %v37
  %v89 = vunpack.c.h.b16 %v37
  %v90 = vunpack.c.l.b16 %v38
  %v91 = vunpack.c.h.b16 %v38
  %v92 = vunpack.c.l.b16 %v39
  %v93 = vunpack.c.h.b16 %v39
  %v94 = vpack.c.b16 %v62, %v58
  %v95 = vpack.c.b16 %v63, %v59
  %v96 = vpack.c.b16 %v64, %v60
  %v97 = vpack.c.b16 %v65, %v61
  %v98 = vpack.c.b16 %v70, %v66
  %v99 = vpack.c.b16 %v71, %v67
  %v100 = vpack.c.b16 %v72, %v68
  %v101 = vpack.c.b16 %v73, %v69
  %v102 = vpack.c.b16 %v78, %v74
  %v103 = vpack.c.b16 %v79, %v75
  %v104 = vpack.c.b16 %v80, %v76
  %v105 = vpack.c.b16 %v81, %v77
  %v106 = vpack.c.b16 %v86, %v82
  %v107 = vpack.c.b16 %v87, %v83
  %v108 = vpack.c.b16 %v88, %v84
  %v109 = vpack.c.b16 %v89, %v85
  %v110 = vpack.c.b16 %v90, %v90
  %v111 = vpack.c.b16 %v91, %v91
  %v112 = vpack.c.b16 %v92, %v92
  %v113 = vpack.c.b16 %v93, %v93
  %vm130 = vcmask 588800
  %v132 = vsel %vm130, %v21, 0
  %vm134 = vcmask 1043456
  %v136 = vsel %vm134, %v110, 0
  %v139 = vsel %vm134, %v111, 0
  %v142 = vsel %vm134, %v112, 0
  %v145 = vsel %vm134, %v113, 0
  %147 = vmatprep.subr.bf16.mxu0 %v95
  %148 = vmatpush1.bf16.msra.mxu0 %v94
  %149 = vmatprep.subr.bf16.mxu0 %v99
  %150 = vmatpush1.bf16.msra.mxu0 %v98
  %151 = vmatprep.subr.bf16.mxu0 %v103
  %152 = vmatpush1.bf16.msra.mxu0 %v102
  %153 = vmatprep.subr.bf16.mxu0 %v107
  %154 = vmatpush1.bf16.msra.mxu0 %v106
  %155 = vmatprep.subr.bf16.mxu0 %v139
  %156 = vmatpush1.bf16.msra.mxu0 %v136
  %157 = vmatprep.subr.bf16.mxu0 0
  %158 = vmatpush1.bf16.msra.mxu0 0
  %159 = vmatprep.subr.bf16.mxu0 0
  %160 = vmatpush1.bf16.msra.mxu0 0
  %161 = vmatprep.subr.bf16.mxu0 0
  %162 = vmatpush1.bf16.msra.mxu0 0
  %163 = vmatprep.subr.bf16.mxu0 0
  %164 = vmatpush1.bf16.msra.mxu0 0
  %165 = vmatprep.subr.bf16.mxu0 0
  %166 = vmatpush1.bf16.msra.mxu0 0
  %167 = vmatprep.subr.bf16.mxu0 0
  %168 = vmatpush1.bf16.msra.mxu0 0
  %169 = vmatprep.subr.bf16.mxu0 0
  %170 = vmatpush1.bf16.msra.mxu0 0
  %171 = vmatprep.subr.bf16.mxu0 0
  %172 = vmatpush1.bf16.msra.mxu0 0
  %173 = vmatprep.subr.bf16.mxu0 0
  %174 = vmatpush1.bf16.msra.mxu0 0
  %175 = vmatprep.subr.bf16.mxu0 0
  %176 = vmatpush1.bf16.msra.mxu0 0
  %177 = vmatprep.subr.bf16.mxu0 0
  %178 = vmatpush1.bf16.msra.mxu0 0
  %179 = vmatprep.mubr.bf16.mxu0 0
  %180 = vmatmul.mubr.bf16.gmra.mrb[0].mxu0 %v132
  %v181 = vpop.f32.mrb[0].mxu0
  %v182 = vadd.f32 0.0, %v181
  %v183 = vpop.f32.mrb[0].mxu0
  %v184 = vadd.f32 0.0, %v183
  %v185 = vpop.f32.mrb[0].mxu0
  %v186 = vpop.f32.mrb[0].mxu0
  %187 = vdwg.mxu0
  %188 = vmatprep.subr.bf16.mxu0 %v97
  %189 = vmatpush1.bf16.msra.mxu0 %v96
  %190 = vmatprep.subr.bf16.mxu0 %v101
  %191 = vmatpush1.bf16.msra.mxu0 %v100
  %192 = vmatprep.subr.bf16.mxu0 %v105
  %193 = vmatpush1.bf16.msra.mxu0 %v104
  %194 = vmatprep.subr.bf16.mxu0 %v109
  %195 = vmatpush1.bf16.msra.mxu0 %v108
  %196 = vmatprep.subr.bf16.mxu0 %v145
  %197 = vmatpush1.bf16.msra.mxu0 %v142
  %198 = vmatprep.subr.bf16.mxu0 0
  %199 = vmatpush1.bf16.msra.mxu0 0
  %200 = vmatprep.subr.bf16.mxu0 0
  %201 = vmatpush1.bf16.msra.mxu0 0
  %202 = vmatprep.subr.bf16.mxu0 0
  %203 = vmatpush1.bf16.msra.mxu0 0
  %204 = vmatprep.subr.bf16.mxu0 0
  %205 = vmatpush1.bf16.msra.mxu0 0
  %206 = vmatprep.subr.bf16.mxu0 0
  %207 = vmatpush1.bf16.msra.mxu0 0
  %208 = vmatprep.subr.bf16.mxu0 0
  %209 = vmatpush1.bf16.msra.mxu0 0
  %210 = vmatprep.subr.bf16.mxu0 0
  %211 = vmatpush1.bf16.msra.mxu0 0
  %212 = vmatprep.subr.bf16.mxu0 0
  %213 = vmatpush1.bf16.msra.mxu0 0
  %214 = vmatprep.subr.bf16.mxu0 0
  %215 = vmatpush1.bf16.msra.mxu0 0
  %216 = vmatprep.subr.bf16.mxu0 0
  %217 = vmatpush1.bf16.msra.mxu0 0
  %218 = vmatprep.subr.bf16.mxu0 0
  %219 = vmatpush1.bf16.msra.mxu0 0
  %220 = vmatprep.mubr.bf16.mxu0 0
  %221 = vmatmul.mubr.bf16.gmra.mrb[0].mxu0 %v132
  %v222 = vpop.f32.mrb[0].mxu0
  %v223 = vadd.f32 0.0, %v222
  %v224 = vpop.f32.mrb[0].mxu0
  %v225 = vadd.f32 0.0, %v224
  %v226 = vpop.f32.mrb[0].mxu0
  %v227 = vpop.f32.mrb[0].mxu0
  %228 = vdwg.mxu0
  %v229 = vadd.f32 %v182, %v184
  %v230 = vadd.f32 %v229, %v223
  %v231 = vadd.f32 %v230, %v225
  %232 = vadd.xlane.f32.xlu0 %v231
  %v233 = vpop.xlane.xlu0 %232
  %v234 = vrcp.pop 512.0
  %v235 = vmul.f32 %v233, %v234
  %v236 = vsub.f32 %v182, %v235
  %v237 = vsub.f32 %v184, %v235
  %v238 = vsub.f32 %v223, %v235
  %v239 = vsub.f32 %v225, %v235
  %v240 = vmul.f32 %v236, %v236
  %v241 = vmul.f32 %v237, %v237
  %v242 = vmul.f32 %v238, %v238
  %v243 = vmul.f32 %v239, %v239
  %v244 = vadd.f32 %v240, %v241
  %v245 = vadd.f32 %v244, %v242
  %v246 = vadd.f32 %v245, %v243
  %247 = vadd.xlane.f32.xlu0 %v246
  %v248 = vpop.xlane.xlu0 %247
  %v249 = vmul.f32 %v248, %v234
  %v250 = vadd.f32 %v249, 1e-05
  %v251 = vrsqrt.pop %v250
  %v252 = vmul.f32 %v236, %v251
  %v253 = vmul.f32 %v237, %v251
  %v254 = vmul.f32 %v238, %v251
  %v255 = vmul.f32 %v239, %v251
  %v256 = vld [vmem:[%s3] sm:$0xff]
  %258 = vset.pattern.permute.xlu0 0
  %259 = vperm.xlu0 %258, %v256
  %v260 = vpop.permute.xlu0 %259
  %v262 = vmul.f32 %v252, %v260
  %v263 = vmul.f32 %v253, %v260
  %v264 = vmul.f32 %v254, %v260
  %v265 = vmul.f32 %v255, %v260
  %v266 = vld [vmem:[%s4] sm:$0xff]
  %268 = vset.pattern.permute.xlu0 0
  %269 = vperm.xlu0 %268, %v266
  %v270 = vpop.permute.xlu0 %269
  %v272 = vadd.f32 %v262, %v270
  %v273 = vadd.f32 %v263, %v270
  %v274 = vadd.f32 %v264, %v270
  %v275 = vadd.f32 %v265, %v270
  %vm276 = vcmp.ge.f32.partialorder %v272, 0.0
  %vm277 = vcmp.ge.f32.partialorder %v273, 0.0
  %vm278 = vcmp.ge.f32.partialorder %v274, 0.0
  %vm279 = vcmp.ge.f32.partialorder %v275, 0.0
  %v280 = vmul.f32 %v272, 0.1
  %v281 = vmul.f32 %v273, 0.1
  %v282 = vmul.f32 %v274, 0.1
  %v283 = vmul.f32 %v275, 0.1
  %v284 = vsel %vm276, %v272, %v280
  %v285 = vsel %vm277, %v273, %v281
  %v286 = vsel %vm278, %v274, %v282
  %v287 = vsel %vm279, %v275, %v283
  %288 = vst [vmem:[%s5] sm:$0xff] %v284
  %289 = vst [vmem:[%s5 + $0x8] sm:$0xff] %v285
  %290 = vst [vmem:[%s5 + $0x10] sm:$0xff] %v286
  %291 = vst [vmem:[%s5 + $0x18] sm:$0xff] %v287
  // Predicated region
  $region22: #{_lambda_.10} parent=0 // pred_check
    _
  $region23: #{_lambda_.10} parent=0 // pred_check_branch
    %293 = sbr.rel (0) target = $region25
  $region24: #{_lambda_.10} parent=0 // pred_region
    _
  $region25: #{_lambda_.10} parent=0 // pred_fallthru
    _
  // Predicated region
  $region26: #{_lambda_.10} parent=0 // pred_check
    _
  $region27: #{_lambda_.10} parent=0 // pred_check_branch
    %295 = sbr.rel (0) target = $region29
  $region28: #{_lambda_.10} parent=0 // pred_region
    _
  $region29: #{_lambda_.10} parent=0 // pred_fallthru
    _

// kernel: _lambda_.12
$region0: #{_lambda_.12}
  #allocation0 [shape = 'u32[]', space=smem, size = 0x4, offset = 0x4, fixed_abs, tag = 'smem constant byte address 0x4 - core index']
  #allocation1 [shape = 'u32[144,128]{1,0:T(1,128)}', space=vmem, size = 0x12000, scoped, tag = 'internal scratch']
  %s0 = inlined_call_operand.vmem [shape: bf16[16,128], index: 0, kind: input, shape index: {}]
  %s1 = inlined_call_operand.vmem [shape: bf16[8,16], index: 1, kind: input, shape index: {}]
  %s2 = inlined_call_operand.vmem [shape: f32[8,1], index: 2, kind: input, shape index: {}]
  %s3 = inlined_call_operand.vmem [shape: f32[8,1], index: 3, kind: input, shape index: {}]
  %s4 = inlined_call_operand.vmem [shape: f32[8,1], index: 4, kind: input, shape index: {}]
  %s5 = inlined_call_operand.vmem [shape: f32[8,128], index: 5, kind: output, shape index: {}]
  %s6 = sld [smem:[#allocation0]]
  $region30: #{_lambda_.12} parent=0
    _
  %s8 = ssub.s32 1, %s6
  %s9 = scalar_select 0, %s8, %s6
  // Predicated region
  $region2: #{_lambda_.12} parent=0 // pred_check
    _
  $region3: #{_lambda_.12} parent=0 // pred_check_branch
    %11 = sbr.rel (0) target = $region5
  $region4: #{_lambda_.12} parent=0 // pred_region
    _
  $region5: #{_lambda_.12} parent=0 // pred_fallthru
    _
  // Predicated region
  $region6: #{_lambda_.12} parent=0 // pred_check
    _
  $region7: #{_lambda_.12} parent=0 // pred_check_branch
    %13 = sbr.rel (0) target = $region9
  $region8: #{_lambda_.12} parent=0 // pred_region
    _
  $region9: #{_lambda_.12} parent=0 // pred_fallthru
    _
  // Predicated region
  $region10: #{_lambda_.12} parent=0 // pred_check
    _
  $region11: #{_lambda_.12} parent=0 // pred_check_branch
    %15 = sbr.rel (0) target = $region13
  $region12: #{_lambda_.12} parent=0 // pred_region
    _
  $region13: #{_lambda_.12} parent=0 // pred_fallthru
    _
  // Predicated region
  $region14: #{_lambda_.12} parent=0 // pred_check
    _
  $region15: #{_lambda_.12} parent=0 // pred_check_branch
    %17 = sbr.rel (0) target = $region17
  $region16: #{_lambda_.12} parent=0 // pred_region
    _
  $region17: #{_lambda_.12} parent=0 // pred_fallthru
    _
  // Predicated region
  $region18: #{_lambda_.12} parent=0 // pred_check
    _
  $region19: #{_lambda_.12} parent=0 // pred_check_branch
    %19 = sbr.rel (0) target = $region21
  $region20: #{_lambda_.12} parent=0 // pred_region
    _
  $region21: #{_lambda_.12} parent=0 // pred_fallthru
    _
  %v21 = vld [vmem:[%s1] sm:$0xf]
  %v22 = vld [vmem:[%s0] sm:$0xf]
  %v23 = vld [vmem:[%s0 + $0x4] sm:$0xf]
  %v26 = vunpack.c.l.b16 %v22
  %v27 = vunpack.c.l.b16 %v23
  %v28 = vpack.c.b16 %v27, %v26
  %vm30 = vcmask 130048
  %v32 = vsel %vm30, %v21, 0
  %34 = vmatprep.subr.bf16.mxu0 0
  %35 = vmatpush1.bf16.msra.mxu0 %v28
  %36 = vmatprep.subr.bf16.mxu0 0
  %37 = vmatpush1.bf16.msra.mxu0 0
  %38 = vmatprep.subr.bf16.mxu0 0
  %39 = vmatpush1.bf16.msra.mxu0 0
  %40 = vmatprep.subr.bf16.mxu0 0
  %41 = vmatpush1.bf16.msra.mxu0 0
  %42 = vmatprep.subr.bf16.mxu0 0
  %43 = vmatpush1.bf16.msra.mxu0 0
  %44 = vmatprep.subr.bf16.mxu0 0
  %45 = vmatpush1.bf16.msra.mxu0 0
  %46 = vmatprep.subr.bf16.mxu0 0
  %47 = vmatpush1.bf16.msra.mxu0 0
  %48 = vmatprep.subr.bf16.mxu0 0
  %49 = vmatpush1.bf16.msra.mxu0 0
  %50 = vmatprep.subr.bf16.mxu0 0
  %51 = vmatpush1.bf16.msra.mxu0 0
  %52 = vmatprep.subr.bf16.mxu0 0
  %53 = vmatpush1.bf16.msra.mxu0 0
  %54 = vmatprep.subr.bf16.mxu0 0
  %55 = vmatpush1.bf16.msra.mxu0 0
  %56 = vmatprep.subr.bf16.mxu0 0
  %57 = vmatpush1.bf16.msra.mxu0 0
  %58 = vmatprep.subr.bf16.mxu0 0
  %59 = vmatpush1.bf16.msra.mxu0 0
  %60 = vmatprep.subr.bf16.mxu0 0
  %61 = vmatpush1.bf16.msra.mxu0 0
  %62 = vmatprep.subr.bf16.mxu0 0
  %63 = vmatpush1.bf16.msra.mxu0 0
  %64 = vmatprep.subr.bf16.mxu0 0
  %65 = vmatpush1.bf16.msra.mxu0 0
  %66 = vmatprep.mubr.bf16.mxu0 0
  %67 = vmatmul.mubr.bf16.gmra.mrb[0].mxu0 %v32
  %v68 = vpop.f32.mrb[0].mxu0
  %v69 = vadd.f32 0.0, %v68
  %v70 = vpop.f32.mrb[0].mxu0
  %v71 = vpop.f32.mrb[0].mxu0
  %v72 = vpop.f32.mrb[0].mxu0
  %73 = vdwg.mxu0
  %74 = vadd.xlane.f32.xlu0 %v69
  %v75 = vpop.xlane.xlu0 %74
  %v76 = vrcp.pop 128.0
  %v77 = vmul.f32 %v75, %v76
  %v78 = vsub.f32 %v69, %v77
  %v79 = vmul.f32 %v78, %v78
  %80 = vadd.xlane.f32.xlu0 %v79
  %v81 = vpop.xlane.xlu0 %80
  %v82 = vmul.f32 %v81, %v76
  %v83 = vadd.f32 %v82, 1e-05
  %v84 = vrsqrt.pop %v83
  %v85 = vmul.f32 %v78, %v84
  %v86 = vld [vmem:[%s3] sm:$0xff]
  %88 = vset.pattern.permute.xlu0 0
  %89 = vperm.xlu0 %88, %v86
  %v90 = vpop.permute.xlu0 %89
  %v92 = vmul.f32 %v85, %v90
  %v93 = vld [vmem:[%s4] sm:$0xff]
  %95 = vset.pattern.permute.xlu0 0
  %96 = vperm.xlu0 %95, %v93
  %v97 = vpop.permute.xlu0 %96
  %v99 = vadd.f32 %v92, %v97
  %vm100 = vcmp.ge.f32.partialorder %v99, 0.0
  %v101 = vmul.f32 %v99, 0.1
  %v102 = vsel %vm100, %v99, %v101
  %103 = vst [vmem:[%s5] sm:$0xff] %v102
  // Predicated region
  $region22: #{_lambda_.12} parent=0 // pred_check
    _
  $region23: #{_lambda_.12} parent=0 // pred_check_branch
    %105 = sbr.rel (0) target = $region25
  $region24: #{_lambda_.12} parent=0 // pred_region
    _
  $region25: #{_lambda_.12} parent=0 // pred_fallthru
    _
  // Predicated region
  $region26: #{_lambda_.12} parent=0 // pred_check
    _
  $region27: #{_lambda_.12} parent=0 // pred_check_branch
    %107 = sbr.rel (0) target = $region29
  $region28: #{_lambda_.12} parent=0 // pred_region
    _
  $region29: #{_lambda_.12} parent=0 // pred_fallthru
    _

// kernel: _lambda_.11
$region0: #{_lambda_.11}
  #allocation0 [shape = 'u32[]', space=smem, size = 0x4, offset = 0x4, fixed_abs, tag = 'smem constant byte address 0x4 - core index']
  #allocation1 [shape = 'u32[144,128]{1,0:T(1,128)}', space=vmem, size = 0x12000, scoped, tag = 'internal scratch']
  %s0 = inlined_call_operand.vmem [shape: bf16[72,128], index: 0, kind: input, shape index: {}]
  %s1 = inlined_call_operand.vmem [shape: bf16[16,72], index: 1, kind: input, shape index: {}]
  %s2 = inlined_call_operand.vmem [shape: f32[16,1], index: 2, kind: input, shape index: {}]
  %s3 = inlined_call_operand.vmem [shape: f32[16,1], index: 3, kind: input, shape index: {}]
  %s4 = inlined_call_operand.vmem [shape: f32[16,1], index: 4, kind: input, shape index: {}]
  %s5 = inlined_call_operand.vmem [shape: f32[16,128], index: 5, kind: output, shape index: {}]
  %s6 = sld [smem:[#allocation0]]
  $region30: #{_lambda_.11} parent=0
    _
  %s8 = ssub.s32 1, %s6
  %s9 = scalar_select 0, %s8, %s6
  // Predicated region
  $region2: #{_lambda_.11} parent=0 // pred_check
    _
  $region3: #{_lambda_.11} parent=0 // pred_check_branch
    %11 = sbr.rel (0) target = $region5
  $region4: #{_lambda_.11} parent=0 // pred_region
    _
  $region5: #{_lambda_.11} parent=0 // pred_fallthru
    _
  // Predicated region
  $region6: #{_lambda_.11} parent=0 // pred_check
    _
  $region7: #{_lambda_.11} parent=0 // pred_check_branch
    %13 = sbr.rel (0) target = $region9
  $region8: #{_lambda_.11} parent=0 // pred_region
    _
  $region9: #{_lambda_.11} parent=0 // pred_fallthru
    _
  // Predicated region
  $region10: #{_lambda_.11} parent=0 // pred_check
    _
  $region11: #{_lambda_.11} parent=0 // pred_check_branch
    %15 = sbr.rel (0) target = $region13
  $region12: #{_lambda_.11} parent=0 // pred_region
    _
  $region13: #{_lambda_.11} parent=0 // pred_fallthru
    _
  // Predicated region
  $region14: #{_lambda_.11} parent=0 // pred_check
    _
  $region15: #{_lambda_.11} parent=0 // pred_check_branch
    %17 = sbr.rel (0) target = $region17
  $region16: #{_lambda_.11} parent=0 // pred_region
    _
  $region17: #{_lambda_.11} parent=0 // pred_fallthru
    _
  // Predicated region
  $region18: #{_lambda_.11} parent=0 // pred_check
    _
  $region19: #{_lambda_.11} parent=0 // pred_check_branch
    %19 = sbr.rel (0) target = $region21
  $region20: #{_lambda_.11} parent=0 // pred_region
    _
  $region21: #{_lambda_.11} parent=0 // pred_fallthru
    _
  %v21 = vld [vmem:[%s1] sm:$0xf]
  %v22 = vld [vmem:[%s1 + $0x4] sm:$0xf]
  %v23 = vld [vmem:[%s0] sm:$0xf]
  %v24 = vld [vmem:[%s0 + $0x4] sm:$0xf]
  %v25 = vld [vmem:[%s0 + $0x8] sm:$0xf]
  %v26 = vld [vmem:[%s0 + $0xc] sm:$0xf]
  %v27 = vld [vmem:[%s0 + $0x10] sm:$0xf]
  %v28 = vld [vmem:[%s0 + $0x14] sm:$0xf]
  %v29 = vld [vmem:[%s0 + $0x18] sm:$0xf]
  %v30 = vld [vmem:[%s0 + $0x1c] sm:$0xf]
  %v31 = vld [vmem:[%s0 + $0x20] sm:$0xf]
  %v34 = vunpack.c.l.b16 %v21
  %v35 = vunpack.c.l.b16 %v22
  %v36 = vpack.c.b16 %v35, %v34
  %v46 = vunpack.c.l.b16 %v23
  %v47 = vunpack.c.l.b16 %v24
  %v48 = vunpack.c.l.b16 %v25
  %v49 = vunpack.c.l.b16 %v26
  %v50 = vunpack.c.l.b16 %v27
  %v51 = vunpack.c.l.b16 %v28
  %v52 = vunpack.c.l.b16 %v29
  %v53 = vunpack.c.l.b16 %v30
  %v54 = vunpack.c.l.b16 %v31
  %v55 = vpack.c.b16 %v47, %v46
  %v56 = vpack.c.b16 %v49, %v48
  %v57 = vpack.c.b16 %v51, %v50
  %v58 = vpack.c.b16 %v53, %v52
  %v59 = vpack.c.b16 %v54, %v54
  %vm64 = vcmask 588800
  %v66 = vsel %vm64, %v36, 0
  %vm68 = vcmask 1043456
  %v70 = vsel %vm68, %v59, 0
  %72 = vmatprep.subr.bf16.mxu0 0
  %73 = vmatpush1.bf16.msra.mxu0 %v55
  %74 = vmatprep.subr.bf16.mxu0 0
  %75 = vmatpush1.bf16.msra.mxu0 %v56
  %76 = vmatprep.subr.bf16.mxu0 0
  %77 = vmatpush1.bf16.msra.mxu0 %v57
  %78 = vmatprep.subr.bf16.mxu0 0
  %79 = vmatpush1.bf16.msra.mxu0 %v58
  %80 = vmatprep.subr.bf16.mxu0 0
  %81 = vmatpush1.bf16.msra.mxu0 %v70
  %82 = vmatprep.subr.bf16.mxu0 0
  %83 = vmatpush1.bf16.msra.mxu0 0
  %84 = vmatprep.subr.bf16.mxu0 0
  %85 = vmatpush1.bf16.msra.mxu0 0
  %86 = vmatprep.subr.bf16.mxu0 0
  %87 = vmatpush1.bf16.msra.mxu0 0
  %88 = vmatprep.subr.bf16.mxu0 0
  %89 = vmatpush1.bf16.msra.mxu0 0
  %90 = vmatprep.subr.bf16.mxu0 0
  %91 = vmatpush1.bf16.msra.mxu0 0
  %92 = vmatprep.subr.bf16.mxu0 0
  %93 = vmatpush1.bf16.msra.mxu0 0
  %94 = vmatprep.subr.bf16.mxu0 0
  %95 = vmatpush1.bf16.msra.mxu0 0
  %96 = vmatprep.subr.bf16.mxu0 0
  %97 = vmatpush1.bf16.msra.mxu0 0
  %98 = vmatprep.subr.bf16.mxu0 0
  %99 = vmatpush1.bf16.msra.mxu0 0
  %100 = vmatprep.subr.bf16.mxu0 0
  %101 = vmatpush1.bf16.msra.mxu0 0
  %102 = vmatprep.subr.bf16.mxu0 0
  %103 = vmatpush1.bf16.msra.mxu0 0
  %104 = vmatprep.mubr.bf16.mxu0 0
  %105 = vmatmul.mubr.bf16.gmra.mrb[0].mxu0 %v66
  %v106 = vpop.f32.mrb[0].mxu0
  %v107 = vadd.f32 0.0, %v106
  %v108 = vpop.f32.mrb[0].mxu0
  %v109 = vpop.f32.mrb[0].mxu0
  %v110 = vadd.f32 0.0, %v109
  %v111 = vpop.f32.mrb[0].mxu0
  %112 = vdwg.mxu0
  %113 = vadd.xlane.f32.xlu0 %v107
  %v114 = vpop.xlane.xlu0 %113
  %115 = vadd.xlane.f32.xlu0 %v110
  %v116 = vpop.xlane.xlu0 %115
  %v117 = vrcp.pop 128.0
  %v118 = vmul.f32 %v114, %v117
  %v119 = vmul.f32 %v116, %v117
  %v120 = vsub.f32 %v107, %v118
  %v121 = vsub.f32 %v110, %v119
  %v122 = vmul.f32 %v120, %v120
  %v123 = vmul.f32 %v121, %v121
  %124 = vadd.xlane.f32.xlu0 %v122
  %v125 = vpop.xlane.xlu0 %124
  %126 = vadd.xlane.f32.xlu0 %v123
  %v127 = vpop.xlane.xlu0 %126
  %v128 = vmul.f32 %v125, %v117
  %v129 = vmul.f32 %v127, %v117
  %v130 = vadd.f32 %v128, 1e-05
  %v131 = vadd.f32 %v129, 1e-05
  %v132 = vrsqrt.pop %v130
  %v133 = vrsqrt.pop %v131
  %v134 = vmul.f32 %v120, %v132
  %v135 = vmul.f32 %v121, %v133
  %v136 = vld [vmem:[%s3] sm:$0xff]
  %v137 = vld [vmem:[%s3 + $0x8] sm:$0xff]
  %139 = vset.pattern.permute.xlu0 0
  %140 = vperm.xlu0 %139, %v136
  %v141 = vpop.permute.xlu0 %140
  %144 = vset.pattern.permute.xlu0 0
  %145 = vperm.xlu0 %144, %v137
  %v146 = vpop.permute.xlu0 %145
  %v148 = vmul.f32 %v134, %v141
  %v149 = vmul.f32 %v135, %v146
  %v150 = vld [vmem:[%s4] sm:$0xff]
  %v151 = vld [vmem:[%s4 + $0x8] sm:$0xff]
  %153 = vset.pattern.permute.xlu0 0
  %154 = vperm.xlu0 %153, %v150
  %v155 = vpop.permute.xlu0 %154
  %158 = vset.pattern.permute.xlu0 0
  %159 = vperm.xlu0 %158, %v151
  %v160 = vpop.permute.xlu0 %159
  %v162 = vadd.f32 %v148, %v155
  %v163 = vadd.f32 %v149, %v160
  %vm164 = vcmp.ge.f32.partialorder %v162, 0.0
  %vm165 = vcmp.ge.f32.partialorder %v163, 0.0
  %v166 = vmul.f32 %v162, 0.1
  %v167 = vmul.f32 %v163, 0.1
  %v168 = vsel %vm164, %v162, %v166
  %v169 = vsel %vm165, %v163, %v167
  %170 = vst [vmem:[%s5] sm:$0xff] %v168
  %171 = vst [vmem:[%s5 + $0x8] sm:$0xff] %v169
  // Predicated region
  $region22: #{_lambda_.11} parent=0 // pred_check
    _
  $region23: #{_lambda_.11} parent=0 // pred_check_branch
    %173 = sbr.rel (0) target = $region25
  $region24: #{_lambda_.11} parent=0 // pred_region
    _
  $region25: #{_lambda_.11} parent=0 // pred_fallthru
    _
  // Predicated region
  $region26: #{_lambda_.11} parent=0 // pred_check
    _
  $region27: #{_lambda_.11} parent=0 // pred_check_branch
    %175 = sbr.rel (0) target = $region29
  $region28: #{_lambda_.11} parent=0 // pred_region
    _
  $region29: #{_lambda_.11} parent=0 // pred_fallthru
    _

// kernel: _lambda_.13
$region0: #{_lambda_.13}
  #allocation0 [shape = 'u32[]', space=smem, size = 0x4, offset = 0x4, fixed_abs, tag = 'smem constant byte address 0x4 - core index']
  #allocation1 [shape = 'u32[144,128]{1,0:T(1,128)}', space=vmem, size = 0x12000, scoped, tag = 'internal scratch']
  %s0 = inlined_call_operand.vmem [shape: bf16[72,128], index: 0, kind: input, shape index: {}]
  %s1 = inlined_call_operand.vmem [shape: bf16[16,72], index: 1, kind: input, shape index: {}]
  %s2 = inlined_call_operand.vmem [shape: f32[16,1], index: 2, kind: input, shape index: {}]
  %s3 = inlined_call_operand.vmem [shape: f32[16,1], index: 3, kind: input, shape index: {}]
  %s4 = inlined_call_operand.vmem [shape: f32[16,1], index: 4, kind: input, shape index: {}]
  %s5 = inlined_call_operand.vmem [shape: f32[16,128], index: 5, kind: input, shape index: {}]
  %s6 = inlined_call_operand.vmem [shape: f32[16,128], index: 6, kind: output, shape index: {}]
  %s7 = sld [smem:[#allocation0]]
  $region34: #{_lambda_.13} parent=0
    _
  %s9 = ssub.s32 1, %s7
  %s10 = scalar_select 0, %s9, %s7
  // Predicated region
  $region2: #{_lambda_.13} parent=0 // pred_check
    _
  $region3: #{_lambda_.13} parent=0 // pred_check_branch
    %12 = sbr.rel (0) target = $region5
  $region4: #{_lambda_.13} parent=0 // pred_region
    _
  $region5: #{_lambda_.13} parent=0 // pred_fallthru
    _
  // Predicated region
  $region6: #{_lambda_.13} parent=0 // pred_check
    _
  $region7: #{_lambda_.13} parent=0 // pred_check_branch
    %14 = sbr.rel (0) target = $region9
  $region8: #{_lambda_.13} parent=0 // pred_region
    _
  $region9: #{_lambda_.13} parent=0 // pred_fallthru
    _
  // Predicated region
  $region10: #{_lambda_.13} parent=0 // pred_check
    _
  $region11: #{_lambda_.13} parent=0 // pred_check_branch
    %16 = sbr.rel (0) target = $region13
  $region12: #{_lambda_.13} parent=0 // pred_region
    _
  $region13: #{_lambda_.13} parent=0 // pred_fallthru
    _
  // Predicated region
  $region14: #{_lambda_.13} parent=0 // pred_check
    _
  $region15: #{_lambda_.13} parent=0 // pred_check_branch
    %18 = sbr.rel (0) target = $region17
  $region16: #{_lambda_.13} parent=0 // pred_region
    _
  $region17: #{_lambda_.13} parent=0 // pred_fallthru
    _
  // Predicated region
  $region18: #{_lambda_.13} parent=0 // pred_check
    _
  $region19: #{_lambda_.13} parent=0 // pred_check_branch
    %20 = sbr.rel (0) target = $region21
  $region20: #{_lambda_.13} parent=0 // pred_region
    _
  $region21: #{_lambda_.13} parent=0 // pred_fallthru
    _
  // Predicated region
  $region22: #{_lambda_.13} parent=0 // pred_check
    _
  $region23: #{_lambda_.13} parent=0 // pred_check_branch
    %22 = sbr.rel (0) target = $region25
  $region24: #{_lambda_.13} parent=0 // pred_region
    _
  $region25: #{_lambda_.13} parent=0 // pred_fallthru
    _
  %v24 = vld [vmem:[%s1] sm:$0xf]
  %v25 = vld [vmem:[%s1 + $0x4] sm:$0xf]
  %v26 = vld [vmem:[%s0] sm:$0xf]
  %v27 = vld [vmem:[%s0 + $0x4] sm:$0xf]
  %v28 = vld [vmem:[%s0 + $0x8] sm:$0xf]
  %v29 = vld [vmem:[%s0 + $0xc] sm:$0xf]
  %v30 = vld [vmem:[%s0 + $0x10] sm:$0xf]
  %v31 = vld [vmem:[%s0 + $0x14] sm:$0xf]
  %v32 = vld [vmem:[%s0 + $0x18] sm:$0xf]
  %v33 = vld [vmem:[%s0 + $0x1c] sm:$0xf]
  %v34 = vld [vmem:[%s0 + $0x20] sm:$0xf]
  %v37 = vunpack.c.l.b16 %v24
  %v38 = vunpack.c.l.b16 %v25
  %v39 = vpack.c.b16 %v38, %v37
  %v49 = vunpack.c.l.b16 %v26
  %v50 = vunpack.c.l.b16 %v27
  %v51 = vunpack.c.l.b16 %v28
  %v52 = vunpack.c.l.b16 %v29
  %v53 = vunpack.c.l.b16 %v30
  %v54 = vunpack.c.l.b16 %v31
  %v55 = vunpack.c.l.b16 %v32
  %v56 = vunpack.c.l.b16 %v33
  %v57 = vunpack.c.l.b16 %v34
  %v58 = vpack.c.b16 %v50, %v49
  %v59 = vpack.c.b16 %v52, %v51
  %v60 = vpack.c.b16 %v54, %v53
  %v61 = vpack.c.b16 %v56, %v55
  %v62 = vpack.c.b16 %v57, %v57
  %vm67 = vcmask 588800
  %v69 = vsel %vm67, %v39, 0
  %vm71 = vcmask 1043456
  %v73 = vsel %vm71, %v62, 0
  %75 = vmatprep.subr.bf16.mxu0 0
  %76 = vmatpush1.bf16.msra.mxu0 %v58
  %77 = vmatprep.subr.bf16.mxu0 0
  %78 = vmatpush1.bf16.msra.mxu0 %v59
  %79 = vmatprep.subr.bf16.mxu0 0
  %80 = vmatpush1.bf16.msra.mxu0 %v60
  %81 = vmatprep.subr.bf16.mxu0 0
  %82 = vmatpush1.bf16.msra.mxu0 %v61
  %83 = vmatprep.subr.bf16.mxu0 0
  %84 = vmatpush1.bf16.msra.mxu0 %v73
  %85 = vmatprep.subr.bf16.mxu0 0
  %86 = vmatpush1.bf16.msra.mxu0 0
  %87 = vmatprep.subr.bf16.mxu0 0
  %88 = vmatpush1.bf16.msra.mxu0 0
  %89 = vmatprep.subr.bf16.mxu0 0
  %90 = vmatpush1.bf16.msra.mxu0 0
  %91 = vmatprep.subr.bf16.mxu0 0
  %92 = vmatpush1.bf16.msra.mxu0 0
  %93 = vmatprep.subr.bf16.mxu0 0
  %94 = vmatpush1.bf16.msra.mxu0 0
  %95 = vmatprep.subr.bf16.mxu0 0
  %96 = vmatpush1.bf16.msra.mxu0 0
  %97 = vmatprep.subr.bf16.mxu0 0
  %98 = vmatpush1.bf16.msra.mxu0 0
  %99 = vmatprep.subr.bf16.mxu0 0
  %100 = vmatpush1.bf16.msra.mxu0 0
  %101 = vmatprep.subr.bf16.mxu0 0
  %102 = vmatpush1.bf16.msra.mxu0 0
  %103 = vmatprep.subr.bf16.mxu0 0
  %104 = vmatpush1.bf16.msra.mxu0 0
  %105 = vmatprep.subr.bf16.mxu0 0
  %106 = vmatpush1.bf16.msra.mxu0 0
  %107 = vmatprep.mubr.bf16.mxu0 0
  %108 = vmatmul.mubr.bf16.gmra.mrb[0].mxu0 %v69
  %v109 = vpop.f32.mrb[0].mxu0
  %v110 = vadd.f32 0.0, %v109
  %v111 = vpop.f32.mrb[0].mxu0
  %v112 = vpop.f32.mrb[0].mxu0
  %v113 = vadd.f32 0.0, %v112
  %v114 = vpop.f32.mrb[0].mxu0
  %115 = vdwg.mxu0
  %116 = vadd.xlane.f32.xlu0 %v110
  %v117 = vpop.xlane.xlu0 %116
  %118 = vadd.xlane.f32.xlu0 %v113
  %v119 = vpop.xlane.xlu0 %118
  %v120 = vrcp.pop 128.0
  %v121 = vmul.f32 %v117, %v120
  %v122 = vmul.f32 %v119, %v120
  %v123 = vsub.f32 %v110, %v121
  %v124 = vsub.f32 %v113, %v122
  %v125 = vmul.f32 %v123, %v123
  %v126 = vmul.f32 %v124, %v124
  %127 = vadd.xlane.f32.xlu0 %v125
  %v128 = vpop.xlane.xlu0 %127
  %129 = vadd.xlane.f32.xlu0 %v126
  %v130 = vpop.xlane.xlu0 %129
  %v131 = vmul.f32 %v128, %v120
  %v132 = vmul.f32 %v130, %v120
  %v133 = vadd.f32 %v131, 1e-05
  %v134 = vadd.f32 %v132, 1e-05
  %v135 = vrsqrt.pop %v133
  %v136 = vrsqrt.pop %v134
  %v137 = vmul.f32 %v123, %v135
  %v138 = vmul.f32 %v124, %v136
  %v139 = vld [vmem:[%s3] sm:$0xff]
  %v140 = vld [vmem:[%s3 + $0x8] sm:$0xff]
  %142 = vset.pattern.permute.xlu0 0
  %143 = vperm.xlu0 %142, %v139
  %v144 = vpop.permute.xlu0 %143
  %147 = vset.pattern.permute.xlu0 0
  %148 = vperm.xlu0 %147, %v140
  %v149 = vpop.permute.xlu0 %148
  %v151 = vmul.f32 %v137, %v144
  %v152 = vmul.f32 %v138, %v149
  %v153 = vld [vmem:[%s4] sm:$0xff]
  %v154 = vld [vmem:[%s4 + $0x8] sm:$0xff]
  %156 = vset.pattern.permute.xlu0 0
  %157 = vperm.xlu0 %156, %v153
  %v158 = vpop.permute.xlu0 %157
  %161 = vset.pattern.permute.xlu0 0
  %162 = vperm.xlu0 %161, %v154
  %v163 = vpop.permute.xlu0 %162
  %v165 = vadd.f32 %v151, %v158
  %v166 = vadd.f32 %v152, %v163
  %vm167 = vcmp.ge.f32.partialorder %v165, 0.0
  %vm168 = vcmp.ge.f32.partialorder %v166, 0.0
  %v169 = vmul.f32 %v165, 0.1
  %v170 = vmul.f32 %v166, 0.1
  %v171 = vsel %vm167, %v165, %v169
  %v172 = vsel %vm168, %v166, %v170
  %v173 = vld [vmem:[%s5] sm:$0xff]
  %v174 = vld [vmem:[%s5 + $0x8] sm:$0xff]
  %v175 = vadd.f32 %v171, %v173
  %v176 = vadd.f32 %v172, %v174
  %177 = vst [vmem:[%s6] sm:$0xff] %v175
  %178 = vst [vmem:[%s6 + $0x8] sm:$0xff] %v176
  // Predicated region
  $region26: #{_lambda_.13} parent=0 // pred_check
    _
  $region27: #{_lambda_.13} parent=0 // pred_check_branch
    %180 = sbr.rel (0) target = $region29
  $region28: #{_lambda_.13} parent=0 // pred_region
    _
  $region29: #{_lambda_.13} parent=0 // pred_fallthru
    _
  // Predicated region
  $region30: #{_lambda_.13} parent=0 // pred_check
    _
  $region31: #{_lambda_.13} parent=0 // pred_check_branch
    %182 = sbr.rel (0) target = $region33
  $region32: #{_lambda_.13} parent=0 // pred_region
    _
  $region33: #{_lambda_.13} parent=0 // pred_fallthru
    _

// kernel: _lambda_.16
$region0: #{_lambda_.16}
  #allocation0 [shape = 'u32[]', space=smem, size = 0x4, offset = 0x4, fixed_abs, tag = 'smem constant byte address 0x4 - core index']
  #allocation1 [shape = 'u32[144,128]{1,0:T(1,128)}', space=vmem, size = 0x12000, scoped, tag = 'internal scratch']
  %s0 = inlined_call_operand.vmem [shape: f32[16,8,8], index: 0, kind: input, shape index: {}]
  %s1 = inlined_call_operand.vmem [shape: f32[16,8], index: 1, kind: input, shape index: {}]
  %s2 = inlined_call_operand.vmem [shape: f32[8,16], index: 2, kind: input, shape index: {}]
  %s3 = inlined_call_operand.vmem [shape: f32[16,16,16], index: 3, kind: output, shape index: {}]
  %s4 = sld [smem:[#allocation0]]
  $region22: #{_lambda_.16} parent=0
    _
  %s6 = ssub.s32 1, %s4
  %s7 = scalar_select 0, %s6, %s4
  // Predicated region
  $region2: #{_lambda_.16} parent=0 // pred_check
    _
  $region3: #{_lambda_.16} parent=0 // pred_check_branch
    %9 = sbr.rel (0) target = $region5
  $region4: #{_lambda_.16} parent=0 // pred_region
    _
  $region5: #{_lambda_.16} parent=0 // pred_fallthru
    _
  // Predicated region
  $region6: #{_lambda_.16} parent=0 // pred_check
    _
  $region7: #{_lambda_.16} parent=0 // pred_check_branch
    %11 = sbr.rel (0) target = $region9
  $region8: #{_lambda_.16} parent=0 // pred_region
    _
  $region9: #{_lambda_.16} parent=0 // pred_fallthru
    _
  // Predicated region
  $region10: #{_lambda_.16} parent=0 // pred_check
    _
  $region11: #{_lambda_.16} parent=0 // pred_check_branch
    %13 = sbr.rel (0) target = $region13
  $region12: #{_lambda_.16} parent=0 // pred_region
    _
  $region13: #{_lambda_.16} parent=0 // pred_fallthru
    _
  %v14 = vld [vmem:[%s1] sm:$0xff]
  %v15 = vld [vmem:[%s1 + $0x8] sm:$0xff]
  %v16 = vld [vmem:[%s2] sm:$0xff]
  %v17 = vld [vmem:[%s0] sm:$0xff]
  %vm18 = vcmask 64512
  %v20 = vsel %vm18, %v17, 0
  %22 = vmatprep.subr.mxu0 0.0
  %23 = vmatpush1.msra.mxu0 %v16
  %24 = vmatprep.subr.mxu0 0.0
  %25 = vmatpush1.msra.mxu0 0.0
  %26 = vmatprep.subr.mxu0 0.0
  %27 = vmatpush1.msra.mxu0 0.0
  %28 = vmatprep.subr.mxu0 0.0
  %29 = vmatpush1.msra.mxu0 0.0
  %30 = vmatprep.subr.mxu0 0.0
  %31 = vmatpush1.msra.mxu0 0.0
  %32 = vmatprep.subr.mxu0 0.0
  %33 = vmatpush1.msra.mxu0 0.0
  %34 = vmatprep.subr.mxu0 0.0
  %35 = vmatpush1.msra.mxu0 0.0
  %36 = vmatprep.subr.mxu0 0.0
  %37 = vmatpush1.msra.mxu0 0.0
  %38 = vmatprep.subr.mxu0 0.0
  %39 = vmatpush1.msra.mxu0 0.0
  %40 = vmatprep.subr.mxu0 0.0
  %41 = vmatpush1.msra.mxu0 0.0
  %42 = vmatprep.subr.mxu0 0.0
  %43 = vmatpush1.msra.mxu0 0.0
  %44 = vmatprep.subr.mxu0 0.0
  %45 = vmatpush1.msra.mxu0 0.0
  %46 = vmatprep.subr.mxu0 0.0
  %47 = vmatpush1.msra.mxu0 0.0
  %48 = vmatprep.subr.mxu0 0.0
  %49 = vmatpush1.msra.mxu0 0.0
  %50 = vmatprep.subr.mxu0 0.0
  %51 = vmatpush1.msra.mxu0 0.0
  %52 = vmatprep.subr.mxu0 0.0
  %53 = vmatpush1.msra.mxu0 0.0
  %54 = vmatprep.subr.mxu0 0.0
  %55 = vmatpush1.msra.mxu0 0.0
  %56 = vmatprep.subr.mxu0 0.0
  %57 = vmatpush1.msra.mxu0 0.0
  %58 = vmatprep.subr.mxu0 0.0
  %59 = vmatpush1.msra.mxu0 0.0
  %60 = vmatprep.subr.mxu0 0.0
  %61 = vmatpush1.msra.mxu0 0.0
  %62 = vmatprep.subr.mxu0 0.0
  %63 = vmatpush1.msra.mxu0 0.0
  %64 = vmatprep.subr.mxu0 0.0
  %65 = vmatpush1.msra.mxu0 0.0
  %66 = vmatprep.subr.mxu0 0.0
  %67 = vmatpush1.msra.mxu0 0.0
  %68 = vmatprep.subr.mxu0 0.0
  %69 = vmatpush1.msra.mxu0 0.0
  %70 = vmatprep.subr.mxu0 0.0
  %71 = vmatpush1.msra.mxu0 0.0
  %72 = vmatprep.subr.mxu0 0.0
  %73 = vmatpush1.msra.mxu0 0.0
  %74 = vmatprep.subr.mxu0 0.0
  %75 = vmatpush1.msra.mxu0 0.0
  %76 = vmatprep.subr.mxu0 0.0
  %77 = vmatpush1.msra.mxu0 0.0
  %78 = vmatprep.subr.mxu0 0.0
  %79 = vmatpush1.msra.mxu0 0.0
  %80 = vmatprep.subr.mxu0 0.0
  %81 = vmatpush1.msra.mxu0 0.0
  %82 = vmatprep.subr.mxu0 0.0
  %83 = vmatpush1.msra.mxu0 0.0
  %84 = vmatprep.subr.mxu0 0.0
  %85 = vmatpush1.msra.mxu0 0.0
  %86 = vmatprep.mubr.f32.mxu0 0.0
  %87 = vmatmul.mubr.f32.gmra.mrb[0].mxu0 %v20
  %v88 = vpop.f32.mrb[0].mxu0
  %v89 = vadd.f32 0.0, %v88
  %v90 = vpop.f32.mrb[0].mxu0
  %91 = vdwg.mxu0
  %v93 = vsel %vm18, %v14, 0
  %v96 = vsel %vm18, %v15, 0
  %98 = vmatprep.subr.mxu0 0.0
  %99 = vmatpush1.msra.mxu0 %v89
  %100 = vmatprep.subr.mxu0 0.0
  %101 = vmatpush1.msra.mxu0 0.0
  %102 = vmatprep.subr.mxu0 0.0
  %103 = vmatpush1.msra.mxu0 0.0
  %104 = vmatprep.subr.mxu0 0.0
  %105 = vmatpush1.msra.mxu0 0.0
  %106 = vmatprep.subr.mxu0 0.0
  %107 = vmatpush1.msra.mxu0 0.0
  %108 = vmatprep.subr.mxu0 0.0
  %109 = vmatpush1.msra.mxu0 0.0
  %110 = vmatprep.subr.mxu0 0.0
  %111 = vmatpush1.msra.mxu0 0.0
  %112 = vmatprep.subr.mxu0 0.0
  %113 = vmatpush1.msra.mxu0 0.0
  %114 = vmatprep.subr.mxu0 0.0
  %115 = vmatpush1.msra.mxu0 0.0
  %116 = vmatprep.subr.mxu0 0.0
  %117 = vmatpush1.msra.mxu0 0.0
  %118 = vmatprep.subr.mxu0 0.0
  %119 = vmatpush1.msra.mxu0 0.0
  %120 = vmatprep.subr.mxu0 0.0
  %121 = vmatpush1.msra.mxu0 0.0
  %122 = vmatprep.subr.mxu0 0.0
  %123 = vmatpush1.msra.mxu0 0.0
  %124 = vmatprep.subr.mxu0 0.0
  %125 = vmatpush1.msra.mxu0 0.0
  %126 = vmatprep.subr.mxu0 0.0
  %127 = vmatpush1.msra.mxu0 0.0
  %128 = vmatprep.subr.mxu0 0.0
  %129 = vmatpush1.msra.mxu0 0.0
  %130 = vmatprep.subr.mxu0 0.0
  %131 = vmatpush1.msra.mxu0 0.0
  %132 = vmatprep.subr.mxu0 0.0
  %133 = vmatpush1.msra.mxu0 0.0
  %134 = vmatprep.subr.mxu0 0.0
  %135 = vmatpush1.msra.mxu0 0.0
  %136 = vmatprep.subr.mxu0 0.0
  %137 = vmatpush1.msra.mxu0 0.0
  %138 = vmatprep.subr.mxu0 0.0
  %139 = vmatpush1.msra.mxu0 0.0
  %140 = vmatprep.subr.mxu0 0.0
  %141 = vmatpush1.msra.mxu0 0.0
  %142 = vmatprep.subr.mxu0 0.0
  %143 = vmatpush1.msra.mxu0 0.0
  %144 = vmatprep.subr.mxu0 0.0
  %145 = vmatpush1.msra.mxu0 0.0
  %146 = vmatprep.subr.mxu0 0.0
  %147 = vmatpush1.msra.mxu0 0.0
  %148 = vmatprep.subr.mxu0 0.0
  %149 = vmatpush1.msra.mxu0 0.0
  %150 = vmatprep.subr.mxu0 0.0
  %151 = vmatpush1.msra.mxu0 0.0
  %152 = vmatprep.subr.mxu0 0.0
  %153 = vmatpush1.msra.mxu0 0.0
  %154 = vmatprep.subr.mxu0 0.0
  %155 = vmatpush1.msra.mxu0 0.0
  %156 = vmatprep.subr.mxu0 0.0
  %157 = vmatpush1.msra.mxu0 0.0
  %158 = vmatprep.subr.mxu0 0.0
  %159 = vmatpush1.msra.mxu0 0.0
  %160 = vmatprep.subr.mxu0 0.0
  %161 = vmatpush1.msra.mxu0 0.0
  %162 = vmatprep.mubr.f32.mxu0 0.0
  %163 = vmatmul.mubr.f32.gmra.mrb[0].mxu0 %v93
  %v164 = vpop.f32.mrb[0].mxu0
  %v165 = vadd.f32 0.0, %v164
  %v166 = vpop.f32.mrb[0].mxu0
  %167 = vmatprep.mubr.f32.mxu0 0.0
  %168 = vmatmul.mubr.f32.gmra.mrb[0].mxu0 %v96
  %v169 = vpop.f32.mrb[0].mxu0
  %v170 = vadd.f32 0.0, %v169
  %v171 = vpop.f32.mrb[0].mxu0
  %172 = vdwg.mxu0
  %vm173 = vcmask 130048
  %174 = vst.msk [vmem:[%s3] sm:$0xff] %vm173, %v165
  %175 = vst.msk [vmem:[%s3 + $0x8] sm:$0xff] %vm173, %v170
  %s176 = scalar_lea.vmem %s0, 8
  %v177 = vld [vmem:[%s176] sm:$0xff]
  %v179 = vsel %vm18, %v177, 0
  %181 = vmatprep.subr.mxu0 0.0
  %182 = vmatpush1.msra.mxu0 %v16
  %183 = vmatprep.subr.mxu0 0.0
  %184 = vmatpush1.msra.mxu0 0.0
  %185 = vmatprep.subr.mxu0 0.0
  %186 = vmatpush1.msra.mxu0 0.0
  %187 = vmatprep.subr.mxu0 0.0
  %188 = vmatpush1.msra.mxu0 0.0
  %189 = vmatprep.subr.mxu0 0.0
  %190 = vmatpush1.msra.mxu0 0.0
  %191 = vmatprep.subr.mxu0 0.0
  %192 = vmatpush1.msra.mxu0 0.0
  %193 = vmatprep.subr.mxu0 0.0
  %194 = vmatpush1.msra.mxu0 0.0
  %195 = vmatprep.subr.mxu0 0.0
  %196 = vmatpush1.msra.mxu0 0.0
  %197 = vmatprep.subr.mxu0 0.0
  %198 = vmatpush1.msra.mxu0 0.0
  %199 = vmatprep.subr.mxu0 0.0
  %200 = vmatpush1.msra.mxu0 0.0
  %201 = vmatprep.subr.mxu0 0.0
  %202 = vmatpush1.msra.mxu0 0.0
  %203 = vmatprep.subr.mxu0 0.0
  %204 = vmatpush1.msra.mxu0 0.0
  %205 = vmatprep.subr.mxu0 0.0
  %206 = vmatpush1.msra.mxu0 0.0
  %207 = vmatprep.subr.mxu0 0.0
  %208 = vmatpush1.msra.mxu0 0.0
  %209 = vmatprep.subr.mxu0 0.0
  %210 = vmatpush1.msra.mxu0 0.0
  %211 = vmatprep.subr.mxu0 0.0
  %212 = vmatpush1.msra.mxu0 0.0
  %213 = vmatprep.subr.mxu0 0.0
  %214 = vmatpush1.msra.mxu0 0.0
  %215 = vmatprep.subr.mxu0 0.0
  %216 = vmatpush1.msra.mxu0 0.0
  %217 = vmatprep.subr.mxu0 0.0
  %218 = vmatpush1.msra.mxu0 0.0
  %219 = vmatprep.subr.mxu0 0.0
  %220 = vmatpush1.msra.mxu0 0.0
  %221 = vmatprep.subr.mxu0 0.0
  %222 = vmatpush1.msra.mxu0 0.0
  %223 = vmatprep.subr.mxu0 0.0
  %224 = vmatpush1.msra.mxu0 0.0
  %225 = vmatprep.subr.mxu0 0.0
  %226 = vmatpush1.msra.mxu0 0.0
  %227 = vmatprep.subr.mxu0 0.0
  %228 = vmatpush1.msra.mxu0 0.0
  %229 = vmatprep.subr.mxu0 0.0
  %230 = vmatpush1.msra.mxu0 0.0
  %231 = vmatprep.subr.mxu0 0.0
  %232 = vmatpush1.msra.mxu0 0.0
  %233 = vmatprep.subr.mxu0 0.0
  %234 = vmatpush1.msra.mxu0 0.0
  %235 = vmatprep.subr.mxu0 0.0
  %236 = vmatpush1.msra.mxu0 0.0
  %237 = vmatprep.subr.mxu0 0.0
  %238 = vmatpush1.msra.mxu0 0.0
  %239 = vmatprep.subr.mxu0 0.0
  %240 = vmatpush1.msra.mxu0 0.0
  %241 = vmatprep.subr.mxu0 0.0
  %242 = vmatpush1.msra.mxu0 0.0
  %243 = vmatprep.subr.mxu0 0.0
  %244 = vmatpush1.msra.mxu0 0.0
  %245 = vmatprep.mubr.f32.mxu0 0.0
  %246 = vmatmul.mubr.f32.gmra.mrb[0].mxu0 %v179
  %v247 = vpop.f32.mrb[0].mxu0
  %v248 = vadd.f32 0.0, %v247
  %v249 = vpop.f32.mrb[0].mxu0
  %250 = vdwg.mxu0
  %251 = vmatprep.subr.mxu0 0.0
  %252 = vmatpush1.msra.mxu0 %v248
  %253 = vmatprep.subr.mxu0 0.0
  %254 = vmatpush1.msra.mxu0 0.0
  %255 = vmatprep.subr.mxu0 0.0
  %256 = vmatpush1.msra.mxu0 0.0
  %257 = vmatprep.subr.mxu0 0.0
  %258 = vmatpush1.msra.mxu0 0.0
  %259 = vmatprep.subr.mxu0 0.0
  %260 = vmatpush1.msra.mxu0 0.0
  %261 = vmatprep.subr.mxu0 0.0
  %262 = vmatpush1.msra.mxu0 0.0
  %263 = vmatprep.subr.mxu0 0.0
  %264 = vmatpush1.msra.mxu0 0.0
  %265 = vmatprep.subr.mxu0 0.0
  %266 = vmatpush1.msra.mxu0 0.0
  %267 = vmatprep.subr.mxu0 0.0
  %268 = vmatpush1.msra.mxu0 0.0
  %269 = vmatprep.subr.mxu0 0.0
  %270 = vmatpush1.msra.mxu0 0.0
  %271 = vmatprep.subr.mxu0 0.0
  %272 = vmatpush1.msra.mxu0 0.0
  %273 = vmatprep.subr.mxu0 0.0
  %274 = vmatpush1.msra.mxu0 0.0
  %275 = vmatprep.subr.mxu0 0.0
  %276 = vmatpush1.msra.mxu0 0.0
  %277 = vmatprep.subr.mxu0 0.0
  %278 = vmatpush1.msra.mxu0 0.0
  %279 = vmatprep.subr.mxu0 0.0
  %280 = vmatpush1.msra.mxu0 0.0
  %281 = vmatprep.subr.mxu0 0.0
  %282 = vmatpush1.msra.mxu0 0.0
  %283 = vmatprep.subr.mxu0 0.0
  %284 = vmatpush1.msra.mxu0 0.0
  %285 = vmatprep.subr.mxu0 0.0
  %286 = vmatpush1.msra.mxu0 0.0
  %287 = vmatprep.subr.mxu0 0.0
  %288 = vmatpush1.msra.mxu0 0.0
  %289 = vmatprep.subr.mxu0 0.0
  %290 = vmatpush1.msra.mxu0 0.0
  %291 = vmatprep.subr.mxu0 0.0
  %292 = vmatpush1.msra.mxu0 0.0
  %293 = vmatprep.subr.mxu0 0.0
  %294 = vmatpush1.msra.mxu0 0.0
  %295 = vmatprep.subr.mxu0 0.0
  %296 = vmatpush1.msra.mxu0 0.0
  %297 = vmatprep.subr.mxu0 0.0
  %298 = vmatpush1.msra.mxu0 0.0
  %299 = vmatprep.subr.mxu0 0.0
  %300 = vmatpush1.msra.mxu0 0.0
  %301 = vmatprep.subr.mxu0 0.0
  %302 = vmatpush1.msra.mxu0 0.0
  %303 = vmatprep.subr.mxu0 0.0
  %304 = vmatpush1.msra.mxu0 0.0
  %305 = vmatprep.subr.mxu0 0.0
  %306 = vmatpush1.msra.mxu0 0.0
  %307 = vmatprep.subr.mxu0 0.0
  %308 = vmatpush1.msra.mxu0 0.0
  %309 = vmatprep.subr.mxu0 0.0
  %310 = vmatpush1.msra.mxu0 0.0
  %311 = vmatprep.subr.mxu0 0.0
  %312 = vmatpush1.msra.mxu0 0.0
  %313 = vmatprep.subr.mxu0 0.0
  %314 = vmatpush1.msra.mxu0 0.0
  %315 = vmatprep.mubr.f32.mxu0 0.0
  %316 = vmatmul.mubr.f32.gmra.mrb[0].mxu0 %v93
  %v317 = vpop.f32.mrb[0].mxu0
  %v318 = vadd.f32 0.0, %v317
  %v319 = vpop.f32.mrb[0].mxu0
  %320 = vmatprep.mubr.f32.mxu0 0.0
  %321 = vmatmul.mubr.f32.gmra.mrb[0].mxu0 %v96
  %v322 = vpop.f32.mrb[0].mxu0
  %v323 = vadd.f32 0.0, %v322
  %v324 = vpop.f32.mrb[0].mxu0
  %325 = vdwg.mxu0
  %s326 = scalar_lea.vmem %s3, 16
  %327 = vst.msk [vmem:[%s326] sm:$0xff] %vm173, %v318
  %328 = vst.msk [vmem:[%s326 + $0x8] sm:$0xff] %vm173, %v323
  %s329 = scalar_lea.vmem %s0, 16
  %v330 = vld [vmem:[%s329] sm:$0xff]
  %v332 = vsel %vm18, %v330, 0
  %334 = vmatprep.subr.mxu0 0.0
  %335 = vmatpush1.msra.mxu0 %v16
  %336 = vmatprep.subr.mxu0 0.0
  %337 = vmatpush1.msra.mxu0 0.0
  %338 = vmatprep.subr.mxu0 0.0
  %339 = vmatpush1.msra.mxu0 0.0
  %340 = vmatprep.subr.mxu0 0.0
  %341 = vmatpush1.msra.mxu0 0.0
  %342 = vmatprep.subr.mxu0 0.0
  %343 = vmatpush1.msra.mxu0 0.0
  %344 = vmatprep.subr.mxu0 0.0
  %345 = vmatpush1.msra.mxu0 0.0
  %346 = vmatprep.subr.mxu0 0.0
  %347 = vmatpush1.msra.mxu0 0.0
  %348 = vmatprep.subr.mxu0 0.0
  %349 = vmatpush1.msra.mxu0 0.0
  %350 = vmatprep.subr.mxu0 0.0
  %351 = vmatpush1.msra.mxu0 0.0
  %352 = vmatprep.subr.mxu0 0.0
  %353 = vmatpush1.msra.mxu0 0.0
  %354 = vmatprep.subr.mxu0 0.0
  %355 = vmatpush1.msra.mxu0 0.0
  %356 = vmatprep.subr.mxu0 0.0
  %357 = vmatpush1.msra.mxu0 0.0
  %358 = vmatprep.subr.mxu0 0.0
  %359 = vmatpush1.msra.mxu0 0.0
  %360 = vmatprep.subr.mxu0 0.0
  %361 = vmatpush1.msra.mxu0 0.0
  %362 = vmatprep.subr.mxu0 0.0
  %363 = vmatpush1.msra.mxu0 0.0
  %364 = vmatprep.subr.mxu0 0.0
  %365 = vmatpush1.msra.mxu0 0.0
  %366 = vmatprep.subr.mxu0 0.0
  %367 = vmatpush1.msra.mxu0 0.0
  %368 = vmatprep.subr.mxu0 0.0
  %369 = vmatpush1.msra.mxu0 0.0
  %370 = vmatprep.subr.mxu0 0.0
  %371 = vmatpush1.msra.mxu0 0.0
  %372 = vmatprep.subr.mxu0 0.0
  %373 = vmatpush1.msra.mxu0 0.0
  %374 = vmatprep.subr.mxu0 0.0
  %375 = vmatpush1.msra.mxu0 0.0
  %376 = vmatprep.subr.mxu0 0.0
  %377 = vmatpush1.msra.mxu0 0.0
  %378 = vmatprep.subr.mxu0 0.0
  %379 = vmatpush1.msra.mxu0 0.0
  %380 = vmatprep.subr.mxu0 0.0
  %381 = vmatpush1.msra.mxu0 0.0
  %382 = vmatprep.subr.mxu0 0.0
  %383 = vmatpush1.msra.mxu0 0.0
  %384 = vmatprep.subr.mxu0 0.0
  %385 = vmatpush1.msra.mxu0 0.0
  %386 = vmatprep.subr.mxu0 0.0
  %387 = vmatpush1.msra.mxu0 0.0
  %388 = vmatprep.subr.mxu0 0.0
  %389 = vmatpush1.msra.mxu0 0.0
  %390 = vmatprep.subr.mxu0 0.0
  %391 = vmatpush1.msra.mxu0 0.0
  %392 = vmatprep.subr.mxu0 0.0
  %393 = vmatpush1.msra.mxu0 0.0
  %394 = vmatprep.subr.mxu0 0.0
  %395 = vmatpush1.msra.mxu0 0.0
  %396 = vmatprep.subr.mxu0 0.0
  %397 = vmatpush1.msra.mxu0 0.0
  %398 = vmatprep.mubr.f32.mxu0 0.0
  %399 = vmatmul.mubr.f32.gmra.mrb[0].mxu0 %v332
  %v400 = vpop.f32.mrb[0].mxu0
  %v401 = vadd.f32 0.0, %v400
  %v402 = vpop.f32.mrb[0].mxu0
  %403 = vdwg.mxu0
  %404 = vmatprep.subr.mxu0 0.0
  %405 = vmatpush1.msra.mxu0 %v401
  %406 = vmatprep.subr.mxu0 0.0
  %407 = vmatpush1.msra.mxu0 0.0
  %408 = vmatprep.subr.mxu0 0.0
  %409 = vmatpush1.msra.mxu0 0.0
  %410 = vmatprep.subr.mxu0 0.0
  %411 = vmatpush1.msra.mxu0 0.0
  %412 = vmatprep.subr.mxu0 0.0
  %413 = vmatpush1.msra.mxu0 0.0
  %414 = vmatprep.subr.mxu0 0.0
  %415 = vmatpush1.msra.mxu0 0.0
  %416 = vmatprep.subr.mxu0 0.0
  %417 = vmatpush1.msra.mxu0 0.0
  %418 = vmatprep.subr.mxu0 0.0
  %419 = vmatpush1.msra.mxu0 0.0
  %420 = vmatprep.subr.mxu0 0.0
  %421 = vmatpush1.msra.mxu0 0.0
  %422 = vmatprep.subr.mxu0 0.0
  %423 = vmatpush1.msra.mxu0 0.0
  %424 = vmatprep.subr.mxu0 0.0
  %425 = vmatpush1.msra.mxu0 0.0
  %426 = vmatprep.subr.mxu0 0.0
  %427 = vmatpush1.msra.mxu0 0.0
  %428 = vmatprep.subr.mxu0 0.0
  %429 = vmatpush1.msra.mxu0 0.0
  %430 = vmatprep.subr.mxu0 0.0
  %431 = vmatpush1.msra.mxu0 0.0
  %432 = vmatprep.subr.mxu0 0.0
  %433 = vmatpush1.msra.mxu0 0.0
  %434 = vmatprep.subr.mxu0 0.0
  %435 = vmatpush1.msra.mxu0 0.0
  %436 = vmatprep.subr.mxu0 0.0
  %437 = vmatpush1.msra.mxu0 0.0
  %438 = vmatprep.subr.mxu0 0.0
  %439 = vmatpush1.msra.mxu0 0.0
  %440 = vmatprep.subr.mxu0 0.0
  %441 = vmatpush1.msra.mxu0 0.0
  %442 = vmatprep.subr.mxu0 0.0
  %443 = vmatpush1.msra.mxu0 0.0
  %444 = vmatprep.subr.mxu0 0.0
  %445 = vmatpush1.msra.mxu0 0.0
  %446 = vmatprep.subr.mxu0 0.0
  %447 = vmatpush1.msra.mxu0 0.0
  %448 = vmatprep.subr.mxu0 0.0
  %449 = vmatpush1.msra.mxu0 0.0
  %450 = vmatprep.subr.mxu0 0.0
  %451 = vmatpush1.msra.mxu0 0.0
  %452 = vmatprep.subr.mxu0 0.0
  %453 = vmatpush1.msra.mxu0 0.0
  %454 = vmatprep.subr.mxu0 0.0
  %455 = vmatpush1.msra.mxu0 0.0
  %456 = vmatprep.subr.mxu0 0.0
  %457 = vmatpush1.msra.mxu0 0.0
  %458 = vmatprep.subr.mxu0 0.0
  %459 = vmatpush1.msra.mxu0 0.0
  %460 = vmatprep.subr.mxu0 0.0
  %461 = vmatpush1.msra.mxu0 0.0
  %462 = vmatprep.subr.mxu0 0.0
  %463 = vmatpush1.msra.mxu0 0.0
  %464 = vmatprep.subr.mxu0 0.0
  %465 = vmatpush1.msra.mxu0 0.0
  %466 = vmatprep.subr.mxu0 0.0
  %467 = vmatpush1.msra.mxu0 0.0
  %468 = vmatprep.mubr.f32.mxu0 0.0
  %469 = vmatmul.mubr.f32.gmra.mrb[0].mxu0 %v93
  %v470 = vpop.f32.mrb[0].mxu0
  %v471 = vadd.f32 0.0, %v470
  %v472 = vpop.f32.mrb[0].mxu0
  %473 = vmatprep.mubr.f32.mxu0 0.0
  %474 = vmatmul.mubr.f32.gmra.mrb[0].mxu0 %v96
  %v475 = vpop.f32.mrb[0].mxu0
  %v476 = vadd.f32 0.0, %v475
  %v477 = vpop.f32.mrb[0].mxu0
  %478 = vdwg.mxu0
  %s479 = scalar_lea.vmem %s3, 32
  %480 = vst.msk [vmem:[%s479] sm:$0xff] %vm173, %v471
  %481 = vst.msk [vmem:[%s479 + $0x8] sm:$0xff] %vm173, %v476
  %s482 = scalar_lea.vmem %s0, 24
  %v483 = vld [vmem:[%s482] sm:$0xff]
  %v485 = vsel %vm18, %v483, 0
  %487 = vmatprep.subr.mxu0 0.0
  %488 = vmatpush1.msra.mxu0 %v16
  %489 = vmatprep.subr.mxu0 0.0
  %490 = vmatpush1.msra.mxu0 0.0
  %491 = vmatprep.subr.mxu0 0.0
  %492 = vmatpush1.msra.mxu0 0.0
  %493 = vmatprep.subr.mxu0 0.0
  %494 = vmatpush1.msra.mxu0 0.0
  %495 = vmatprep.subr.mxu0 0.0
  %496 = vmatpush1.msra.mxu0 0.0
  %497 = vmatprep.subr.mxu0 0.0
  %498 = vmatpush1.msra.mxu0 0.0
  %499 = vmatprep.subr.mxu0 0.0
  %500 = vmatpush1.msra.mxu0 0.0
  %501 = vmatprep.subr.mxu0 0.0
  %502 = vmatpush1.msra.mxu0 0.0
  %503 = vmatprep.subr.mxu0 0.0
  %504 = vmatpush1.msra.mxu0 0.0
  %505 = vmatprep.subr.mxu0 0.0
  %506 = vmatpush1.msra.mxu0 0.0
  %507 = vmatprep.subr.mxu0 0.0
  %508 = vmatpush1.msra.mxu0 0.0
  %509 = vmatprep.subr.mxu0 0.0
  %510 = vmatpush1.msra.mxu0 0.0
  %511 = vmatprep.subr.mxu0 0.0
  %512 = vmatpush1.msra.mxu0 0.0
  %513 = vmatprep.subr.mxu0 0.0
  %514 = vmatpush1.msra.mxu0 0.0
  %515 = vmatprep.subr.mxu0 0.0
  %516 = vmatpush1.msra.mxu0 0.0
  %517 = vmatprep.subr.mxu0 0.0
  %518 = vmatpush1.msra.mxu0 0.0
  %519 = vmatprep.subr.mxu0 0.0
  %520 = vmatpush1.msra.mxu0 0.0
  %521 = vmatprep.subr.mxu0 0.0
  %522 = vmatpush1.msra.mxu0 0.0
  %523 = vmatprep.subr.mxu0 0.0
  %524 = vmatpush1.msra.mxu0 0.0
  %525 = vmatprep.subr.mxu0 0.0
  %526 = vmatpush1.msra.mxu0 0.0
  %527 = vmatprep.subr.mxu0 0.0
  %528 = vmatpush1.msra.mxu0 0.0
  %529 = vmatprep.subr.mxu0 0.0
  %530 = vmatpush1.msra.mxu0 0.0
  %531 = vmatprep.subr.mxu0 0.0
  %532 = vmatpush1.msra.mxu0 0.0
  %533 = vmatprep.subr.mxu0 0.0
  %534 = vmatpush1.msra.mxu0 0.0
  %535 = vmatprep.subr.mxu0 0.0
  %536 = vmatpush1.msra.mxu0 0.0
  %537 = vmatprep.subr.mxu0 0.0
  %538 = vmatpush1.msra.mxu0 0.0
  %539 = vmatprep.subr.mxu0 0.0
  %540 = vmatpush1.msra.mxu0 0.0
  %541 = vmatprep.subr.mxu0 0.0
  %542 = vmatpush1.msra.mxu0 0.0
  %543 = vmatprep.subr.mxu0 0.0
  %544 = vmatpush1.msra.mxu0 0.0
  %545 = vmatprep.subr.mxu0 0.0
  %546 = vmatpush1.msra.mxu0 0.0
  %547 = vmatprep.subr.mxu0 0.0
  %548 = vmatpush1.msra.mxu0 0.0
  %549 = vmatprep.subr.mxu0 0.0
  %550 = vmatpush1.msra.mxu0 0.0
  %551 = vmatprep.mubr.f32.mxu0 0.0
  %552 = vmatmul.mubr.f32.gmra.mrb[0].mxu0 %v485
  %v553 = vpop.f32.mrb[0].mxu0
  %v554 = vadd.f32 0.0, %v553
  %v555 = vpop.f32.mrb[0].mxu0
  %556 = vdwg.mxu0
  %557 = vmatprep.subr.mxu0 0.0
  %558 = vmatpush1.msra.mxu0 %v554
  %559 = vmatprep.subr.mxu0 0.0
  %560 = vmatpush1.msra.mxu0 0.0
  %561 = vmatprep.subr.mxu0 0.0
  %562 = vmatpush1.msra.mxu0 0.0
  %563 = vmatprep.subr.mxu0 0.0
  %564 = vmatpush1.msra.mxu0 0.0
  %565 = vmatprep.subr.mxu0 0.0
  %566 = vmatpush1.msra.mxu0 0.0
  %567 = vmatprep.subr.mxu0 0.0
  %568 = vmatpush1.msra.mxu0 0.0
  %569 = vmatprep.subr.mxu0 0.0
  %570 = vmatpush1.msra.mxu0 0.0
  %571 = vmatprep.subr.mxu0 0.0
  %572 = vmatpush1.msra.mxu0 0.0
  %573 = vmatprep.subr.mxu0 0.0
  %574 = vmatpush1.msra.mxu0 0.0
  %575 = vmatprep.subr.mxu0 0.0
  %576 = vmatpush1.msra.mxu0 0.0
  %577 = vmatprep.subr.mxu0 0.0
  %578 = vmatpush1.msra.mxu0 0.0
  %579 = vmatprep.subr.mxu0 0.0
  %580 = vmatpush1.msra.mxu0 0.0
  %581 = vmatprep.subr.mxu0 0.0
  %582 = vmatpush1.msra.mxu0 0.0
  %583 = vmatprep.subr.mxu0 0.0
  %584 = vmatpush1.msra.mxu0 0.0
  %585 = vmatprep.subr.mxu0 0.0
  %586 = vmatpush1.msra.mxu0 0.0
  %587 = vmatprep.subr.mxu0 0.0
  %588 = vmatpush1.msra.mxu0 0.0
  %589 = vmatprep.subr.mxu0 0.0
  %590 = vmatpush1.msra.mxu0 0.0
  %591 = vmatprep.subr.mxu0 0.0
  %592 = vmatpush1.msra.mxu0 0.0
  %593 = vmatprep.subr.mxu0 0.0
  %594 = vmatpush1.msra.mxu0 0.0
  %595 = vmatprep.subr.mxu0 0.0
  %596 = vmatpush1.msra.mxu0 0.0
  %597 = vmatprep.subr.mxu0 0.0
  %598 = vmatpush1.msra.mxu0 0.0
  %599 = vmatprep.subr.mxu0 0.0
  %600 = vmatpush1.msra.mxu0 0.0
  %601 = vmatprep.subr.mxu0 0.0
  %602 = vmatpush1.msra.mxu0 0.0
  %603 = vmatprep.subr.mxu0 0.0
  %604 = vmatpush1.msra.mxu0 0.0
  %605 = vmatprep.subr.mxu0 0.0
  %606 = vmatpush1.msra.mxu0 0.0
  %607 = vmatprep.subr.mxu0 0.0
  %608 = vmatpush1.msra.mxu0 0.0
  %609 = vmatprep.subr.mxu0 0.0
  %610 = vmatpush1.msra.mxu0 0.0
  %611 = vmatprep.subr.mxu0 0.0
  %612 = vmatpush1.msra.mxu0 0.0
  %613 = vmatprep.subr.mxu0 0.0
  %614 = vmatpush1.msra.mxu0 0.0
  %615 = vmatprep.subr.mxu0 0.0
  %616 = vmatpush1.msra.mxu0 0.0
  %617 = vmatprep.subr.mxu0 0.0
  %618 = vmatpush1.msra.mxu0 0.0
  %619 = vmatprep.subr.mxu0 0.0
  %620 = vmatpush1.msra.mxu0 0.0
  %621 = vmatprep.mubr.f32.mxu0 0.0
  %622 = vmatmul.mubr.f32.gmra.mrb[0].mxu0 %v93
  %v623 = vpop.f32.mrb[0].mxu0
  %v624 = vadd.f32 0.0, %v623
  %v625 = vpop.f32.mrb[0].mxu0
  %626 = vmatprep.mubr.f32.mxu0 0.0
  %627 = vmatmul.mubr.f32.gmra.mrb[0].mxu0 %v96
  %v628 = vpop.f32.mrb[0].mxu0
  %v629 = vadd.f32 0.0, %v628
  %v630 = vpop.f32.mrb[0].mxu0
  %631 = vdwg.mxu0
  %s632 = scalar_lea.vmem %s3, 48
  %633 = vst.msk [vmem:[%s632] sm:$0xff] %vm173, %v624
  %634 = vst.msk [vmem:[%s632 + $0x8] sm:$0xff] %vm173, %v629
  %s635 = scalar_lea.vmem %s0, 32
  %v636 = vld [vmem:[%s635] sm:$0xff]
  %v638 = vsel %vm18, %v636, 0
  %640 = vmatprep.subr.mxu0 0.0
  %641 = vmatpush1.msra.mxu0 %v16
  %642 = vmatprep.subr.mxu0 0.0
  %643 = vmatpush1.msra.mxu0 0.0
  %644 = vmatprep.subr.mxu0 0.0
  %645 = vmatpush1.msra.mxu0 0.0
  %646 = vmatprep.subr.mxu0 0.0
  %647 = vmatpush1.msra.mxu0 0.0
  %648 = vmatprep.subr.mxu0 0.0
  %649 = vmatpush1.msra.mxu0 0.0
  %650 = vmatprep.subr.mxu0 0.0
  %651 = vmatpush1.msra.mxu0 0.0
  %652 = vmatprep.subr.mxu0 0.0
  %653 = vmatpush1.msra.mxu0 0.0
  %654 = vmatprep.subr.mxu0 0.0
  %655 = vmatpush1.msra.mxu0 0.0
  %656 = vmatprep.subr.mxu0 0.0
  %657 = vmatpush1.msra.mxu0 0.0
  %658 = vmatprep.subr.mxu0 0.0
  %659 = vmatpush1.msra.mxu0 0.0
  %660 = vmatprep.subr.mxu0 0.0
  %661 = vmatpush1.msra.mxu0 0.0
  %662 = vmatprep.subr.mxu0 0.0
  %663 = vmatpush1.msra.mxu0 0.0
  %664 = vmatprep.subr.mxu0 0.0
  %665 = vmatpush1.msra.mxu0 0.0
  %666 = vmatprep.subr.mxu0 0.0
  %667 = vmatpush1.msra.mxu0 0.0
  %668 = vmatprep.subr.mxu0 0.0
  %669 = vmatpush1.msra.mxu0 0.0
  %670 = vmatprep.subr.mxu0 0.0
  %671 = vmatpush1.msra.mxu0 0.0
  %672 = vmatprep.subr.mxu0 0.0
  %673 = vmatpush1.msra.mxu0 0.0
  %674 = vmatprep.subr.mxu0 0.0
  %675 = vmatpush1.msra.mxu0 0.0
  %676 = vmatprep.subr.mxu0 0.0
  %677 = vmatpush1.msra.mxu0 0.0
  %678 = vmatprep.subr.mxu0 0.0
  %679 = vmatpush1.msra.mxu0 0.0
  %680 = vmatprep.subr.mxu0 0.0
  %681 = vmatpush1.msra.mxu0 0.0
  %682 = vmatprep.subr.mxu0 0.0
  %683 = vmatpush1.msra.mxu0 0.0
  %684 = vmatprep.subr.mxu0 0.0
  %685 = vmatpush1.msra.mxu0 0.0
  %686 = vmatprep.subr.mxu0 0.0
  %687 = vmatpush1.msra.mxu0 0.0
  %688 = vmatprep.subr.mxu0 0.0
  %689 = vmatpush1.msra.mxu0 0.0
  %690 = vmatprep.subr.mxu0 0.0
  %691 = vmatpush1.msra.mxu0 0.0
  %692 = vmatprep.subr.mxu0 0.0
  %693 = vmatpush1.msra.mxu0 0.0
  %694 = vmatprep.subr.mxu0 0.0
  %695 = vmatpush1.msra.mxu0 0.0
  %696 = vmatprep.subr.mxu0 0.0
  %697 = vmatpush1.msra.mxu0 0.0
  %698 = vmatprep.subr.mxu0 0.0
  %699 = vmatpush1.msra.mxu0 0.0
  %700 = vmatprep.subr.mxu0 0.0
  %701 = vmatpush1.msra.mxu0 0.0
  %702 = vmatprep.subr.mxu0 0.0
  %703 = vmatpush1.msra.mxu0 0.0
  %704 = vmatprep.mubr.f32.mxu0 0.0
  %705 = vmatmul.mubr.f32.gmra.mrb[0].mxu0 %v638
  %v706 = vpop.f32.mrb[0].mxu0
  %v707 = vadd.f32 0.0, %v706
  %v708 = vpop.f32.mrb[0].mxu0
  %709 = vdwg.mxu0
  %710 = vmatprep.subr.mxu0 0.0
  %711 = vmatpush1.msra.mxu0 %v707
  %712 = vmatprep.subr.mxu0 0.0
  %713 = vmatpush1.msra.mxu0 0.0
  %714 = vmatprep.subr.mxu0 0.0
  %715 = vmatpush1.msra.mxu0 0.0
  %716 = vmatprep.subr.mxu0 0.0
  %717 = vmatpush1.msra.mxu0 0.0
  %718 = vmatprep.subr.mxu0 0.0
  %719 = vmatpush1.msra.mxu0 0.0
  %720 = vmatprep.subr.mxu0 0.0
  %721 = vmatpush1.msra.mxu0 0.0
  %722 = vmatprep.subr.mxu0 0.0
  %723 = vmatpush1.msra.mxu0 0.0
  %724 = vmatprep.subr.mxu0 0.0
  %725 = vmatpush1.msra.mxu0 0.0
  %726 = vmatprep.subr.mxu0 0.0
  %727 = vmatpush1.msra.mxu0 0.0
  %728 = vmatprep.subr.mxu0 0.0
  %729 = vmatpush1.msra.mxu0 0.0
  %730 = vmatprep.subr.mxu0 0.0
  %731 = vmatpush1.msra.mxu0 0.0
  %732 = vmatprep.subr.mxu0 0.0
  %733 = vmatpush1.msra.mxu0 0.0
  %734 = vmatprep.subr.mxu0 0.0
  %735 = vmatpush1.msra.mxu0 0.0
  %736 = vmatprep.subr.mxu0 0.0
  %737 = vmatpush1.msra.mxu0 0.0
  %738 = vmatprep.subr.mxu0 0.0
  %739 = vmatpush1.msra.mxu0 0.0
  %740 = vmatprep.subr.mxu0 0.0
  %741 = vmatpush1.msra.mxu0 0.0
  %742 = vmatprep.subr.mxu0 0.0
  %743 = vmatpush1.msra.mxu0 0.0
  %744 = vmatprep.subr.mxu0 0.0
  %745 = vmatpush1.msra.mxu0 0.0
  %746 = vmatprep.subr.mxu0 0.0
  %747 = vmatpush1.msra.mxu0 0.0
  %748 = vmatprep.subr.mxu0 0.0
  %749 = vmatpush1.msra.mxu0 0.0
  %750 = vmatprep.subr.mxu0 0.0
  %751 = vmatpush1.msra.mxu0 0.0
  %752 = vmatprep.subr.mxu0 0.0
  %753 = vmatpush1.msra.mxu0 0.0
  %754 = vmatprep.subr.mxu0 0.0
  %755 = vmatpush1.msra.mxu0 0.0
  %756 = vmatprep.subr.mxu0 0.0
  %757 = vmatpush1.msra.mxu0 0.0
  %758 = vmatprep.subr.mxu0 0.0
  %759 = vmatpush1.msra.mxu0 0.0
  %760 = vmatprep.subr.mxu0 0.0
  %761 = vmatpush1.msra.mxu0 0.0
  %762 = vmatprep.subr.mxu0 0.0
  %763 = vmatpush1.msra.mxu0 0.0
  %764 = vmatprep.subr.mxu0 0.0
  %765 = vmatpush1.msra.mxu0 0.0
  %766 = vmatprep.subr.mxu0 0.0
  %767 = vmatpush1.msra.mxu0 0.0
  %768 = vmatprep.subr.mxu0 0.0
  %769 = vmatpush1.msra.mxu0 0.0
  %770 = vmatprep.subr.mxu0 0.0
  %771 = vmatpush1.msra.mxu0 0.0
  %772 = vmatprep.subr.mxu0 0.0
  %773 = vmatpush1.msra.mxu0 0.0
  %774 = vmatprep.mubr.f32.mxu0 0.0
  %775 = vmatmul.mubr.f32.gmra.mrb[0].mxu0 %v93
  %v776 = vpop.f32.mrb[0].mxu0
  %v777 = vadd.f32 0.0, %v776
  %v778 = vpop.f32.mrb[0].mxu0
  %779 = vmatprep.mubr.f32.mxu0 0.0
  %780 = vmatmul.mubr.f32.gmra.mrb[0].mxu0 %v96
  %v781 = vpop.f32.mrb[0].mxu0
  %v782 = vadd.f32 0.0, %v781
  %v783 = vpop.f32.mrb[0].mxu0
  %784 = vdwg.mxu0
  %s785 = scalar_lea.vmem %s3, 64
  %786 = vst.msk [vmem:[%s785] sm:$0xff] %vm173, %v777
  %787 = vst.msk [vmem:[%s785 + $0x8] sm:$0xff] %vm173, %v782
  %s788 = scalar_lea.vmem %s0, 40
  %v789 = vld [vmem:[%s788] sm:$0xff]
  %v791 = vsel %vm18, %v789, 0
  %793 = vmatprep.subr.mxu0 0.0
  %794 = vmatpush1.msra.mxu0 %v16
  %795 = vmatprep.subr.mxu0 0.0
  %796 = vmatpush1.msra.mxu0 0.0
  %797 = vmatprep.subr.mxu0 0.0
  %798 = vmatpush1.msra.mxu0 0.0
  %799 = vmatprep.subr.mxu0 0.0
  %800 = vmatpush1.msra.mxu0 0.0
  %801 = vmatprep.subr.mxu0 0.0
  %802 = vmatpush1.msra.mxu0 0.0
  %803 = vmatprep.subr.mxu0 0.0
  %804 = vmatpush1.msra.mxu0 0.0
  %805 = vmatprep.subr.mxu0 0.0
  %806 = vmatpush1.msra.mxu0 0.0
  %807 = vmatprep.subr.mxu0 0.0
  %808 = vmatpush1.msra.mxu0 0.0
  %809 = vmatprep.subr.mxu0 0.0
  %810 = vmatpush1.msra.mxu0 0.0
  %811 = vmatprep.subr.mxu0 0.0
  %812 = vmatpush1.msra.mxu0 0.0
  %813 = vmatprep.subr.mxu0 0.0
  %814 = vmatpush1.msra.mxu0 0.0
  %815 = vmatprep.subr.mxu0 0.0
  %816 = vmatpush1.msra.mxu0 0.0
  %817 = vmatprep.subr.mxu0 0.0
  %818 = vmatpush1.msra.mxu0 0.0
  %819 = vmatprep.subr.mxu0 0.0
  %820 = vmatpush1.msra.mxu0 0.0
  %821 = vmatprep.subr.mxu0 0.0
  %822 = vmatpush1.msra.mxu0 0.0
  %823 = vmatprep.subr.mxu0 0.0
  %824 = vmatpush1.msra.mxu0 0.0
  %825 = vmatprep.subr.mxu0 0.0
  %826 = vmatpush1.msra.mxu0 0.0
  %827 = vmatprep.subr.mxu0 0.0
  %828 = vmatpush1.msra.mxu0 0.0
  %829 = vmatprep.subr.mxu0 0.0
  %830 = vmatpush1.msra.mxu0 0.0
  %831 = vmatprep.subr.mxu0 0.0
  %832 = vmatpush1.msra.mxu0 0.0
  %833 = vmatprep.subr.mxu0 0.0
  %834 = vmatpush1.msra.mxu0 0.0
  %835 = vmatprep.subr.mxu0 0.0
  %836 = vmatpush1.msra.mxu0 0.0
  %837 = vmatprep.subr.mxu0 0.0
  %838 = vmatpush1.msra.mxu0 0.0
  %839 = vmatprep.subr.mxu0 0.0
  %840 = vmatpush1.msra.mxu0 0.0
  %841 = vmatprep.subr.mxu0 0.0
  %842 = vmatpush1.msra.mxu0 0.0
  %843 = vmatprep.subr.mxu0 0.0
  %844 = vmatpush1.msra.mxu0 0.0
  %845 = vmatprep.subr.mxu0 0.0
  %846 = vmatpush1.msra.mxu0 0.0
  %847 = vmatprep.subr.mxu0 0.0
  %848 = vmatpush1.msra.mxu0 0.0
  %849 = vmatprep.subr.mxu0 0.0
  %850 = vmatpush1.msra.mxu0 0.0
  %851 = vmatprep.subr.mxu0 0.0
  %852 = vmatpush1.msra.mxu0 0.0
  %853 = vmatprep.subr.mxu0 0.0
  %854 = vmatpush1.msra.mxu0 0.0
  %855 = vmatprep.subr.mxu0 0.0
  %856 = vmatpush1.msra.mxu0 0.0
  %857 = vmatprep.mubr.f32.mxu0 0.0
  %858 = vmatmul.mubr.f32.gmra.mrb[0].mxu0 %v791
  %v859 = vpop.f32.mrb[0].mxu0
  %v860 = vadd.f32 0.0, %v859
  %v861 = vpop.f32.mrb[0].mxu0
  %862 = vdwg.mxu0
  %863 = vmatprep.subr.mxu0 0.0
  %864 = vmatpush1.msra.mxu0 %v860
  %865 = vmatprep.subr.mxu0 0.0
  %866 = vmatpush1.msra.mxu0 0.0
  %867 = vmatprep.subr.mxu0 0.0
  %868 = vmatpush1.msra.mxu0 0.0
  %869 = vmatprep.subr.mxu0 0.0
  %870 = vmatpush1.msra.mxu0 0.0
  %871 = vmatprep.subr.mxu0 0.0
  %872 = vmatpush1.msra.mxu0 0.0
  %873 = vmatprep.subr.mxu0 0.0
  %874 = vmatpush1.msra.mxu0 0.0
  %875 = vmatprep.subr.mxu0 0.0
  %876 = vmatpush1.msra.mxu0 0.0
  %877 = vmatprep.subr.mxu0 0.0
  %878 = vmatpush1.msra.mxu0 0.0
  %879 = vmatprep.subr.mxu0 0.0
  %880 = vmatpush1.msra.mxu0 0.0
  %881 = vmatprep.subr.mxu0 0.0
  %882 = vmatpush1.msra.mxu0 0.0
  %883 = vmatprep.subr.mxu0 0.0
  %884 = vmatpush1.msra.mxu0 0.0
  %885 = vmatprep.subr.mxu0 0.0
  %886 = vmatpush1.msra.mxu0 0.0
  %887 = vmatprep.subr.mxu0 0.0
  %888 = vmatpush1.msra.mxu0 0.0
  %889 = vmatprep.subr.mxu0 0.0
  %890 = vmatpush1.msra.mxu0 0.0
  %891 = vmatprep.subr.mxu0 0.0
  %892 = vmatpush1.msra.mxu0 0.0
  %893 = vmatprep.subr.mxu0 0.0
  %894 = vmatpush1.msra.mxu0 0.0
  %895 = vmatprep.subr.mxu0 0.0
  %896 = vmatpush1.msra.mxu0 0.0
  %897 = vmatprep.subr.mxu0 0.0
  %898 = vmatpush1.msra.mxu0 0.0
  %899 = vmatprep.subr.mxu0 0.0
  %900 = vmatpush1.msra.mxu0 0.0
  %901 = vmatprep.subr.mxu0 0.0
  %902 = vmatpush1.msra.mxu0 0.0
  %903 = vmatprep.subr.mxu0 0.0
  %904 = vmatpush1.msra.mxu0 0.0
  %905 = vmatprep.subr.mxu0 0.0
  %906 = vmatpush1.msra.mxu0 0.0
  %907 = vmatprep.subr.mxu0 0.0
  %908 = vmatpush1.msra.mxu0 0.0
  %909 = vmatprep.subr.mxu0 0.0
  %910 = vmatpush1.msra.mxu0 0.0
  %911 = vmatprep.subr.mxu0 0.0
  %912 = vmatpush1.msra.mxu0 0.0
  %913 = vmatprep.subr.mxu0 0.0
  %914 = vmatpush1.msra.mxu0 0.0
  %915 = vmatprep.subr.mxu0 0.0
  %916 = vmatpush1.msra.mxu0 0.0
  %917 = vmatprep.subr.mxu0 0.0
  %918 = vmatpush1.msra.mxu0 0.0
  %919 = vmatprep.subr.mxu0 0.0
  %920 = vmatpush1.msra.mxu0 0.0
  %921 = vmatprep.subr.mxu0 0.0
  %922 = vmatpush1.msra.mxu0 0.0
  %923 = vmatprep.subr.mxu0 0.0
  %924 = vmatpush1.msra.mxu0 0.0
  %925 = vmatprep.subr.mxu0 0.0
  %926 = vmatpush1.msra.mxu0 0.0
  %927 = vmatprep.mubr.f32.mxu0 0.0
  %928 = vmatmul.mubr.f32.gmra.mrb[0].mxu0 %v93
  %v929 = vpop.f32.mrb[0].mxu0
  %v930 = vadd.f32 0.0, %v929
  %v931 = vpop.f32.mrb[0].mxu0
  %932 = vmatprep.mubr.f32.mxu0 0.0
  %933 = vmatmul.mubr.f32.gmra.mrb[0].mxu0 %v96
  %v934 = vpop.f32.mrb[0].mxu0
  %v935 = vadd.f32 0.0, %v934
  %v936 = vpop.f32.mrb[0].mxu0
  %937 = vdwg.mxu0
  %s938 = scalar_lea.vmem %s3, 80
  %939 = vst.msk [vmem:[%s938] sm:$0xff] %vm173, %v930
  %940 = vst.msk [vmem:[%s938 + $0x8] sm:$0xff] %vm173, %v935
  %s941 = scalar_lea.vmem %s0, 48
  %v942 = vld [vmem:[%s941] sm:$0xff]
  %v944 = vsel %vm18, %v942, 0
  %946 = vmatprep.subr.mxu0 0.0
  %947 = vmatpush1.msra.mxu0 %v16
  %948 = vmatprep.subr.mxu0 0.0
  %949 = vmatpush1.msra.mxu0 0.0
  %950 = vmatprep.subr.mxu0 0.0
  %951 = vmatpush1.msra.mxu0 0.0
  %952 = vmatprep.subr.mxu0 0.0
  %953 = vmatpush1.msra.mxu0 0.0
  %954 = vmatprep.subr.mxu0 0.0
  %955 = vmatpush1.msra.mxu0 0.0
  %956 = vmatprep.subr.mxu0 0.0
  %957 = vmatpush1.msra.mxu0 0.0
  %958 = vmatprep.subr.mxu0 0.0
  %959 = vmatpush1.msra.mxu0 0.0
  %960 = vmatprep.subr.mxu0 0.0
  %961 = vmatpush1.msra.mxu0 0.0
  %962 = vmatprep.subr.mxu0 0.0
  %963 = vmatpush1.msra.mxu0 0.0
  %964 = vmatprep.subr.mxu0 0.0
  %965 = vmatpush1.msra.mxu0 0.0
  %966 = vmatprep.subr.mxu0 0.0
  %967 = vmatpush1.msra.mxu0 0.0
  %968 = vmatprep.subr.mxu0 0.0
  %969 = vmatpush1.msra.mxu0 0.0
  %970 = vmatprep.subr.mxu0 0.0
  %971 = vmatpush1.msra.mxu0 0.0
  %972 = vmatprep.subr.mxu0 0.0
  %973 = vmatpush1.msra.mxu0 0.0
  %974 = vmatprep.subr.mxu0 0.0
  %975 = vmatpush1.msra.mxu0 0.0
  %976 = vmatprep.subr.mxu0 0.0
  %977 = vmatpush1.msra.mxu0 0.0
  %978 = vmatprep.subr.mxu0 0.0
  %979 = vmatpush1.msra.mxu0 0.0
  %980 = vmatprep.subr.mxu0 0.0
  %981 = vmatpush1.msra.mxu0 0.0
  %982 = vmatprep.subr.mxu0 0.0
  %983 = vmatpush1.msra.mxu0 0.0
  %984 = vmatprep.subr.mxu0 0.0
  %985 = vmatpush1.msra.mxu0 0.0
  %986 = vmatprep.subr.mxu0 0.0
  %987 = vmatpush1.msra.mxu0 0.0
  %988 = vmatprep.subr.mxu0 0.0
  %989 = vmatpush1.msra.mxu0 0.0
  %990 = vmatprep.subr.mxu0 0.0
  %991 = vmatpush1.msra.mxu0 0.0
  %992 = vmatprep.subr.mxu0 0.0
  %993 = vmatpush1.msra.mxu0 0.0
  %994 = vmatprep.subr.mxu0 0.0
  %995 = vmatpush1.msra.mxu0 0.0
  %996 = vmatprep.subr.mxu0 0.0
  %997 = vmatpush1.msra.mxu0 0.0
  %998 = vmatprep.subr.mxu0 0.0
  %999 = vmatpush1.msra.mxu0 0.0
  %1000 = vmatprep.subr.mxu0 0.0
  %1001 = vmatpush1.msra.mxu0 0.0
  %1002 = vmatprep.subr.mxu0 0.0
  %1003 = vmatpush1.msra.mxu0 0.0
  %1004 = vmatprep.subr.mxu0 0.0
  %1005 = vmatpush1.msra.mxu0 0.0
  %1006 = vmatprep.subr.mxu0 0.0
  %1007 = vmatpush1.msra.mxu0 0.0
  %1008 = vmatprep.subr.mxu0 0.0
  %1009 = vmatpush1.msra.mxu0 0.0
  %1010 = vmatprep.mubr.f32.mxu0 0.0
  %1011 = vmatmul.mubr.f32.gmra.mrb[0].mxu0 %v944
  %v1012 = vpop.f32.mrb[0].mxu0
  %v1013 = vadd.f32 0.0, %v1012
  %v1014 = vpop.f32.mrb[0].mxu0
  %1015 = vdwg.mxu0
  %1016 = vmatprep.subr.mxu0 0.0
  %1017 = vmatpush1.msra.mxu0 %v1013
  %1018 = vmatprep.subr.mxu0 0.0
  %1019 = vmatpush1.msra.mxu0 0.0
  %1020 = vmatprep.subr.mxu0 0.0
  %1021 = vmatpush1.msra.mxu0 0.0
  %1022 = vmatprep.subr.mxu0 0.0
  %1023 = vmatpush1.msra.mxu0 0.0
  %1024 = vmatprep.subr.mxu0 0.0
  %1025 = vmatpush1.msra.mxu0 0.0
  %1026 = vmatprep.subr.mxu0 0.0
  %1027 = vmatpush1.msra.mxu0 0.0
  %1028 = vmatprep.subr.mxu0 0.0
  %1029 = vmatpush1.msra.mxu0 0.0
  %1030 = vmatprep.subr.mxu0 0.0
  %1031 = vmatpush1.msra.mxu0 0.0
  %1032 = vmatprep.subr.mxu0 0.0
  %1033 = vmatpush1.msra.mxu0 0.0
  %1034 = vmatprep.subr.mxu0 0.0
  %1035 = vmatpush1.msra.mxu0 0.0
  %1036 = vmatprep.subr.mxu0 0.0
  %1037 = vmatpush1.msra.mxu0 0.0
  %1038 = vmatprep.subr.mxu0 0.0
  %1039 = vmatpush1.msra.mxu0 0.0
  %1040 = vmatprep.subr.mxu0 0.0
  %1041 = vmatpush1.msra.mxu0 0.0
  %1042 = vmatprep.subr.mxu0 0.0
  %1043 = vmatpush1.msra.mxu0 0.0
  %1044 = vmatprep.subr.mxu0 0.0
  %1045 = vmatpush1.msra.mxu0 0.0
  %1046 = vmatprep.subr.mxu0 0.0
  %1047 = vmatpush1.msra.mxu0 0.0
  %1048 = vmatprep.subr.mxu0 0.0
  %1049 = vmatpush1.msra.mxu0 0.0
  %1050 = vmatprep.subr.mxu0 0.0
  %1051 = vmatpush1.msra.mxu0 0.0
  %1052 = vmatprep.subr.mxu0 0.0
  %1053 = vmatpush1.msra.mxu0 0.0
  %1054 = vmatprep.subr.mxu0 0.0
  %1055 = vmatpush1.msra.mxu0 0.0
  %1056 = vmatprep.subr.mxu0 0.0
  %1057 = vmatpush1.msra.mxu0 0.0
  %1058 = vmatprep.subr.mxu0 0.0
  %1059 = vmatpush1.msra.mxu0 0.0
  %1060 = vmatprep.subr.mxu0 0.0
  %1061 = vmatpush1.msra.mxu0 0.0
  %1062 = vmatprep.subr.mxu0 0.0
  %1063 = vmatpush1.msra.mxu0 0.0
  %1064 = vmatprep.subr.mxu0 0.0
  %1065 = vmatpush1.msra.mxu0 0.0
  %1066 = vmatprep.subr.mxu0 0.0
  %1067 = vmatpush1.msra.mxu0 0.0
  %1068 = vmatprep.subr.mxu0 0.0
  %1069 = vmatpush1.msra.mxu0 0.0
  %1070 = vmatprep.subr.mxu0 0.0
  %1071 = vmatpush1.msra.mxu0 0.0
  %1072 = vmatprep.subr.mxu0 0.0
  %1073 = vmatpush1.msra.mxu0 0.0
  %1074 = vmatprep.subr.mxu0 0.0
  %1075 = vmatpush1.msra.mxu0 0.0
  %1076 = vmatprep.subr.mxu0 0.0
  %1077 = vmatpush1.msra.mxu0 0.0
  %1078 = vmatprep.subr.mxu0 0.0
  %1079 = vmatpush1.msra.mxu0 0.0
  %1080 = vmatprep.mubr.f32.mxu0 0.0
  %1081 = vmatmul.mubr.f32.gmra.mrb[0].mxu0 %v93
  %v1082 = vpop.f32.mrb[0].mxu0
  %v1083 = vadd.f32 0.0, %v1082
  %v1084 = vpop.f32.mrb[0].mxu0
  %1085 = vmatprep.mubr.f32.mxu0 0.0
  %1086 = vmatmul.mubr.f32.gmra.mrb[0].mxu0 %v96
  %v1087 = vpop.f32.mrb[0].mxu0
  %v1088 = vadd.f32 0.0, %v1087
  %v1089 = vpop.f32.mrb[0].mxu0
  %1090 = vdwg.mxu0
  %s1091 = scalar_lea.vmem %s3, 96
  %1092 = vst.msk [vmem:[%s1091] sm:$0xff] %vm173, %v1083
  %1093 = vst.msk [vmem:[%s1091 + $0x8] sm:$0xff] %vm173, %v1088
  %s1094 = scalar_lea.vmem %s0, 56
  %v1095 = vld [vmem:[%s1094] sm:$0xff]
  %v1097 = vsel %vm18, %v1095, 0
  %1099 = vmatprep.subr.mxu0 0.0
  %1100 = vmatpush1.msra.mxu0 %v16
  %1101 = vmatprep.subr.mxu0 0.0
  %1102 = vmatpush1.msra.mxu0 0.0
  %1103 = vmatprep.subr.mxu0 0.0
  %1104 = vmatpush1.msra.mxu0 0.0
  %1105 = vmatprep.subr.mxu0 0.0
  %1106 = vmatpush1.msra.mxu0 0.0
  %1107 = vmatprep.subr.mxu0 0.0
  %1108 = vmatpush1.msra.mxu0 0.0
  %1109 = vmatprep.subr.mxu0 0.0
  %1110 = vmatpush1.msra.mxu0 0.0
  %1111 = vmatprep.subr.mxu0 0.0
  %1112 = vmatpush1.msra.mxu0 0.0
  %1113 = vmatprep.subr.mxu0 0.0
  %1114 = vmatpush1.msra.mxu0 0.0
  %1115 = vmatprep.subr.mxu0 0.0
  %1116 = vmatpush1.msra.mxu0 0.0
  %1117 = vmatprep.subr.mxu0 0.0
  %1118 = vmatpush1.msra.mxu0 0.0
  %1119 = vmatprep.subr.mxu0 0.0
  %1120 = vmatpush1.msra.mxu0 0.0
  %1121 = vmatprep.subr.mxu0 0.0
  %1122 = vmatpush1.msra.mxu0 0.0
  %1123 = vmatprep.subr.mxu0 0.0
  %1124 = vmatpush1.msra.mxu0 0.0
  %1125 = vmatprep.subr.mxu0 0.0
  %1126 = vmatpush1.msra.mxu0 0.0
  %1127 = vmatprep.subr.mxu0 0.0
  %1128 = vmatpush1.msra.mxu0 0.0
  %1129 = vmatprep.subr.mxu0 0.0
  %1130 = vmatpush1.msra.mxu0 0.0
  %1131 = vmatprep.subr.mxu0 0.0
  %1132 = vmatpush1.msra.mxu0 0.0
  %1133 = vmatprep.subr.mxu0 0.0
  %1134 = vmatpush1.msra.mxu0 0.0
  %1135 = vmatprep.subr.mxu0 0.0
  %1136 = vmatpush1.msra.mxu0 0.0
  %1137 = vmatprep.subr.mxu0 0.0
  %1138 = vmatpush1.msra.mxu0 0.0
  %1139 = vmatprep.subr.mxu0 0.0
  %1140 = vmatpush1.msra.mxu0 0.0
  %1141 = vmatprep.subr.mxu0 0.0
  %1142 = vmatpush1.msra.mxu0 0.0
  %1143 = vmatprep.subr.mxu0 0.0
  %1144 = vmatpush1.msra.mxu0 0.0
  %1145 = vmatprep.subr.mxu0 0.0
  %1146 = vmatpush1.msra.mxu0 0.0
  %1147 = vmatprep.subr.mxu0 0.0
  %1148 = vmatpush1.msra.mxu0 0.0
  %1149 = vmatprep.subr.mxu0 0.0
  %1150 = vmatpush1.msra.mxu0 0.0
  %1151 = vmatprep.subr.mxu0 0.0
  %1152 = vmatpush1.msra.mxu0 0.0
  %1153 = vmatprep.subr.mxu0 0.0
  %1154 = vmatpush1.msra.mxu0 0.0
  %1155 = vmatprep.subr.mxu0 0.0
  %1156 = vmatpush1.msra.mxu0 0.0
  %1157 = vmatprep.subr.mxu0 0.0
  %1158 = vmatpush1.msra.mxu0 0.0
  %1159 = vmatprep.subr.mxu0 0.0
  %1160 = vmatpush1.msra.mxu0 0.0
  %1161 = vmatprep.subr.mxu0 0.0
  %1162 = vmatpush1.msra.mxu0 0.0
  %1163 = vmatprep.mubr.f32.mxu0 0.0
  %1164 = vmatmul.mubr.f32.gmra.mrb[0].mxu0 %v1097
  %v1165 = vpop.f32.mrb[0].mxu0
  %v1166 = vadd.f32 0.0, %v1165
  %v1167 = vpop.f32.mrb[0].mxu0
  %1168 = vdwg.mxu0
  %1169 = vmatprep.subr.mxu0 0.0
  %1170 = vmatpush1.msra.mxu0 %v1166
  %1171 = vmatprep.subr.mxu0 0.0
  %1172 = vmatpush1.msra.mxu0 0.0
  %1173 = vmatprep.subr.mxu0 0.0
  %1174 = vmatpush1.msra.mxu0 0.0
  %1175 = vmatprep.subr.mxu0 0.0
  %1176 = vmatpush1.msra.mxu0 0.0
  %1177 = vmatprep.subr.mxu0 0.0
  %1178 = vmatpush1.msra.mxu0 0.0
  %1179 = vmatprep.subr.mxu0 0.0
  %1180 = vmatpush1.msra.mxu0 0.0
  %1181 = vmatprep.subr.mxu0 0.0
  %1182 = vmatpush1.msra.mxu0 0.0
  %1183 = vmatprep.subr.mxu0 0.0
  %1184 = vmatpush1.msra.mxu0 0.0
  %1185 = vmatprep.subr.mxu0 0.0
  %1186 = vmatpush1.msra.mxu0 0.0
  %1187 = vmatprep.subr.mxu0 0.0
  %1188 = vmatpush1.msra.mxu0 0.0
  %1189 = vmatprep.subr.mxu0 0.0
  %1190 = vmatpush1.msra.mxu0 0.0
  %1191 = vmatprep.subr.mxu0 0.0
  %1192 = vmatpush1.msra.mxu0 0.0
  %1193 = vmatprep.subr.mxu0 0.0
  %1194 = vmatpush1.msra.mxu0 0.0
  %1195 = vmatprep.subr.mxu0 0.0
  %1196 = vmatpush1.msra.mxu0 0.0
  %1197 = vmatprep.subr.mxu0 0.0
  %1198 = vmatpush1.msra.mxu0 0.0
  %1199 = vmatprep.subr.mxu0 0.0
  %1200 = vmatpush1.msra.mxu0 0.0
  %1201 = vmatprep.subr.mxu0 0.0
  %1202 = vmatpush1.msra.mxu0 0.0
  %1203 = vmatprep.subr.mxu0 0.0
  %1204 = vmatpush1.msra.mxu0 0.0
  %1205 = vmatprep.subr.mxu0 0.0
  %1206 = vmatpush1.msra.mxu0 0.0
  %1207 = vmatprep.subr.mxu0 0.0
  %1208 = vmatpush1.msra.mxu0 0.0
  %1209 = vmatprep.subr.mxu0 0.0
  %1210 = vmatpush1.msra.mxu0 0.0
  %1211 = vmatprep.subr.mxu0 0.0
  %1212 = vmatpush1.msra.mxu0 0.0
  %1213 = vmatprep.subr.mxu0 0.0
  %1214 = vmatpush1.msra.mxu0 0.0
  %1215 = vmatprep.subr.mxu0 0.0
  %1216 = vmatpush1.msra.mxu0 0.0
  %1217 = vmatprep.subr.mxu0 0.0
  %1218 = vmatpush1.msra.mxu0 0.0
  %1219 = vmatprep.subr.mxu0 0.0
  %1220 = vmatpush1.msra.mxu0 0.0
  %1221 = vmatprep.subr.mxu0 0.0
  %1222 = vmatpush1.msra.mxu0 0.0
  %1223 = vmatprep.subr.mxu0 0.0
  %1224 = vmatpush1.msra.mxu0 0.0
  %1225 = vmatprep.subr.mxu0 0.0
  %1226 = vmatpush1.msra.mxu0 0.0
  %1227 = vmatprep.subr.mxu0 0.0
  %1228 = vmatpush1.msra.mxu0 0.0
  %1229 = vmatprep.subr.mxu0 0.0
  %1230 = vmatpush1.msra.mxu0 0.0
  %1231 = vmatprep.subr.mxu0 0.0
  %1232 = vmatpush1.msra.mxu0 0.0
  %1233 = vmatprep.mubr.f32.mxu0 0.0
  %1234 = vmatmul.mubr.f32.gmra.mrb[0].mxu0 %v93
  %v1235 = vpop.f32.mrb[0].mxu0
  %v1236 = vadd.f32 0.0, %v1235
  %v1237 = vpop.f32.mrb[0].mxu0
  %1238 = vmatprep.mubr.f32.mxu0 0.0
  %1239 = vmatmul.mubr.f32.gmra.mrb[0].mxu0 %v96
  %v1240 = vpop.f32.mrb[0].mxu0
  %v1241 = vadd.f32 0.0, %v1240
  %v1242 = vpop.f32.mrb[0].mxu0
  %1243 = vdwg.mxu0
  %s1244 = scalar_lea.vmem %s3, 112
  %1245 = vst.msk [vmem:[%s1244] sm:$0xff] %vm173, %v1236
  %1246 = vst.msk [vmem:[%s1244 + $0x8] sm:$0xff] %vm173, %v1241
  %s1247 = scalar_lea.vmem %s0, 64
  %v1248 = vld [vmem:[%s1247] sm:$0xff]
  %v1250 = vsel %vm18, %v1248, 0
  %1252 = vmatprep.subr.mxu0 0.0
  %1253 = vmatpush1.msra.mxu0 %v16
  %1254 = vmatprep.subr.mxu0 0.0
  %1255 = vmatpush1.msra.mxu0 0.0
  %1256 = vmatprep.subr.mxu0 0.0
  %1257 = vmatpush1.msra.mxu0 0.0
  %1258 = vmatprep.subr.mxu0 0.0
  %1259 = vmatpush1.msra.mxu0 0.0
  %1260 = vmatprep.subr.mxu0 0.0
  %1261 = vmatpush1.msra.mxu0 0.0
  %1262 = vmatprep.subr.mxu0 0.0
  %1263 = vmatpush1.msra.mxu0 0.0
  %1264 = vmatprep.subr.mxu0 0.0
  %1265 = vmatpush1.msra.mxu0 0.0
  %1266 = vmatprep.subr.mxu0 0.0
  %1267 = vmatpush1.msra.mxu0 0.0
  %1268 = vmatprep.subr.mxu0 0.0
  %1269 = vmatpush1.msra.mxu0 0.0
  %1270 = vmatprep.subr.mxu0 0.0
  %1271 = vmatpush1.msra.mxu0 0.0
  %1272 = vmatprep.subr.mxu0 0.0
  %1273 = vmatpush1.msra.mxu0 0.0
  %1274 = vmatprep.subr.mxu0 0.0
  %1275 = vmatpush1.msra.mxu0 0.0
  %1276 = vmatprep.subr.mxu0 0.0
  %1277 = vmatpush1.msra.mxu0 0.0
  %1278 = vmatprep.subr.mxu0 0.0
  %1279 = vmatpush1.msra.mxu0 0.0
  %1280 = vmatprep.subr.mxu0 0.0
  %1281 = vmatpush1.msra.mxu0 0.0
  %1282 = vmatprep.subr.mxu0 0.0
  %1283 = vmatpush1.msra.mxu0 0.0
  %1284 = vmatprep.subr.mxu0 0.0
  %1285 = vmatpush1.msra.mxu0 0.0
  %1286 = vmatprep.subr.mxu0 0.0
  %1287 = vmatpush1.msra.mxu0 0.0
  %1288 = vmatprep.subr.mxu0 0.0
  %1289 = vmatpush1.msra.mxu0 0.0
  %1290 = vmatprep.subr.mxu0 0.0
  %1291 = vmatpush1.msra.mxu0 0.0
  %1292 = vmatprep.subr.mxu0 0.0
  %1293 = vmatpush1.msra.mxu0 0.0
  %1294 = vmatprep.subr.mxu0 0.0
  %1295 = vmatpush1.msra.mxu0 0.0
  %1296 = vmatprep.subr.mxu0 0.0
  %1297 = vmatpush1.msra.mxu0 0.0
  %1298 = vmatprep.subr.mxu0 0.0
  %1299 = vmatpush1.msra.mxu0 0.0
  %1300 = vmatprep.subr.mxu0 0.0
  %1301 = vmatpush1.msra.mxu0 0.0
  %1302 = vmatprep.subr.mxu0 0.0
  %1303 = vmatpush1.msra.mxu0 0.0
  %1304 = vmatprep.subr.mxu0 0.0
  %1305 = vmatpush1.msra.mxu0 0.0
  %1306 = vmatprep.subr.mxu0 0.0
  %1307 = vmatpush1.msra.mxu0 0.0
  %1308 = vmatprep.subr.mxu0 0.0
  %1309 = vmatpush1.msra.mxu0 0.0
  %1310 = vmatprep.subr.mxu0 0.0
  %1311 = vmatpush1.msra.mxu0 0.0
  %1312 = vmatprep.subr.mxu0 0.0
  %1313 = vmatpush1.msra.mxu0 0.0
  %1314 = vmatprep.subr.mxu0 0.0
  %1315 = vmatpush1.msra.mxu0 0.0
  %1316 = vmatprep.mubr.f32.mxu0 0.0
  %1317 = vmatmul.mubr.f32.gmra.mrb[0].mxu0 %v1250
  %v1318 = vpop.f32.mrb[0].mxu0
  %v1319 = vadd.f32 0.0, %v1318
  %v1320 = vpop.f32.mrb[0].mxu0
  %1321 = vdwg.mxu0
  %1322 = vmatprep.subr.mxu0 0.0
  %1323 = vmatpush1.msra.mxu0 %v1319
  %1324 = vmatprep.subr.mxu0 0.0
  %1325 = vmatpush1.msra.mxu0 0.0
  %1326 = vmatprep.subr.mxu0 0.0
  %1327 = vmatpush1.msra.mxu0 0.0
  %1328 = vmatprep.subr.mxu0 0.0
  %1329 = vmatpush1.msra.mxu0 0.0
  %1330 = vmatprep.subr.mxu0 0.0
  %1331 = vmatpush1.msra.mxu0 0.0
  %1332 = vmatprep.subr.mxu0 0.0
  %1333 = vmatpush1.msra.mxu0 0.0
  %1334 = vmatprep.subr.mxu0 0.0
  %1335 = vmatpush1.msra.mxu0 0.0
  %1336 = vmatprep.subr.mxu0 0.0
  %1337 = vmatpush1.msra.mxu0 0.0
  %1338 = vmatprep.subr.mxu0 0.0
  %1339 = vmatpush1.msra.mxu0 0.0
  %1340 = vmatprep.subr.mxu0 0.0
  %1341 = vmatpush1.msra.mxu0 0.0
  %1342 = vmatprep.subr.mxu0 0.0
  %1343 = vmatpush1.msra.mxu0 0.0
  %1344 = vmatprep.subr.mxu0 0.0
  %1345 = vmatpush1.msra.mxu0 0.0
  %1346 = vmatprep.subr.mxu0 0.0
  %1347 = vmatpush1.msra.mxu0 0.0
  %1348 = vmatprep.subr.mxu0 0.0
  %1349 = vmatpush1.msra.mxu0 0.0
  %1350 = vmatprep.subr.mxu0 0.0
  %1351 = vmatpush1.msra.mxu0 0.0
  %1352 = vmatprep.subr.mxu0 0.0
  %1353 = vmatpush1.msra.mxu0 0.0
  %1354 = vmatprep.subr.mxu0 0.0
  %1355 = vmatpush1.msra.mxu0 0.0
  %1356 = vmatprep.subr.mxu0 0.0
  %1357 = vmatpush1.msra.mxu0 0.0
  %1358 = vmatprep.subr.mxu0 0.0
  %1359 = vmatpush1.msra.mxu0 0.0
  %1360 = vmatprep.subr.mxu0 0.0
  %1361 = vmatpush1.msra.mxu0 0.0
  %1362 = vmatprep.subr.mxu0 0.0
  %1363 = vmatpush1.msra.mxu0 0.0
  %1364 = vmatprep.subr.mxu0 0.0
  %1365 = vmatpush1.msra.mxu0 0.0
  %1366 = vmatprep.subr.mxu0 0.0
  %1367 = vmatpush1.msra.mxu0 0.0
  %1368 = vmatprep.subr.mxu0 0.0
  %1369 = vmatpush1.msra.mxu0 0.0
  %1370 = vmatprep.subr.mxu0 0.0
  %1371 = vmatpush1.msra.mxu0 0.0
  %1372 = vmatprep.subr.mxu0 0.0
  %1373 = vmatpush1.msra.mxu0 0.0
  %1374 = vmatprep.subr.mxu0 0.0
  %1375 = vmatpush1.msra.mxu0 0.0
  %1376 = vmatprep.subr.mxu0 0.0
  %1377 = vmatpush1.msra.mxu0 0.0
  %1378 = vmatprep.subr.mxu0 0.0
  %1379 = vmatpush1.msra.mxu0 0.0
  %1380 = vmatprep.subr.mxu0 0.0
  %1381 = vmatpush1.msra.mxu0 0.0
  %1382 = vmatprep.subr.mxu0 0.0
  %1383 = vmatpush1.msra.mxu0 0.0
  %1384 = vmatprep.subr.mxu0 0.0
  %1385 = vmatpush1.msra.mxu0 0.0
  %1386 = vmatprep.mubr.f32.mxu0 0.0
  %1387 = vmatmul.mubr.f32.gmra.mrb[0].mxu0 %v93
  %v1388 = vpop.f32.mrb[0].mxu0
  %v1389 = vadd.f32 0.0, %v1388
  %v1390 = vpop.f32.mrb[0].mxu0
  %1391 = vmatprep.mubr.f32.mxu0 0.0
  %1392 = vmatmul.mubr.f32.gmra.mrb[0].mxu0 %v96
  %v1393 = vpop.f32.mrb[0].mxu0
  %v1394 = vadd.f32 0.0, %v1393
  %v1395 = vpop.f32.mrb[0].mxu0
  %1396 = vdwg.mxu0
  %s1397 = scalar_lea.vmem %s3, 128
  %1398 = vst.msk [vmem:[%s1397] sm:$0xff] %vm173, %v1389
  %1399 = vst.msk [vmem:[%s1397 + $0x8] sm:$0xff] %vm173, %v1394
  %s1400 = scalar_lea.vmem %s0, 72
  %v1401 = vld [vmem:[%s1400] sm:$0xff]
  %v1403 = vsel %vm18, %v1401, 0
  %1405 = vmatprep.subr.mxu0 0.0
  %1406 = vmatpush1.msra.mxu0 %v16
  %1407 = vmatprep.subr.mxu0 0.0
  %1408 = vmatpush1.msra.mxu0 0.0
  %1409 = vmatprep.subr.mxu0 0.0
  %1410 = vmatpush1.msra.mxu0 0.0
  %1411 = vmatprep.subr.mxu0 0.0
  %1412 = vmatpush1.msra.mxu0 0.0
  %1413 = vmatprep.subr.mxu0 0.0
  %1414 = vmatpush1.msra.mxu0 0.0
  %1415 = vmatprep.subr.mxu0 0.0
  %1416 = vmatpush1.msra.mxu0 0.0
  %1417 = vmatprep.subr.mxu0 0.0
  %1418 = vmatpush1.msra.mxu0 0.0
  %1419 = vmatprep.subr.mxu0 0.0
  %1420 = vmatpush1.msra.mxu0 0.0
  %1421 = vmatprep.subr.mxu0 0.0
  %1422 = vmatpush1.msra.mxu0 0.0
  %1423 = vmatprep.subr.mxu0 0.0
  %1424 = vmatpush1.msra.mxu0 0.0
  %1425 = vmatprep.subr.mxu0 0.0
  %1426 = vmatpush1.msra.mxu0 0.0
  %1427 = vmatprep.subr.mxu0 0.0
  %1428 = vmatpush1.msra.mxu0 0.0
  %1429 = vmatprep.subr.mxu0 0.0
  %1430 = vmatpush1.msra.mxu0 0.0
  %1431 = vmatprep.subr.mxu0 0.0
  %1432 = vmatpush1.msra.mxu0 0.0
  %1433 = vmatprep.subr.mxu0 0.0
  %1434 = vmatpush1.msra.mxu0 0.0
  %1435 = vmatprep.subr.mxu0 0.0
  %1436 = vmatpush1.msra.mxu0 0.0
  %1437 = vmatprep.subr.mxu0 0.0
  %1438 = vmatpush1.msra.mxu0 0.0
  %1439 = vmatprep.subr.mxu0 0.0
  %1440 = vmatpush1.msra.mxu0 0.0
  %1441 = vmatprep.subr.mxu0 0.0
  %1442 = vmatpush1.msra.mxu0 0.0
  %1443 = vmatprep.subr.mxu0 0.0
  %1444 = vmatpush1.msra.mxu0 0.0
  %1445 = vmatprep.subr.mxu0 0.0
  %1446 = vmatpush1.msra.mxu0 0.0
  %1447 = vmatprep.subr.mxu0 0.0
  %1448 = vmatpush1.msra.mxu0 0.0
  %1449 = vmatprep.subr.mxu0 0.0
  %1450 = vmatpush1.msra.mxu0 0.0
  %1451 = vmatprep.subr.mxu0 0.0
  %1452 = vmatpush1.msra.mxu0 0.0
  %1453 = vmatprep.subr.mxu0 0.0
  %1454 = vmatpush1.msra.mxu0 0.0
  %1455 = vmatprep.subr.mxu0 0.0
  %1456 = vmatpush1.msra.mxu0 0.0
  %1457 = vmatprep.subr.mxu0 0.0
  %1458 = vmatpush1.msra.mxu0 0.0
  %1459 = vmatprep.subr.mxu0 0.0
  %1460 = vmatpush1.msra.mxu0 0.0
  %1461 = vmatprep.subr.mxu0 0.0
  %1462 = vmatpush1.msra.mxu0 0.0
  %1463 = vmatprep.subr.mxu0 0.0
  %1464 = vmatpush1.msra.mxu0 0.0
  %1465 = vmatprep.subr.mxu0 0.0
  %1466 = vmatpush1.msra.mxu0 0.0
  %1467 = vmatprep.subr.mxu0 0.0
  %1468 = vmatpush1.msra.mxu0 0.0
  %1469 = vmatprep.mubr.f32.mxu0 0.0
  %1470 = vmatmul.mubr.f32.gmra.mrb[0].mxu0 %v1403
  %v1471 = vpop.f32.mrb[0].mxu0
  %v1472 = vadd.f32 0.0, %v1471
  %v1473 = vpop.f32.mrb[0].mxu0
  %1474 = vdwg.mxu0
  %1475 = vmatprep.subr.mxu0 0.0
  %1476 = vmatpush1.msra.mxu0 %v1472
  %1477 = vmatprep.subr.mxu0 0.0
  %1478 = vmatpush1.msra.mxu0 0.0
  %1479 = vmatprep.subr.mxu0 0.0
  %1480 = vmatpush1.msra.mxu0 0.0
  %1481 = vmatprep.subr.mxu0 0.0
  %1482 = vmatpush1.msra.mxu0 0.0
  %1483 = vmatprep.subr.mxu0 0.0
  %1484 = vmatpush1.msra.mxu0 0.0
  %1485 = vmatprep.subr.mxu0 0.0
  %1486 = vmatpush1.msra.mxu0 0.0
  %1487 = vmatprep.subr.mxu0 0.0
  %1488 = vmatpush1.msra.mxu0 0.0
  %1489 = vmatprep.subr.mxu0 0.0
  %1490 = vmatpush1.msra.mxu0 0.0
  %1491 = vmatprep.subr.mxu0 0.0
  %1492 = vmatpush1.msra.mxu0 0.0
  %1493 = vmatprep.subr.mxu0 0.0
  %1494 = vmatpush1.msra.mxu0 0.0
  %1495 = vmatprep.subr.mxu0 0.0
  %1496 = vmatpush1.msra.mxu0 0.0
  %1497 = vmatprep.subr.mxu0 0.0
  %1498 = vmatpush1.msra.mxu0 0.0
  %1499 = vmatprep.subr.mxu0 0.0
  %1500 = vmatpush1.msra.mxu0 0.0
  %1501 = vmatprep.subr.mxu0 0.0
  %1502 = vmatpush1.msra.mxu0 0.0
  %1503 = vmatprep.subr.mxu0 0.0
  %1504 = vmatpush1.msra.mxu0 0.0
  %1505 = vmatprep.subr.mxu0 0.0
  %1506 = vmatpush1.msra.mxu0 0.0
  %1507 = vmatprep.subr.mxu0 0.0
  %1508 = vmatpush1.msra.mxu0 0.0
  %1509 = vmatprep.subr.mxu0 0.0
  %1510 = vmatpush1.msra.mxu0 0.0
  %1511 = vmatprep.subr.mxu0 0.0
  %1512 = vmatpush1.msra.mxu0 0.0
  %1513 = vmatprep.subr.mxu0 0.0
  %1514 = vmatpush1.msra.mxu0 0.0
  %1515 = vmatprep.subr.mxu0 0.0
  %1516 = vmatpush1.msra.mxu0 0.0
  %1517 = vmatprep.subr.mxu0 0.0
  %1518 = vmatpush1.msra.mxu0 0.0
  %1519 = vmatprep.subr.mxu0 0.0
  %1520 = vmatpush1.msra.mxu0 0.0
  %1521 = vmatprep.subr.mxu0 0.0
  %1522 = vmatpush1.msra.mxu0 0.0
  %1523 = vmatprep.subr.mxu0 0.0
  %1524 = vmatpush1.msra.mxu0 0.0
  %1525 = vmatprep.subr.mxu0 0.0
  %1526 = vmatpush1.msra.mxu0 0.0
  %1527 = vmatprep.subr.mxu0 0.0
  %1528 = vmatpush1.msra.mxu0 0.0
  %1529 = vmatprep.subr.mxu0 0.0
  %1530 = vmatpush1.msra.mxu0 0.0
  %1531 = vmatprep.subr.mxu0 0.0
  %1532 = vmatpush1.msra.mxu0 0.0
  %1533 = vmatprep.subr.mxu0 0.0
  %1534 = vmatpush1.msra.mxu0 0.0
  %1535 = vmatprep.subr.mxu0 0.0
  %1536 = vmatpush1.msra.mxu0 0.0
  %1537 = vmatprep.subr.mxu0 0.0
  %1538 = vmatpush1.msra.mxu0 0.0
  %1539 = vmatprep.mubr.f32.mxu0 0.0
  %1540 = vmatmul.mubr.f32.gmra.mrb[0].mxu0 %v93
  %v1541 = vpop.f32.mrb[0].mxu0
  %v1542 = vadd.f32 0.0, %v1541
  %v1543 = vpop.f32.mrb[0].mxu0
  %1544 = vmatprep.mubr.f32.mxu0 0.0
  %1545 = vmatmul.mubr.f32.gmra.mrb[0].mxu0 %v96
  %v1546 = vpop.f32.mrb[0].mxu0
  %v1547 = vadd.f32 0.0, %v1546
  %v1548 = vpop.f32.mrb[0].mxu0
  %1549 = vdwg.mxu0
  %s1550 = scalar_lea.vmem %s3, 144
  %1551 = vst.msk [vmem:[%s1550] sm:$0xff] %vm173, %v1542
  %1552 = vst.msk [vmem:[%s1550 + $0x8] sm:$0xff] %vm173, %v1547
  %s1553 = scalar_lea.vmem %s0, 80
  %v1554 = vld [vmem:[%s1553] sm:$0xff]
  %v1556 = vsel %vm18, %v1554, 0
  %1558 = vmatprep.subr.mxu0 0.0
  %1559 = vmatpush1.msra.mxu0 %v16
  %1560 = vmatprep.subr.mxu0 0.0
  %1561 = vmatpush1.msra.mxu0 0.0
  %1562 = vmatprep.subr.mxu0 0.0
  %1563 = vmatpush1.msra.mxu0 0.0
  %1564 = vmatprep.subr.mxu0 0.0
  %1565 = vmatpush1.msra.mxu0 0.0
  %1566 = vmatprep.subr.mxu0 0.0
  %1567 = vmatpush1.msra.mxu0 0.0
  %1568 = vmatprep.subr.mxu0 0.0
  %1569 = vmatpush1.msra.mxu0 0.0
  %1570 = vmatprep.subr.mxu0 0.0
  %1571 = vmatpush1.msra.mxu0 0.0
  %1572 = vmatprep.subr.mxu0 0.0
  %1573 = vmatpush1.msra.mxu0 0.0
  %1574 = vmatprep.subr.mxu0 0.0
  %1575 = vmatpush1.msra.mxu0 0.0
  %1576 = vmatprep.subr.mxu0 0.0
  %1577 = vmatpush1.msra.mxu0 0.0
  %1578 = vmatprep.subr.mxu0 0.0
  %1579 = vmatpush1.msra.mxu0 0.0
  %1580 = vmatprep.subr.mxu0 0.0
  %1581 = vmatpush1.msra.mxu0 0.0
  %1582 = vmatprep.subr.mxu0 0.0
  %1583 = vmatpush1.msra.mxu0 0.0
  %1584 = vmatprep.subr.mxu0 0.0
  %1585 = vmatpush1.msra.mxu0 0.0
  %1586 = vmatprep.subr.mxu0 0.0
  %1587 = vmatpush1.msra.mxu0 0.0
  %1588 = vmatprep.subr.mxu0 0.0
  %1589 = vmatpush1.msra.mxu0 0.0
  %1590 = vmatprep.subr.mxu0 0.0
  %1591 = vmatpush1.msra.mxu0 0.0
  %1592 = vmatprep.subr.mxu0 0.0
  %1593 = vmatpush1.msra.mxu0 0.0
  %1594 = vmatprep.subr.mxu0 0.0
  %1595 = vmatpush1.msra.mxu0 0.0
  %1596 = vmatprep.subr.mxu0 0.0
  %1597 = vmatpush1.msra.mxu0 0.0
  %1598 = vmatprep.subr.mxu0 0.0
  %1599 = vmatpush1.msra.mxu0 0.0
  %1600 = vmatprep.subr.mxu0 0.0
  %1601 = vmatpush1.msra.mxu0 0.0
  %1602 = vmatprep.subr.mxu0 0.0
  %1603 = vmatpush1.msra.mxu0 0.0
  %1604 = vmatprep.subr.mxu0 0.0
  %1605 = vmatpush1.msra.mxu0 0.0
  %1606 = vmatprep.subr.mxu0 0.0
  %1607 = vmatpush1.msra.mxu0 0.0
  %1608 = vmatprep.subr.mxu0 0.0
  %1609 = vmatpush1.msra.mxu0 0.0
  %1610 = vmatprep.subr.mxu0 0.0
  %1611 = vmatpush1.msra.mxu0 0.0
  %1612 = vmatprep.subr.mxu0 0.0
  %1613 = vmatpush1.msra.mxu0 0.0
  %1614 = vmatprep.subr.mxu0 0.0
  %1615 = vmatpush1.msra.mxu0 0.0
  %1616 = vmatprep.subr.mxu0 0.0
  %1617 = vmatpush1.msra.mxu0 0.0
  %1618 = vmatprep.subr.mxu0 0.0
  %1619 = vmatpush1.msra.mxu0 0.0
  %1620 = vmatprep.subr.mxu0 0.0
  %1621 = vmatpush1.msra.mxu0 0.0
  %1622 = vmatprep.mubr.f32.mxu0 0.0
  %1623 = vmatmul.mubr.f32.gmra.mrb[0].mxu0 %v1556
  %v1624 = vpop.f32.mrb[0].mxu0
  %v1625 = vadd.f32 0.0, %v1624
  %v1626 = vpop.f32.mrb[0].mxu0
  %1627 = vdwg.mxu0
  %1628 = vmatprep.subr.mxu0 0.0
  %1629 = vmatpush1.msra.mxu0 %v1625
  %1630 = vmatprep.subr.mxu0 0.0
  %1631 = vmatpush1.msra.mxu0 0.0
  %1632 = vmatprep.subr.mxu0 0.0
  %1633 = vmatpush1.msra.mxu0 0.0
  %1634 = vmatprep.subr.mxu0 0.0
  %1635 = vmatpush1.msra.mxu0 0.0
  %1636 = vmatprep.subr.mxu0 0.0
  %1637 = vmatpush1.msra.mxu0 0.0
  %1638 = vmatprep.subr.mxu0 0.0
  %1639 = vmatpush1.msra.mxu0 0.0
  %1640 = vmatprep.subr.mxu0 0.0
  %1641 = vmatpush1.msra.mxu0 0.0
  %1642 = vmatprep.subr.mxu0 0.0
  %1643 = vmatpush1.msra.mxu0 0.0
  %1644 = vmatprep.subr.mxu0 0.0
  %1645 = vmatpush1.msra.mxu0 0.0
  %1646 = vmatprep.subr.mxu0 0.0
  %1647 = vmatpush1.msra.mxu0 0.0
  %1648 = vmatprep.subr.mxu0 0.0
  %1649 = vmatpush1.msra.mxu0 0.0
  %1650 = vmatprep.subr.mxu0 0.0
  %1651 = vmatpush1.msra.mxu0 0.0
  %1652 = vmatprep.subr.mxu0 0.0
  %1653 = vmatpush1.msra.mxu0 0.0
  %1654 = vmatprep.subr.mxu0 0.0
  %1655 = vmatpush1.msra.mxu0 0.0
  %1656 = vmatprep.subr.mxu0 0.0
  %1657 = vmatpush1.msra.mxu0 0.0
  %1658 = vmatprep.subr.mxu0 0.0
  %1659 = vmatpush1.msra.mxu0 0.0
  %1660 = vmatprep.subr.mxu0 0.0
  %1661 = vmatpush1.msra.mxu0 0.0
  %1662 = vmatprep.subr.mxu0 0.0
  %1663 = vmatpush1.msra.mxu0 0.0
  %1664 = vmatprep.subr.mxu0 0.0
  %1665 = vmatpush1.msra.mxu0 0.0
  %1666 = vmatprep.subr.mxu0 0.0
  %1667 = vmatpush1.msra.mxu0 0.0
  %1668 = vmatprep.subr.mxu0 0.0
  %1669 = vmatpush1.msra.mxu0 0.0
  %1670 = vmatprep.subr.mxu0 0.0
  %1671 = vmatpush1.msra.mxu0 0.0
  %1672 = vmatprep.subr.mxu0 0.0
  %1673 = vmatpush1.msra.mxu0 0.0
  %1674 = vmatprep.subr.mxu0 0.0
  %1675 = vmatpush1.msra.mxu0 0.0
  %1676 = vmatprep.subr.mxu0 0.0
  %1677 = vmatpush1.msra.mxu0 0.0
  %1678 = vmatprep.subr.mxu0 0.0
  %1679 = vmatpush1.msra.mxu0 0.0
  %1680 = vmatprep.subr.mxu0 0.0
  %1681 = vmatpush1.msra.mxu0 0.0
  %1682 = vmatprep.subr.mxu0 0.0
  %1683 = vmatpush1.msra.mxu0 0.0
  %1684 = vmatprep.subr.mxu0 0.0
  %1685 = vmatpush1.msra.mxu0 0.0
  %1686 = vmatprep.subr.mxu0 0.0
  %1687 = vmatpush1.msra.mxu0 0.0
  %1688 = vmatprep.subr.mxu0 0.0
  %1689 = vmatpush1.msra.mxu0 0.0
  %1690 = vmatprep.subr.mxu0 0.0
  %1691 = vmatpush1.msra.mxu0 0.0
  %1692 = vmatprep.mubr.f32.mxu0 0.0
  %1693 = vmatmul.mubr.f32.gmra.mrb[0].mxu0 %v93
  %v1694 = vpop.f32.mrb[0].mxu0
  %v1695 = vadd.f32 0.0, %v1694
  %v1696 = vpop.f32.mrb[0].mxu0
  %1697 = vmatprep.mubr.f32.mxu0 0.0
  %1698 = vmatmul.mubr.f32.gmra.mrb[0].mxu0 %v96
  %v1699 = vpop.f32.mrb[0].mxu0
  %v1700 = vadd.f32 0.0, %v1699
  %v1701 = vpop.f32.mrb[0].mxu0
  %1702 = vdwg.mxu0
  %s1703 = scalar_lea.vmem %s3, 160
  %1704 = vst.msk [vmem:[%s1703] sm:$0xff] %vm173, %v1695
  %1705 = vst.msk [vmem:[%s1703 + $0x8] sm:$0xff] %vm173, %v1700
  %s1706 = scalar_lea.vmem %s0, 88
  %v1707 = vld [vmem:[%s1706] sm:$0xff]
  %v1709 = vsel %vm18, %v1707, 0
  %1711 = vmatprep.subr.mxu0 0.0
  %1712 = vmatpush1.msra.mxu0 %v16
  %1713 = vmatprep.subr.mxu0 0.0
  %1714 = vmatpush1.msra.mxu0 0.0
  %1715 = vmatprep.subr.mxu0 0.0
  %1716 = vmatpush1.msra.mxu0 0.0
  %1717 = vmatprep.subr.mxu0 0.0
  %1718 = vmatpush1.msra.mxu0 0.0
  %1719 = vmatprep.subr.mxu0 0.0
  %1720 = vmatpush1.msra.mxu0 0.0
  %1721 = vmatprep.subr.mxu0 0.0
  %1722 = vmatpush1.msra.mxu0 0.0
  %1723 = vmatprep.subr.mxu0 0.0
  %1724 = vmatpush1.msra.mxu0 0.0
  %1725 = vmatprep.subr.mxu0 0.0
  %1726 = vmatpush1.msra.mxu0 0.0
  %1727 = vmatprep.subr.mxu0 0.0
  %1728 = vmatpush1.msra.mxu0 0.0
  %1729 = vmatprep.subr.mxu0 0.0
  %1730 = vmatpush1.msra.mxu0 0.0
  %1731 = vmatprep.subr.mxu0 0.0
  %1732 = vmatpush1.msra.mxu0 0.0
  %1733 = vmatprep.subr.mxu0 0.0
  %1734 = vmatpush1.msra.mxu0 0.0
  %1735 = vmatprep.subr.mxu0 0.0
  %1736 = vmatpush1.msra.mxu0 0.0
  %1737 = vmatprep.subr.mxu0 0.0
  %1738 = vmatpush1.msra.mxu0 0.0
  %1739 = vmatprep.subr.mxu0 0.0
  %1740 = vmatpush1.msra.mxu0 0.0
  %1741 = vmatprep.subr.mxu0 0.0
  %1742 = vmatpush1.msra.mxu0 0.0
  %1743 = vmatprep.subr.mxu0 0.0
  %1744 = vmatpush1.msra.mxu0 0.0
  %1745 = vmatprep.subr.mxu0 0.0
  %1746 = vmatpush1.msra.mxu0 0.0
  %1747 = vmatprep.subr.mxu0 0.0
  %1748 = vmatpush1.msra.mxu0 0.0
  %1749 = vmatprep.subr.mxu0 0.0
  %1750 = vmatpush1.msra.mxu0 0.0
  %1751 = vmatprep.subr.mxu0 0.0
  %1752 = vmatpush1.msra.mxu0 0.0
  %1753 = vmatprep.subr.mxu0 0.0
  %1754 = vmatpush1.msra.mxu0 0.0
  %1755 = vmatprep.subr.mxu0 0.0
  %1756 = vmatpush1.msra.mxu0 0.0
  %1757 = vmatprep.subr.mxu0 0.0
  %1758 = vmatpush1.msra.mxu0 0.0
  %1759 = vmatprep.subr.mxu0 0.0
  %1760 = vmatpush1.msra.mxu0 0.0
  %1761 = vmatprep.subr.mxu0 0.0
  %1762 = vmatpush1.msra.mxu0 0.0
  %1763 = vmatprep.subr.mxu0 0.0
  %1764 = vmatpush1.msra.mxu0 0.0
  %1765 = vmatprep.subr.mxu0 0.0
  %1766 = vmatpush1.msra.mxu0 0.0
  %1767 = vmatprep.subr.mxu0 0.0
  %1768 = vmatpush1.msra.mxu0 0.0
  %1769 = vmatprep.subr.mxu0 0.0
  %1770 = vmatpush1.msra.mxu0 0.0
  %1771 = vmatprep.subr.mxu0 0.0
  %1772 = vmatpush1.msra.mxu0 0.0
  %1773 = vmatprep.subr.mxu0 0.0
  %1774 = vmatpush1.msra.mxu0 0.0
  %1775 = vmatprep.mubr.f32.mxu0 0.0
  %1776 = vmatmul.mubr.f32.gmra.mrb[0].mxu0 %v1709
  %v1777 = vpop.f32.mrb[0].mxu0
  %v1778 = vadd.f32 0.0, %v1777
  %v1779 = vpop.f32.mrb[0].mxu0
  %1780 = vdwg.mxu0
  %1781 = vmatprep.subr.mxu0 0.0
  %1782 = vmatpush1.msra.mxu0 %v1778
  %1783 = vmatprep.subr.mxu0 0.0
  %1784 = vmatpush1.msra.mxu0 0.0
  %1785 = vmatprep.subr.mxu0 0.0
  %1786 = vmatpush1.msra.mxu0 0.0
  %1787 = vmatprep.subr.mxu0 0.0
  %1788 = vmatpush1.msra.mxu0 0.0
  %1789 = vmatprep.subr.mxu0 0.0
  %1790 = vmatpush1.msra.mxu0 0.0
  %1791 = vmatprep.subr.mxu0 0.0
  %1792 = vmatpush1.msra.mxu0 0.0
  %1793 = vmatprep.subr.mxu0 0.0
  %1794 = vmatpush1.msra.mxu0 0.0
  %1795 = vmatprep.subr.mxu0 0.0
  %1796 = vmatpush1.msra.mxu0 0.0
  %1797 = vmatprep.subr.mxu0 0.0
  %1798 = vmatpush1.msra.mxu0 0.0
  %1799 = vmatprep.subr.mxu0 0.0
  %1800 = vmatpush1.msra.mxu0 0.0
  %1801 = vmatprep.subr.mxu0 0.0
  %1802 = vmatpush1.msra.mxu0 0.0
  %1803 = vmatprep.subr.mxu0 0.0
  %1804 = vmatpush1.msra.mxu0 0.0
  %1805 = vmatprep.subr.mxu0 0.0
  %1806 = vmatpush1.msra.mxu0 0.0
  %1807 = vmatprep.subr.mxu0 0.0
  %1808 = vmatpush1.msra.mxu0 0.0
  %1809 = vmatprep.subr.mxu0 0.0
  %1810 = vmatpush1.msra.mxu0 0.0
  %1811 = vmatprep.subr.mxu0 0.0
  %1812 = vmatpush1.msra.mxu0 0.0
  %1813 = vmatprep.subr.mxu0 0.0
  %1814 = vmatpush1.msra.mxu0 0.0
  %1815 = vmatprep.subr.mxu0 0.0
  %1816 = vmatpush1.msra.mxu0 0.0
  %1817 = vmatprep.subr.mxu0 0.0
  %1818 = vmatpush1.msra.mxu0 0.0
  %1819 = vmatprep.subr.mxu0 0.0
  %1820 = vmatpush1.msra.mxu0 0.0
  %1821 = vmatprep.subr.mxu0 0.0
  %1822 = vmatpush1.msra.mxu0 0.0
  %1823 = vmatprep.subr.mxu0 0.0
  %1824 = vmatpush1.msra.mxu0 0.0
  %1825 = vmatprep.subr.mxu0 0.0
  %1826 = vmatpush1.msra.mxu0 0.0
  %1827 = vmatprep.subr.mxu0 0.0
  %1828 = vmatpush1.msra.mxu0 0.0
  %1829 = vmatprep.subr.mxu0 0.0
  %1830 = vmatpush1.msra.mxu0 0.0
  %1831 = vmatprep.subr.mxu0 0.0
  %1832 = vmatpush1.msra.mxu0 0.0
  %1833 = vmatprep.subr.mxu0 0.0
  %1834 = vmatpush1.msra.mxu0 0.0
  %1835 = vmatprep.subr.mxu0 0.0
  %1836 = vmatpush1.msra.mxu0 0.0
  %1837 = vmatprep.subr.mxu0 0.0
  %1838 = vmatpush1.msra.mxu0 0.0
  %1839 = vmatprep.subr.mxu0 0.0
  %1840 = vmatpush1.msra.mxu0 0.0
  %1841 = vmatprep.subr.mxu0 0.0
  %1842 = vmatpush1.msra.mxu0 0.0
  %1843 = vmatprep.subr.mxu0 0.0
  %1844 = vmatpush1.msra.mxu0 0.0
  %1845 = vmatprep.mubr.f32.mxu0 0.0
  %1846 = vmatmul.mubr.f32.gmra.mrb[0].mxu0 %v93
  %v1847 = vpop.f32.mrb[0].mxu0
  %v1848 = vadd.f32 0.0, %v1847
  %v1849 = vpop.f32.mrb[0].mxu0
  %1850 = vmatprep.mubr.f32.mxu0 0.0
  %1851 = vmatmul.mubr.f32.gmra.mrb[0].mxu0 %v96
  %v1852 = vpop.f32.mrb[0].mxu0
  %v1853 = vadd.f32 0.0, %v1852
  %v1854 = vpop.f32.mrb[0].mxu0
  %1855 = vdwg.mxu0
  %s1856 = scalar_lea.vmem %s3, 176
  %1857 = vst.msk [vmem:[%s1856] sm:$0xff] %vm173, %v1848
  %1858 = vst.msk [vmem:[%s1856 + $0x8] sm:$0xff] %vm173, %v1853
  %s1859 = scalar_lea.vmem %s0, 96
  %v1860 = vld [vmem:[%s1859] sm:$0xff]
  %v1862 = vsel %vm18, %v1860, 0
  %1864 = vmatprep.subr.mxu0 0.0
  %1865 = vmatpush1.msra.mxu0 %v16
  %1866 = vmatprep.subr.mxu0 0.0
  %1867 = vmatpush1.msra.mxu0 0.0
  %1868 = vmatprep.subr.mxu0 0.0
  %1869 = vmatpush1.msra.mxu0 0.0
  %1870 = vmatprep.subr.mxu0 0.0
  %1871 = vmatpush1.msra.mxu0 0.0
  %1872 = vmatprep.subr.mxu0 0.0
  %1873 = vmatpush1.msra.mxu0 0.0
  %1874 = vmatprep.subr.mxu0 0.0
  %1875 = vmatpush1.msra.mxu0 0.0
  %1876 = vmatprep.subr.mxu0 0.0
  %1877 = vmatpush1.msra.mxu0 0.0
  %1878 = vmatprep.subr.mxu0 0.0
  %1879 = vmatpush1.msra.mxu0 0.0
  %1880 = vmatprep.subr.mxu0 0.0
  %1881 = vmatpush1.msra.mxu0 0.0
  %1882 = vmatprep.subr.mxu0 0.0
  %1883 = vmatpush1.msra.mxu0 0.0
  %1884 = vmatprep.subr.mxu0 0.0
  %1885 = vmatpush1.msra.mxu0 0.0
  %1886 = vmatprep.subr.mxu0 0.0
  %1887 = vmatpush1.msra.mxu0 0.0
  %1888 = vmatprep.subr.mxu0 0.0
  %1889 = vmatpush1.msra.mxu0 0.0
  %1890 = vmatprep.subr.mxu0 0.0
  %1891 = vmatpush1.msra.mxu0 0.0
  %1892 = vmatprep.subr.mxu0 0.0
  %1893 = vmatpush1.msra.mxu0 0.0
  %1894 = vmatprep.subr.mxu0 0.0
  %1895 = vmatpush1.msra.mxu0 0.0
  %1896 = vmatprep.subr.mxu0 0.0
  %1897 = vmatpush1.msra.mxu0 0.0
  %1898 = vmatprep.subr.mxu0 0.0
  %1899 = vmatpush1.msra.mxu0 0.0
  %1900 = vmatprep.subr.mxu0 0.0
  %1901 = vmatpush1.msra.mxu0 0.0
  %1902 = vmatprep.subr.mxu0 0.0
  %1903 = vmatpush1.msra.mxu0 0.0
  %1904 = vmatprep.subr.mxu0 0.0
  %1905 = vmatpush1.msra.mxu0 0.0
  %1906 = vmatprep.subr.mxu0 0.0
  %1907 = vmatpush1.msra.mxu0 0.0
  %1908 = vmatprep.subr.mxu0 0.0
  %1909 = vmatpush1.msra.mxu0 0.0
  %1910 = vmatprep.subr.mxu0 0.0
  %1911 = vmatpush1.msra.mxu0 0.0
  %1912 = vmatprep.subr.mxu0 0.0
  %1913 = vmatpush1.msra.mxu0 0.0
  %1914 = vmatprep.subr.mxu0 0.0
  %1915 = vmatpush1.msra.mxu0 0.0
  %1916 = vmatprep.subr.mxu0 0.0
  %1917 = vmatpush1.msra.mxu0 0.0
  %1918 = vmatprep.subr.mxu0 0.0
  %1919 = vmatpush1.msra.mxu0 0.0
  %1920 = vmatprep.subr.mxu0 0.0
  %1921 = vmatpush1.msra.mxu0 0.0
  %1922 = vmatprep.subr.mxu0 0.0
  %1923 = vmatpush1.msra.mxu0 0.0
  %1924 = vmatprep.subr.mxu0 0.0
  %1925 = vmatpush1.msra.mxu0 0.0
  %1926 = vmatprep.subr.mxu0 0.0
  %1927 = vmatpush1.msra.mxu0 0.0
  %1928 = vmatprep.mubr.f32.mxu0 0.0
  %1929 = vmatmul.mubr.f32.gmra.mrb[0].mxu0 %v1862
  %v1930 = vpop.f32.mrb[0].mxu0
  %v1931 = vadd.f32 0.0, %v1930
  %v1932 = vpop.f32.mrb[0].mxu0
  %1933 = vdwg.mxu0
  %1934 = vmatprep.subr.mxu0 0.0
  %1935 = vmatpush1.msra.mxu0 %v1931
  %1936 = vmatprep.subr.mxu0 0.0
  %1937 = vmatpush1.msra.mxu0 0.0
  %1938 = vmatprep.subr.mxu0 0.0
  %1939 = vmatpush1.msra.mxu0 0.0
  %1940 = vmatprep.subr.mxu0 0.0
  %1941 = vmatpush1.msra.mxu0 0.0
  %1942 = vmatprep.subr.mxu0 0.0
  %1943 = vmatpush1.msra.mxu0 0.0
  %1944 = vmatprep.subr.mxu0 0.0
  %1945 = vmatpush1.msra.mxu0 0.0
  %1946 = vmatprep.subr.mxu0 0.0
  %1947 = vmatpush1.msra.mxu0 0.0
  %1948 = vmatprep.subr.mxu0 0.0
  %1949 = vmatpush1.msra.mxu0 0.0
  %1950 = vmatprep.subr.mxu0 0.0
  %1951 = vmatpush1.msra.mxu0 0.0
  %1952 = vmatprep.subr.mxu0 0.0
  %1953 = vmatpush1.msra.mxu0 0.0
  %1954 = vmatprep.subr.mxu0 0.0
  %1955 = vmatpush1.msra.mxu0 0.0
  %1956 = vmatprep.subr.mxu0 0.0
  %1957 = vmatpush1.msra.mxu0 0.0
  %1958 = vmatprep.subr.mxu0 0.0
  %1959 = vmatpush1.msra.mxu0 0.0
  %1960 = vmatprep.subr.mxu0 0.0
  %1961 = vmatpush1.msra.mxu0 0.0
  %1962 = vmatprep.subr.mxu0 0.0
  %1963 = vmatpush1.msra.mxu0 0.0
  %1964 = vmatprep.subr.mxu0 0.0
  %1965 = vmatpush1.msra.mxu0 0.0
  %1966 = vmatprep.subr.mxu0 0.0
  %1967 = vmatpush1.msra.mxu0 0.0
  %1968 = vmatprep.subr.mxu0 0.0
  %1969 = vmatpush1.msra.mxu0 0.0
  %1970 = vmatprep.subr.mxu0 0.0
  %1971 = vmatpush1.msra.mxu0 0.0
  %1972 = vmatprep.subr.mxu0 0.0
  %1973 = vmatpush1.msra.mxu0 0.0
  %1974 = vmatprep.subr.mxu0 0.0
  %1975 = vmatpush1.msra.mxu0 0.0
  %1976 = vmatprep.subr.mxu0 0.0
  %1977 = vmatpush1.msra.mxu0 0.0
  %1978 = vmatprep.subr.mxu0 0.0
  %1979 = vmatpush1.msra.mxu0 0.0
  %1980 = vmatprep.subr.mxu0 0.0
  %1981 = vmatpush1.msra.mxu0 0.0
  %1982 = vmatprep.subr.mxu0 0.0
  %1983 = vmatpush1.msra.mxu0 0.0
  %1984 = vmatprep.subr.mxu0 0.0
  %1985 = vmatpush1.msra.mxu0 0.0
  %1986 = vmatprep.subr.mxu0 0.0
  %1987 = vmatpush1.msra.mxu0 0.0
  %1988 = vmatprep.subr.mxu0 0.0
  %1989 = vmatpush1.msra.mxu0 0.0
  %1990 = vmatprep.subr.mxu0 0.0
  %1991 = vmatpush1.msra.mxu0 0.0
  %1992 = vmatprep.subr.mxu0 0.0
  %1993 = vmatpush1.msra.mxu0 0.0
  %1994 = vmatprep.subr.mxu0 0.0
  %1995 = vmatpush1.msra.mxu0 0.0
  %1996 = vmatprep.subr.mxu0 0.0
  %1997 = vmatpush1.msra.mxu0 0.0
  %1998 = vmatprep.mubr.f32.mxu0 0.0
  %1999 = vmatmul.mubr.f32.gmra.mrb[0].mxu0 %v93
  %v2000 = vpop.f32.mrb[0].mxu0
  %v2001 = vadd.f32 0.0, %v2000
  %v2002 = vpop.f32.mrb[0].mxu0
  %2003 = vmatprep.mubr.f32.mxu0 0.0
  %2004 = vmatmul.mubr.f32.gmra.mrb[0].mxu0 %v96
  %v2005 = vpop.f32.mrb[0].mxu0
  %v2006 = vadd.f32 0.0, %v2005
  %v2007 = vpop.f32.mrb[0].mxu0
  %2008 = vdwg.mxu0
  %s2009 = scalar_lea.vmem %s3, 192
  %2010 = vst.msk [vmem:[%s2009] sm:$0xff] %vm173, %v2001
  %2011 = vst.msk [vmem:[%s2009 + $0x8] sm:$0xff] %vm173, %v2006
  %s2012 = scalar_lea.vmem %s0, 104
  %v2013 = vld [vmem:[%s2012] sm:$0xff]
  %v2015 = vsel %vm18, %v2013, 0
  %2017 = vmatprep.subr.mxu0 0.0
  %2018 = vmatpush1.msra.mxu0 %v16
  %2019 = vmatprep.subr.mxu0 0.0
  %2020 = vmatpush1.msra.mxu0 0.0
  %2021 = vmatprep.subr.mxu0 0.0
  %2022 = vmatpush1.msra.mxu0 0.0
  %2023 = vmatprep.subr.mxu0 0.0
  %2024 = vmatpush1.msra.mxu0 0.0
  %2025 = vmatprep.subr.mxu0 0.0
  %2026 = vmatpush1.msra.mxu0 0.0
  %2027 = vmatprep.subr.mxu0 0.0
  %2028 = vmatpush1.msra.mxu0 0.0
  %2029 = vmatprep.subr.mxu0 0.0
  %2030 = vmatpush1.msra.mxu0 0.0
  %2031 = vmatprep.subr.mxu0 0.0
  %2032 = vmatpush1.msra.mxu0 0.0
  %2033 = vmatprep.subr.mxu0 0.0
  %2034 = vmatpush1.msra.mxu0 0.0
  %2035 = vmatprep.subr.mxu0 0.0
  %2036 = vmatpush1.msra.mxu0 0.0
  %2037 = vmatprep.subr.mxu0 0.0
  %2038 = vmatpush1.msra.mxu0 0.0
  %2039 = vmatprep.subr.mxu0 0.0
  %2040 = vmatpush1.msra.mxu0 0.0
  %2041 = vmatprep.subr.mxu0 0.0
  %2042 = vmatpush1.msra.mxu0 0.0
  %2043 = vmatprep.subr.mxu0 0.0
  %2044 = vmatpush1.msra.mxu0 0.0
  %2045 = vmatprep.subr.mxu0 0.0
  %2046 = vmatpush1.msra.mxu0 0.0
  %2047 = vmatprep.subr.mxu0 0.0
  %2048 = vmatpush1.msra.mxu0 0.0
  %2049 = vmatprep.subr.mxu0 0.0
  %2050 = vmatpush1.msra.mxu0 0.0
  %2051 = vmatprep.subr.mxu0 0.0
  %2052 = vmatpush1.msra.mxu0 0.0
  %2053 = vmatprep.subr.mxu0 0.0
  %2054 = vmatpush1.msra.mxu0 0.0
  %2055 = vmatprep.subr.mxu0 0.0
  %2056 = vmatpush1.msra.mxu0 0.0
  %2057 = vmatprep.subr.mxu0 0.0
  %2058 = vmatpush1.msra.mxu0 0.0
  %2059 = vmatprep.subr.mxu0 0.0
  %2060 = vmatpush1.msra.mxu0 0.0
  %2061 = vmatprep.subr.mxu0 0.0
  %2062 = vmatpush1.msra.mxu0 0.0
  %2063 = vmatprep.subr.mxu0 0.0
  %2064 = vmatpush1.msra.mxu0 0.0
  %2065 = vmatprep.subr.mxu0 0.0
  %2066 = vmatpush1.msra.mxu0 0.0
  %2067 = vmatprep.subr.mxu0 0.0
  %2068 = vmatpush1.msra.mxu0 0.0
  %2069 = vmatprep.subr.mxu0 0.0
  %2070 = vmatpush1.msra.mxu0 0.0
  %2071 = vmatprep.subr.mxu0 0.0
  %2072 = vmatpush1.msra.mxu0 0.0
  %2073 = vmatprep.subr.mxu0 0.0
  %2074 = vmatpush1.msra.mxu0 0.0
  %2075 = vmatprep.subr.mxu0 0.0
  %2076 = vmatpush1.msra.mxu0 0.0
  %2077 = vmatprep.subr.mxu0 0.0
  %2078 = vmatpush1.msra.mxu0 0.0
  %2079 = vmatprep.subr.mxu0 0.0
  %2080 = vmatpush1.msra.mxu0 0.0
  %2081 = vmatprep.mubr.f32.mxu0 0.0
  %2082 = vmatmul.mubr.f32.gmra.mrb[0].mxu0 %v2015
  %v2083 = vpop.f32.mrb[0].mxu0
  %v2084 = vadd.f32 0.0, %v2083
  %v2085 = vpop.f32.mrb[0].mxu0
  %2086 = vdwg.mxu0
  %2087 = vmatprep.subr.mxu0 0.0
  %2088 = vmatpush1.msra.mxu0 %v2084
  %2089 = vmatprep.subr.mxu0 0.0
  %2090 = vmatpush1.msra.mxu0 0.0
  %2091 = vmatprep.subr.mxu0 0.0
  %2092 = vmatpush1.msra.mxu0 0.0
  %2093 = vmatprep.subr.mxu0 0.0
  %2094 = vmatpush1.msra.mxu0 0.0
  %2095 = vmatprep.subr.mxu0 0.0
  %2096 = vmatpush1.msra.mxu0 0.0
  %2097 = vmatprep.subr.mxu0 0.0
  %2098 = vmatpush1.msra.mxu0 0.0
  %2099 = vmatprep.subr.mxu0 0.0
  %2100 = vmatpush1.msra.mxu0 0.0
  %2101 = vmatprep.subr.mxu0 0.0
  %2102 = vmatpush1.msra.mxu0 0.0
  %2103 = vmatprep.subr.mxu0 0.0
  %2104 = vmatpush1.msra.mxu0 0.0
  %2105 = vmatprep.subr.mxu0 0.0
  %2106 = vmatpush1.msra.mxu0 0.0
  %2107 = vmatprep.subr.mxu0 0.0
  %2108 = vmatpush1.msra.mxu0 0.0
  %2109 = vmatprep.subr.mxu0 0.0
  %2110 = vmatpush1.msra.mxu0 0.0
  %2111 = vmatprep.subr.mxu0 0.0
  %2112 = vmatpush1.msra.mxu0 0.0
  %2113 = vmatprep.subr.mxu0 0.0
  %2114 = vmatpush1.msra.mxu0 0.0
  %2115 = vmatprep.subr.mxu0 0.0
  %2116 = vmatpush1.msra.mxu0 0.0
  %2117 = vmatprep.subr.mxu0 0.0
  %2118 = vmatpush1.msra.mxu0 0.0
  %2119 = vmatprep.subr.mxu0 0.0
  %2120 = vmatpush1.msra.mxu0 0.0
  %2121 = vmatprep.subr.mxu0 0.0
  %2122 = vmatpush1.msra.mxu0 0.0
  %2123 = vmatprep.subr.mxu0 0.0
  %2124 = vmatpush1.msra.mxu0 0.0
  %2125 = vmatprep.subr.mxu0 0.0
  %2126 = vmatpush1.msra.mxu0 0.0
  %2127 = vmatprep.subr.mxu0 0.0
  %2128 = vmatpush1.msra.mxu0 0.0
  %2129 = vmatprep.subr.mxu0 0.0
  %2130 = vmatpush1.msra.mxu0 0.0
  %2131 = vmatprep.subr.mxu0 0.0
  %2132 = vmatpush1.msra.mxu0 0.0
  %2133 = vmatprep.subr.mxu0 0.0
  %2134 = vmatpush1.msra.mxu0 0.0
  %2135 = vmatprep.subr.mxu0 0.0
  %2136 = vmatpush1.msra.mxu0 0.0
  %2137 = vmatprep.subr.mxu0 0.0
  %2138 = vmatpush1.msra.mxu0 0.0
  %2139 = vmatprep.subr.mxu0 0.0
  %2140 = vmatpush1.msra.mxu0 0.0
  %2141 = vmatprep.subr.mxu0 0.0
  %2142 = vmatpush1.msra.mxu0 0.0
  %2143 = vmatprep.subr.mxu0 0.0
  %2144 = vmatpush1.msra.mxu0 0.0
  %2145 = vmatprep.subr.mxu0 0.0
  %2146 = vmatpush1.msra.mxu0 0.0
  %2147 = vmatprep.subr.mxu0 0.0
  %2148 = vmatpush1.msra.mxu0 0.0
  %2149 = vmatprep.subr.mxu0 0.0
  %2150 = vmatpush1.msra.mxu0 0.0
  %2151 = vmatprep.mubr.f32.mxu0 0.0
  %2152 = vmatmul.mubr.f32.gmra.mrb[0].mxu0 %v93
  %v2153 = vpop.f32.mrb[0].mxu0
  %v2154 = vadd.f32 0.0, %v2153
  %v2155 = vpop.f32.mrb[0].mxu0
  %2156 = vmatprep.mubr.f32.mxu0 0.0
  %2157 = vmatmul.mubr.f32.gmra.mrb[0].mxu0 %v96
  %v2158 = vpop.f32.mrb[0].mxu0
  %v2159 = vadd.f32 0.0, %v2158
  %v2160 = vpop.f32.mrb[0].mxu0
  %2161 = vdwg.mxu0
  %s2162 = scalar_lea.vmem %s3, 208
  %2163 = vst.msk [vmem:[%s2162] sm:$0xff] %vm173, %v2154
  %2164 = vst.msk [vmem:[%s2162 + $0x8] sm:$0xff] %vm173, %v2159
  %s2165 = scalar_lea.vmem %s0, 112
  %v2166 = vld [vmem:[%s2165] sm:$0xff]
  %v2168 = vsel %vm18, %v2166, 0
  %2170 = vmatprep.subr.mxu0 0.0
  %2171 = vmatpush1.msra.mxu0 %v16
  %2172 = vmatprep.subr.mxu0 0.0
  %2173 = vmatpush1.msra.mxu0 0.0
  %2174 = vmatprep.subr.mxu0 0.0
  %2175 = vmatpush1.msra.mxu0 0.0
  %2176 = vmatprep.subr.mxu0 0.0
  %2177 = vmatpush1.msra.mxu0 0.0
  %2178 = vmatprep.subr.mxu0 0.0
  %2179 = vmatpush1.msra.mxu0 0.0
  %2180 = vmatprep.subr.mxu0 0.0
  %2181 = vmatpush1.msra.mxu0 0.0
  %2182 = vmatprep.subr.mxu0 0.0
  %2183 = vmatpush1.msra.mxu0 0.0
  %2184 = vmatprep.subr.mxu0 0.0
  %2185 = vmatpush1.msra.mxu0 0.0
  %2186 = vmatprep.subr.mxu0 0.0
  %2187 = vmatpush1.msra.mxu0 0.0
  %2188 = vmatprep.subr.mxu0 0.0
  %2189 = vmatpush1.msra.mxu0 0.0
  %2190 = vmatprep.subr.mxu0 0.0
  %2191 = vmatpush1.msra.mxu0 0.0
  %2192 = vmatprep.subr.mxu0 0.0
  %2193 = vmatpush1.msra.mxu0 0.0
  %2194 = vmatprep.subr.mxu0 0.0
  %2195 = vmatpush1.msra.mxu0 0.0
  %2196 = vmatprep.subr.mxu0 0.0
  %2197 = vmatpush1.msra.mxu0 0.0
  %2198 = vmatprep.subr.mxu0 0.0
  %2199 = vmatpush1.msra.mxu0 0.0
  %2200 = vmatprep.subr.mxu0 0.0
  %2201 = vmatpush1.msra.mxu0 0.0
  %2202 = vmatprep.subr.mxu0 0.0
  %2203 = vmatpush1.msra.mxu0 0.0
  %2204 = vmatprep.subr.mxu0 0.0
  %2205 = vmatpush1.msra.mxu0 0.0
  %2206 = vmatprep.subr.mxu0 0.0
  %2207 = vmatpush1.msra.mxu0 0.0
  %2208 = vmatprep.subr.mxu0 0.0
  %2209 = vmatpush1.msra.mxu0 0.0
  %2210 = vmatprep.subr.mxu0 0.0
  %2211 = vmatpush1.msra.mxu0 0.0
  %2212 = vmatprep.subr.mxu0 0.0
  %2213 = vmatpush1.msra.mxu0 0.0
  %2214 = vmatprep.subr.mxu0 0.0
  %2215 = vmatpush1.msra.mxu0 0.0
  %2216 = vmatprep.subr.mxu0 0.0
  %2217 = vmatpush1.msra.mxu0 0.0
  %2218 = vmatprep.subr.mxu0 0.0
  %2219 = vmatpush1.msra.mxu0 0.0
  %2220 = vmatprep.subr.mxu0 0.0
  %2221 = vmatpush1.msra.mxu0 0.0
  %2222 = vmatprep.subr.mxu0 0.0
  %2223 = vmatpush1.msra.mxu0 0.0
  %2224 = vmatprep.subr.mxu0 0.0
  %2225 = vmatpush1.msra.mxu0 0.0
  %2226 = vmatprep.subr.mxu0 0.0
  %2227 = vmatpush1.msra.mxu0 0.0
  %2228 = vmatprep.subr.mxu0 0.0
  %2229 = vmatpush1.msra.mxu0 0.0
  %2230 = vmatprep.subr.mxu0 0.0
  %2231 = vmatpush1.msra.mxu0 0.0
  %2232 = vmatprep.subr.mxu0 0.0
  %2233 = vmatpush1.msra.mxu0 0.0
  %2234 = vmatprep.mubr.f32.mxu0 0.0
  %2235 = vmatmul.mubr.f32.gmra.mrb[0].mxu0 %v2168
  %v2236 = vpop.f32.mrb[0].mxu0
  %v2237 = vadd.f32 0.0, %v2236
  %v2238 = vpop.f32.mrb[0].mxu0
  %2239 = vdwg.mxu0
  %2240 = vmatprep.subr.mxu0 0.0
  %2241 = vmatpush1.msra.mxu0 %v2237
  %2242 = vmatprep.subr.mxu0 0.0
  %2243 = vmatpush1.msra.mxu0 0.0
  %2244 = vmatprep.subr.mxu0 0.0
  %2245 = vmatpush1.msra.mxu0 0.0
  %2246 = vmatprep.subr.mxu0 0.0
  %2247 = vmatpush1.msra.mxu0 0.0
  %2248 = vmatprep.subr.mxu0 0.0
  %2249 = vmatpush1.msra.mxu0 0.0
  %2250 = vmatprep.subr.mxu0 0.0
  %2251 = vmatpush1.msra.mxu0 0.0
  %2252 = vmatprep.subr.mxu0 0.0
  %2253 = vmatpush1.msra.mxu0 0.0
  %2254 = vmatprep.subr.mxu0 0.0
  %2255 = vmatpush1.msra.mxu0 0.0
  %2256 = vmatprep.subr.mxu0 0.0
  %2257 = vmatpush1.msra.mxu0 0.0
  %2258 = vmatprep.subr.mxu0 0.0
  %2259 = vmatpush1.msra.mxu0 0.0
  %2260 = vmatprep.subr.mxu0 0.0
  %2261 = vmatpush1.msra.mxu0 0.0
  %2262 = vmatprep.subr.mxu0 0.0
  %2263 = vmatpush1.msra.mxu0 0.0
  %2264 = vmatprep.subr.mxu0 0.0
  %2265 = vmatpush1.msra.mxu0 0.0
  %2266 = vmatprep.subr.mxu0 0.0
  %2267 = vmatpush1.msra.mxu0 0.0
  %2268 = vmatprep.subr.mxu0 0.0
  %2269 = vmatpush1.msra.mxu0 0.0
  %2270 = vmatprep.subr.mxu0 0.0
  %2271 = vmatpush1.msra.mxu0 0.0
  %2272 = vmatprep.subr.mxu0 0.0
  %2273 = vmatpush1.msra.mxu0 0.0
  %2274 = vmatprep.subr.mxu0 0.0
  %2275 = vmatpush1.msra.mxu0 0.0
  %2276 = vmatprep.subr.mxu0 0.0
  %2277 = vmatpush1.msra.mxu0 0.0
  %2278 = vmatprep.subr.mxu0 0.0
  %2279 = vmatpush1.msra.mxu0 0.0
  %2280 = vmatprep.subr.mxu0 0.0
  %2281 = vmatpush1.msra.mxu0 0.0
  %2282 = vmatprep.subr.mxu0 0.0
  %2283 = vmatpush1.msra.mxu0 0.0
  %2284 = vmatprep.subr.mxu0 0.0
  %2285 = vmatpush1.msra.mxu0 0.0
  %2286 = vmatprep.subr.mxu0 0.0
  %2287 = vmatpush1.msra.mxu0 0.0
  %2288 = vmatprep.subr.mxu0 0.0
  %2289 = vmatpush1.msra.mxu0 0.0
  %2290 = vmatprep.subr.mxu0 0.0
  %2291 = vmatpush1.msra.mxu0 0.0
  %2292 = vmatprep.subr.mxu0 0.0
  %2293 = vmatpush1.msra.mxu0 0.0
  %2294 = vmatprep.subr.mxu0 0.0
  %2295 = vmatpush1.msra.mxu0 0.0
  %2296 = vmatprep.subr.mxu0 0.0
  %2297 = vmatpush1.msra.mxu0 0.0
  %2298 = vmatprep.subr.mxu0 0.0
  %2299 = vmatpush1.msra.mxu0 0.0
  %2300 = vmatprep.subr.mxu0 0.0
  %2301 = vmatpush1.msra.mxu0 0.0
  %2302 = vmatprep.subr.mxu0 0.0
  %2303 = vmatpush1.msra.mxu0 0.0
  %2304 = vmatprep.mubr.f32.mxu0 0.0
  %2305 = vmatmul.mubr.f32.gmra.mrb[0].mxu0 %v93
  %v2306 = vpop.f32.mrb[0].mxu0
  %v2307 = vadd.f32 0.0, %v2306
  %v2308 = vpop.f32.mrb[0].mxu0
  %2309 = vmatprep.mubr.f32.mxu0 0.0
  %2310 = vmatmul.mubr.f32.gmra.mrb[0].mxu0 %v96
  %v2311 = vpop.f32.mrb[0].mxu0
  %v2312 = vadd.f32 0.0, %v2311
  %v2313 = vpop.f32.mrb[0].mxu0
  %2314 = vdwg.mxu0
  %s2315 = scalar_lea.vmem %s3, 224
  %2316 = vst.msk [vmem:[%s2315] sm:$0xff] %vm173, %v2307
  %2317 = vst.msk [vmem:[%s2315 + $0x8] sm:$0xff] %vm173, %v2312
  %s2318 = scalar_lea.vmem %s0, 120
  %v2319 = vld [vmem:[%s2318] sm:$0xff]
  %v2321 = vsel %vm18, %v2319, 0
  %2323 = vmatprep.subr.mxu0 0.0
  %2324 = vmatpush1.msra.mxu0 %v16
  %2325 = vmatprep.subr.mxu0 0.0
  %2326 = vmatpush1.msra.mxu0 0.0
  %2327 = vmatprep.subr.mxu0 0.0
  %2328 = vmatpush1.msra.mxu0 0.0
  %2329 = vmatprep.subr.mxu0 0.0
  %2330 = vmatpush1.msra.mxu0 0.0
  %2331 = vmatprep.subr.mxu0 0.0
  %2332 = vmatpush1.msra.mxu0 0.0
  %2333 = vmatprep.subr.mxu0 0.0
  %2334 = vmatpush1.msra.mxu0 0.0
  %2335 = vmatprep.subr.mxu0 0.0
  %2336 = vmatpush1.msra.mxu0 0.0
  %2337 = vmatprep.subr.mxu0 0.0
  %2338 = vmatpush1.msra.mxu0 0.0
  %2339 = vmatprep.subr.mxu0 0.0
  %2340 = vmatpush1.msra.mxu0 0.0
  %2341 = vmatprep.subr.mxu0 0.0
  %2342 = vmatpush1.msra.mxu0 0.0
  %2343 = vmatprep.subr.mxu0 0.0
  %2344 = vmatpush1.msra.mxu0 0.0
  %2345 = vmatprep.subr.mxu0 0.0
  %2346 = vmatpush1.msra.mxu0 0.0
  %2347 = vmatprep.subr.mxu0 0.0
  %2348 = vmatpush1.msra.mxu0 0.0
  %2349 = vmatprep.subr.mxu0 0.0
  %2350 = vmatpush1.msra.mxu0 0.0
  %2351 = vmatprep.subr.mxu0 0.0
  %2352 = vmatpush1.msra.mxu0 0.0
  %2353 = vmatprep.subr.mxu0 0.0
  %2354 = vmatpush1.msra.mxu0 0.0
  %2355 = vmatprep.subr.mxu0 0.0
  %2356 = vmatpush1.msra.mxu0 0.0
  %2357 = vmatprep.subr.mxu0 0.0
  %2358 = vmatpush1.msra.mxu0 0.0
  %2359 = vmatprep.subr.mxu0 0.0
  %2360 = vmatpush1.msra.mxu0 0.0
  %2361 = vmatprep.subr.mxu0 0.0
  %2362 = vmatpush1.msra.mxu0 0.0
  %2363 = vmatprep.subr.mxu0 0.0
  %2364 = vmatpush1.msra.mxu0 0.0
  %2365 = vmatprep.subr.mxu0 0.0
  %2366 = vmatpush1.msra.mxu0 0.0
  %2367 = vmatprep.subr.mxu0 0.0
  %2368 = vmatpush1.msra.mxu0 0.0
  %2369 = vmatprep.subr.mxu0 0.0
  %2370 = vmatpush1.msra.mxu0 0.0
  %2371 = vmatprep.subr.mxu0 0.0
  %2372 = vmatpush1.msra.mxu0 0.0
  %2373 = vmatprep.subr.mxu0 0.0
  %2374 = vmatpush1.msra.mxu0 0.0
  %2375 = vmatprep.subr.mxu0 0.0
  %2376 = vmatpush1.msra.mxu0 0.0
  %2377 = vmatprep.subr.mxu0 0.0
  %2378 = vmatpush1.msra.mxu0 0.0
  %2379 = vmatprep.subr.mxu0 0.0
  %2380 = vmatpush1.msra.mxu0 0.0
  %2381 = vmatprep.subr.mxu0 0.0
  %2382 = vmatpush1.msra.mxu0 0.0
  %2383 = vmatprep.subr.mxu0 0.0
  %2384 = vmatpush1.msra.mxu0 0.0
  %2385 = vmatprep.subr.mxu0 0.0
  %2386 = vmatpush1.msra.mxu0 0.0
  %2387 = vmatprep.mubr.f32.mxu0 0.0
  %2388 = vmatmul.mubr.f32.gmra.mrb[0].mxu0 %v2321
  %v2389 = vpop.f32.mrb[0].mxu0
  %v2390 = vadd.f32 0.0, %v2389
  %v2391 = vpop.f32.mrb[0].mxu0
  %2392 = vdwg.mxu0
  %2393 = vmatprep.subr.mxu0 0.0
  %2394 = vmatpush1.msra.mxu0 %v2390
  %2395 = vmatprep.subr.mxu0 0.0
  %2396 = vmatpush1.msra.mxu0 0.0
  %2397 = vmatprep.subr.mxu0 0.0
  %2398 = vmatpush1.msra.mxu0 0.0
  %2399 = vmatprep.subr.mxu0 0.0
  %2400 = vmatpush1.msra.mxu0 0.0
  %2401 = vmatprep.subr.mxu0 0.0
  %2402 = vmatpush1.msra.mxu0 0.0
  %2403 = vmatprep.subr.mxu0 0.0
  %2404 = vmatpush1.msra.mxu0 0.0
  %2405 = vmatprep.subr.mxu0 0.0
  %2406 = vmatpush1.msra.mxu0 0.0
  %2407 = vmatprep.subr.mxu0 0.0
  %2408 = vmatpush1.msra.mxu0 0.0
  %2409 = vmatprep.subr.mxu0 0.0
  %2410 = vmatpush1.msra.mxu0 0.0
  %2411 = vmatprep.subr.mxu0 0.0
  %2412 = vmatpush1.msra.mxu0 0.0
  %2413 = vmatprep.subr.mxu0 0.0
  %2414 = vmatpush1.msra.mxu0 0.0
  %2415 = vmatprep.subr.mxu0 0.0
  %2416 = vmatpush1.msra.mxu0 0.0
  %2417 = vmatprep.subr.mxu0 0.0
  %2418 = vmatpush1.msra.mxu0 0.0
  %2419 = vmatprep.subr.mxu0 0.0
  %2420 = vmatpush1.msra.mxu0 0.0
  %2421 = vmatprep.subr.mxu0 0.0
  %2422 = vmatpush1.msra.mxu0 0.0
  %2423 = vmatprep.subr.mxu0 0.0
  %2424 = vmatpush1.msra.mxu0 0.0
  %2425 = vmatprep.subr.mxu0 0.0
  %2426 = vmatpush1.msra.mxu0 0.0
  %2427 = vmatprep.subr.mxu0 0.0
  %2428 = vmatpush1.msra.mxu0 0.0
  %2429 = vmatprep.subr.mxu0 0.0
  %2430 = vmatpush1.msra.mxu0 0.0
  %2431 = vmatprep.subr.mxu0 0.0
  %2432 = vmatpush1.msra.mxu0 0.0
  %2433 = vmatprep.subr.mxu0 0.0
  %2434 = vmatpush1.msra.mxu0 0.0
  %2435 = vmatprep.subr.mxu0 0.0
  %2436 = vmatpush1.msra.mxu0 0.0
  %2437 = vmatprep.subr.mxu0 0.0
  %2438 = vmatpush1.msra.mxu0 0.0
  %2439 = vmatprep.subr.mxu0 0.0
  %2440 = vmatpush1.msra.mxu0 0.0
  %2441 = vmatprep.subr.mxu0 0.0
  %2442 = vmatpush1.msra.mxu0 0.0
  %2443 = vmatprep.subr.mxu0 0.0
  %2444 = vmatpush1.msra.mxu0 0.0
  %2445 = vmatprep.subr.mxu0 0.0
  %2446 = vmatpush1.msra.mxu0 0.0
  %2447 = vmatprep.subr.mxu0 0.0
  %2448 = vmatpush1.msra.mxu0 0.0
  %2449 = vmatprep.subr.mxu0 0.0
  %2450 = vmatpush1.msra.mxu0 0.0
  %2451 = vmatprep.subr.mxu0 0.0
  %2452 = vmatpush1.msra.mxu0 0.0
  %2453 = vmatprep.subr.mxu0 0.0
  %2454 = vmatpush1.msra.mxu0 0.0
  %2455 = vmatprep.subr.mxu0 0.0
  %2456 = vmatpush1.msra.mxu0 0.0
  %2457 = vmatprep.mubr.f32.mxu0 0.0
  %2458 = vmatmul.mubr.f32.gmra.mrb[0].mxu0 %v93
  %v2459 = vpop.f32.mrb[0].mxu0
  %v2460 = vadd.f32 0.0, %v2459
  %v2461 = vpop.f32.mrb[0].mxu0
  %2462 = vmatprep.mubr.f32.mxu0 0.0
  %2463 = vmatmul.mubr.f32.gmra.mrb[0].mxu0 %v96
  %v2464 = vpop.f32.mrb[0].mxu0
  %v2465 = vadd.f32 0.0, %v2464
  %v2466 = vpop.f32.mrb[0].mxu0
  %2467 = vdwg.mxu0
  %s2468 = scalar_lea.vmem %s3, 240
  %2469 = vst.msk [vmem:[%s2468] sm:$0xff] %vm173, %v2460
  %2470 = vst.msk [vmem:[%s2468 + $0x8] sm:$0xff] %vm173, %v2465
  // Predicated region
  $region14: #{_lambda_.16} parent=0 // pred_check
    _
  $region15: #{_lambda_.16} parent=0 // pred_check_branch
    %2472 = sbr.rel (0) target = $region17
  $region16: #{_lambda_.16} parent=0 // pred_region
    _
  $region17: #{_lambda_.16} parent=0 // pred_fallthru
    _
  // Predicated region
  $region18: #{_lambda_.16} parent=0 // pred_check
    _
  $region19: #{_lambda_.16} parent=0 // pred_check_branch
    %2474 = sbr.rel (0) target = $region21
  $region20: #{_lambda_.16} parent=0 // pred_region
    _
  $region21: #{_lambda_.16} parent=0 // pred_fallthru
    _

// kernel: _lambda_.17
$region0: #{_lambda_.17}
  #allocation0 [shape = 'u32[]', space=smem, size = 0x4, offset = 0x4, fixed_abs, tag = 'smem constant byte address 0x4 - core index']
  #allocation1 [shape = 'u32[144,128]{1,0:T(1,128)}', space=vmem, size = 0x12000, scoped, tag = 'internal scratch']
  %s0 = inlined_call_operand.vmem [shape: bf16[8,512], index: 0, kind: input, shape index: {}]
  %s1 = inlined_call_operand.vmem [shape: bf16[8,512], index: 1, kind: input, shape index: {}]
  %s2 = inlined_call_operand.vmem [shape: bf16[21,8], index: 2, kind: input, shape index: {}]
  %s3 = inlined_call_operand.vmem [shape: bf16[21,8], index: 3, kind: input, shape index: {}]
  %s4 = inlined_call_operand.vmem [shape: f32[21,1], index: 4, kind: input, shape index: {}]
  %s5 = inlined_call_operand.vmem [shape: f32[6,512], index: 5, kind: input, shape index: {}]
  %s6 = inlined_call_operand.vmem [shape: f32[6,1], index: 6, kind: input, shape index: {}]
  %s7 = inlined_call_operand.vmem [shape: f32[21,512], index: 7, kind: output, shape index: {}]
  %s8 = sld [smem:[#allocation0]]
  $region38: #{_lambda_.17} parent=0
    _
  %s10 = ssub.s32 1, %s8
  %s11 = scalar_select 0, %s10, %s8
  // Predicated region
  $region2: #{_lambda_.17} parent=0 // pred_check
    _
  $region3: #{_lambda_.17} parent=0 // pred_check_branch
    %13 = sbr.rel (0) target = $region5
  $region4: #{_lambda_.17} parent=0 // pred_region
    _
  $region5: #{_lambda_.17} parent=0 // pred_fallthru
    _
  // Predicated region
  $region6: #{_lambda_.17} parent=0 // pred_check
    _
  $region7: #{_lambda_.17} parent=0 // pred_check_branch
    %15 = sbr.rel (0) target = $region9
  $region8: #{_lambda_.17} parent=0 // pred_region
    _
  $region9: #{_lambda_.17} parent=0 // pred_fallthru
    _
  // Predicated region
  $region10: #{_lambda_.17} parent=0 // pred_check
    _
  $region11: #{_lambda_.17} parent=0 // pred_check_branch
    %17 = sbr.rel (0) target = $region13
  $region12: #{_lambda_.17} parent=0 // pred_region
    _
  $region13: #{_lambda_.17} parent=0 // pred_fallthru
    _
  // Predicated region
  $region14: #{_lambda_.17} parent=0 // pred_check
    _
  $region15: #{_lambda_.17} parent=0 // pred_check_branch
    %19 = sbr.rel (0) target = $region17
  $region16: #{_lambda_.17} parent=0 // pred_region
    _
  $region17: #{_lambda_.17} parent=0 // pred_fallthru
    _
  // Predicated region
  $region18: #{_lambda_.17} parent=0 // pred_check
    _
  $region19: #{_lambda_.17} parent=0 // pred_check_branch
    %21 = sbr.rel (0) target = $region21
  $region20: #{_lambda_.17} parent=0 // pred_region
    _
  $region21: #{_lambda_.17} parent=0 // pred_fallthru
    _
  // Predicated region
  $region22: #{_lambda_.17} parent=0 // pred_check
    _
  $region23: #{_lambda_.17} parent=0 // pred_check_branch
    %23 = sbr.rel (0) target = $region25
  $region24: #{_lambda_.17} parent=0 // pred_region
    _
  $region25: #{_lambda_.17} parent=0 // pred_fallthru
    _
  // Predicated region
  $region26: #{_lambda_.17} parent=0 // pred_check
    _
  $region27: #{_lambda_.17} parent=0 // pred_check_branch
    %25 = sbr.rel (0) target = $region29
  $region28: #{_lambda_.17} parent=0 // pred_region
    _
  $region29: #{_lambda_.17} parent=0 // pred_fallthru
    _
  %v27 = vld [vmem:[%s2] sm:$0xf]
  %v28 = vld [vmem:[%s2 + $0x4] sm:$0xf]
  %v29 = vld [vmem:[%s2 + $0x8] sm:$0x7]
  %v30 = vld [vmem:[%s0] sm:$0xff]
  %v31 = vld [vmem:[%s0 + $0x8] sm:$0xff]
  %v32 = vld [vmem:[%s3] sm:$0xf]
  %v33 = vld [vmem:[%s3 + $0x4] sm:$0xf]
  %v34 = vld [vmem:[%s3 + $0x8] sm:$0x7]
  %v35 = vld [vmem:[%s1] sm:$0xff]
  %v36 = vld [vmem:[%s1 + $0x8] sm:$0xff]
  %v40 = vunpack.c.l.b16 %v32
  %v41 = vunpack.c.l.b16 %v33
  %v42 = vunpack.c.l.b16 %v34
  %v43 = vpack.c.b16 %v41, %v40
  %v44 = vpack.c.b16 %v42, %v42
  %v47 = vunpack.c.l.b16 %v35
  %v48 = vunpack.c.h.b16 %v35
  %v49 = vunpack.c.l.b16 %v36
  %v50 = vunpack.c.h.b16 %v36
  %v51 = vpack.c.b16 %v47, %v47
  %v52 = vpack.c.b16 %v48, %v48
  %v53 = vpack.c.b16 %v49, %v49
  %v54 = vpack.c.b16 %v50, %v50
  %vm55 = vcmask 64512
  %v57 = vsel %vm55, %v43, 0
  %v60 = vsel %vm55, %v44, 0
  %vm62 = vcmask 1043456
  %v64 = vsel %vm62, %v51, 0
  %v67 = vsel %vm62, %v52, 0
  %v70 = vsel %vm62, %v53, 0
  %v73 = vsel %vm62, %v54, 0
  %75 = vmatprep.subr.bf16.mxu0 %v67
  %76 = vmatpush1.bf16.msra.mxu0 %v64
  %77 = vmatprep.subr.bf16.mxu0 0
  %78 = vmatpush1.bf16.msra.mxu0 0
  %79 = vmatprep.subr.bf16.mxu0 0
  %80 = vmatpush1.bf16.msra.mxu0 0
  %81 = vmatprep.subr.bf16.mxu0 0
  %82 = vmatpush1.bf16.msra.mxu0 0
  %83 = vmatprep.subr.bf16.mxu0 0
  %84 = vmatpush1.bf16.msra.mxu0 0
  %85 = vmatprep.subr.bf16.mxu0 0
  %86 = vmatpush1.bf16.msra.mxu0 0
  %87 = vmatprep.subr.bf16.mxu0 0
  %88 = vmatpush1.bf16.msra.mxu0 0
  %89 = vmatprep.subr.bf16.mxu0 0
  %90 = vmatpush1.bf16.msra.mxu0 0
  %91 = vmatprep.subr.bf16.mxu0 0
  %92 = vmatpush1.bf16.msra.mxu0 0
  %93 = vmatprep.subr.bf16.mxu0 0
  %94 = vmatpush1.bf16.msra.mxu0 0
  %95 = vmatprep.subr.bf16.mxu0 0
  %96 = vmatpush1.bf16.msra.mxu0 0
  %97 = vmatprep.subr.bf16.mxu0 0
  %98 = vmatpush1.bf16.msra.mxu0 0
  %99 = vmatprep.subr.bf16.mxu0 0
  %100 = vmatpush1.bf16.msra.mxu0 0
  %101 = vmatprep.subr.bf16.mxu0 0
  %102 = vmatpush1.bf16.msra.mxu0 0
  %103 = vmatprep.subr.bf16.mxu0 0
  %104 = vmatpush1.bf16.msra.mxu0 0
  %105 = vmatprep.subr.bf16.mxu0 0
  %106 = vmatpush1.bf16.msra.mxu0 0
  %107 = vmatprep.mubr.bf16.mxu0 0
  %108 = vmatmul.mubr.bf16.gmra.mrb[0].mxu0 %v57
  %v109 = vpop.f32.mrb[0].mxu0
  %v110 = vadd.f32 0.0, %v109
  %v111 = vpop.f32.mrb[0].mxu0
  %v112 = vadd.f32 0.0, %v111
  %v113 = vpop.f32.mrb[0].mxu0
  %v114 = vadd.f32 0.0, %v113
  %v115 = vpop.f32.mrb[0].mxu0
  %v116 = vadd.f32 0.0, %v115
  %117 = vmatprep.mubr.bf16.mxu0 0
  %118 = vmatmul.mubr.bf16.gmra.mrb[0].mxu0 %v60
  %v119 = vpop.f32.mrb[0].mxu0
  %v120 = vadd.f32 0.0, %v119
  %v121 = vpop.f32.mrb[0].mxu0
  %v122 = vadd.f32 0.0, %v121
  %v123 = vpop.f32.mrb[0].mxu0
  %v124 = vpop.f32.mrb[0].mxu0
  %125 = vdwg.mxu0
  %126 = vmatprep.subr.bf16.mxu0 %v73
  %127 = vmatpush1.bf16.msra.mxu0 %v70
  %128 = vmatprep.subr.bf16.mxu0 0
  %129 = vmatpush1.bf16.msra.mxu0 0
  %130 = vmatprep.subr.bf16.mxu0 0
  %131 = vmatpush1.bf16.msra.mxu0 0
  %132 = vmatprep.subr.bf16.mxu0 0
  %133 = vmatpush1.bf16.msra.mxu0 0
  %134 = vmatprep.subr.bf16.mxu0 0
  %135 = vmatpush1.bf16.msra.mxu0 0
  %136 = vmatprep.subr.bf16.mxu0 0
  %137 = vmatpush1.bf16.msra.mxu0 0
  %138 = vmatprep.subr.bf16.mxu0 0
  %139 = vmatpush1.bf16.msra.mxu0 0
  %140 = vmatprep.subr.bf16.mxu0 0
  %141 = vmatpush1.bf16.msra.mxu0 0
  %142 = vmatprep.subr.bf16.mxu0 0
  %143 = vmatpush1.bf16.msra.mxu0 0
  %144 = vmatprep.subr.bf16.mxu0 0
  %145 = vmatpush1.bf16.msra.mxu0 0
  %146 = vmatprep.subr.bf16.mxu0 0
  %147 = vmatpush1.bf16.msra.mxu0 0
  %148 = vmatprep.subr.bf16.mxu0 0
  %149 = vmatpush1.bf16.msra.mxu0 0
  %150 = vmatprep.subr.bf16.mxu0 0
  %151 = vmatpush1.bf16.msra.mxu0 0
  %152 = vmatprep.subr.bf16.mxu0 0
  %153 = vmatpush1.bf16.msra.mxu0 0
  %154 = vmatprep.subr.bf16.mxu0 0
  %155 = vmatpush1.bf16.msra.mxu0 0
  %156 = vmatprep.subr.bf16.mxu0 0
  %157 = vmatpush1.bf16.msra.mxu0 0
  %158 = vmatprep.mubr.bf16.mxu0 0
  %159 = vmatmul.mubr.bf16.gmra.mrb[0].mxu0 %v57
  %v160 = vpop.f32.mrb[0].mxu0
  %v161 = vadd.f32 0.0, %v160
  %v162 = vpop.f32.mrb[0].mxu0
  %v163 = vadd.f32 0.0, %v162
  %v164 = vpop.f32.mrb[0].mxu0
  %v165 = vadd.f32 0.0, %v164
  %v166 = vpop.f32.mrb[0].mxu0
  %v167 = vadd.f32 0.0, %v166
  %168 = vmatprep.mubr.bf16.mxu0 0
  %169 = vmatmul.mubr.bf16.gmra.mrb[0].mxu0 %v60
  %v170 = vpop.f32.mrb[0].mxu0
  %v171 = vadd.f32 0.0, %v170
  %v172 = vpop.f32.mrb[0].mxu0
  %v173 = vadd.f32 0.0, %v172
  %v174 = vpop.f32.mrb[0].mxu0
  %v175 = vpop.f32.mrb[0].mxu0
  %176 = vdwg.mxu0
  %v180 = vunpack.c.l.b16 %v27
  %v181 = vunpack.c.l.b16 %v28
  %v182 = vunpack.c.l.b16 %v29
  %v183 = vpack.c.b16 %v181, %v180
  %v184 = vpack.c.b16 %v182, %v182
  %v187 = vunpack.c.l.b16 %v30
  %v188 = vunpack.c.h.b16 %v30
  %v189 = vunpack.c.l.b16 %v31
  %v190 = vunpack.c.h.b16 %v31
  %v191 = vpack.c.b16 %v187, %v187
  %v192 = vpack.c.b16 %v188, %v188
  %v193 = vpack.c.b16 %v189, %v189
  %v194 = vpack.c.b16 %v190, %v190
  %v196 = vsel %vm55, %v183, 0
  %v199 = vsel %vm55, %v184, 0
  %v202 = vsel %vm62, %v191, 0
  %v205 = vsel %vm62, %v192, 0
  %v208 = vsel %vm62, %v193, 0
  %v211 = vsel %vm62, %v194, 0
  %213 = vmatprep.subr.bf16.mxu0 %v205
  %214 = vmatpush1.bf16.msra.mxu0 %v202
  %215 = vmatprep.subr.bf16.mxu0 0
  %216 = vmatpush1.bf16.msra.mxu0 0
  %217 = vmatprep.subr.bf16.mxu0 0
  %218 = vmatpush1.bf16.msra.mxu0 0
  %219 = vmatprep.subr.bf16.mxu0 0
  %220 = vmatpush1.bf16.msra.mxu0 0
  %221 = vmatprep.subr.bf16.mxu0 0
  %222 = vmatpush1.bf16.msra.mxu0 0
  %223 = vmatprep.subr.bf16.mxu0 0
  %224 = vmatpush1.bf16.msra.mxu0 0
  %225 = vmatprep.subr.bf16.mxu0 0
  %226 = vmatpush1.bf16.msra.mxu0 0
  %227 = vmatprep.subr.bf16.mxu0 0
  %228 = vmatpush1.bf16.msra.mxu0 0
  %229 = vmatprep.subr.bf16.mxu0 0
  %230 = vmatpush1.bf16.msra.mxu0 0
  %231 = vmatprep.subr.bf16.mxu0 0
  %232 = vmatpush1.bf16.msra.mxu0 0
  %233 = vmatprep.subr.bf16.mxu0 0
  %234 = vmatpush1.bf16.msra.mxu0 0
  %235 = vmatprep.subr.bf16.mxu0 0
  %236 = vmatpush1.bf16.msra.mxu0 0
  %237 = vmatprep.subr.bf16.mxu0 0
  %238 = vmatpush1.bf16.msra.mxu0 0
  %239 = vmatprep.subr.bf16.mxu0 0
  %240 = vmatpush1.bf16.msra.mxu0 0
  %241 = vmatprep.subr.bf16.mxu0 0
  %242 = vmatpush1.bf16.msra.mxu0 0
  %243 = vmatprep.subr.bf16.mxu0 0
  %244 = vmatpush1.bf16.msra.mxu0 0
  %245 = vmatprep.mubr.bf16.mxu0 0
  %246 = vmatmul.mubr.bf16.gmra.mrb[0].mxu0 %v196
  %v247 = vpop.f32.mrb[0].mxu0
  %v248 = vadd.f32 %v110, %v247
  %v249 = vpop.f32.mrb[0].mxu0
  %v250 = vadd.f32 %v112, %v249
  %v251 = vpop.f32.mrb[0].mxu0
  %v252 = vadd.f32 %v114, %v251
  %v253 = vpop.f32.mrb[0].mxu0
  %v254 = vadd.f32 %v116, %v253
  %255 = vmatprep.mubr.bf16.mxu0 0
  %256 = vmatmul.mubr.bf16.gmra.mrb[0].mxu0 %v199
  %v257 = vpop.f32.mrb[0].mxu0
  %v258 = vadd.f32 %v120, %v257
  %v259 = vpop.f32.mrb[0].mxu0
  %v260 = vadd.f32 %v122, %v259
  %v261 = vpop.f32.mrb[0].mxu0
  %v262 = vpop.f32.mrb[0].mxu0
  %263 = vdwg.mxu0
  %264 = vmatprep.subr.bf16.mxu0 %v211
  %265 = vmatpush1.bf16.msra.mxu0 %v208
  %266 = vmatprep.subr.bf16.mxu0 0
  %267 = vmatpush1.bf16.msra.mxu0 0
  %268 = vmatprep.subr.bf16.mxu0 0
  %269 = vmatpush1.bf16.msra.mxu0 0
  %270 = vmatprep.subr.bf16.mxu0 0
  %271 = vmatpush1.bf16.msra.mxu0 0
  %272 = vmatprep.subr.bf16.mxu0 0
  %273 = vmatpush1.bf16.msra.mxu0 0
  %274 = vmatprep.subr.bf16.mxu0 0
  %275 = vmatpush1.bf16.msra.mxu0 0
  %276 = vmatprep.subr.bf16.mxu0 0
  %277 = vmatpush1.bf16.msra.mxu0 0
  %278 = vmatprep.subr.bf16.mxu0 0
  %279 = vmatpush1.bf16.msra.mxu0 0
  %280 = vmatprep.subr.bf16.mxu0 0
  %281 = vmatpush1.bf16.msra.mxu0 0
  %282 = vmatprep.subr.bf16.mxu0 0
  %283 = vmatpush1.bf16.msra.mxu0 0
  %284 = vmatprep.subr.bf16.mxu0 0
  %285 = vmatpush1.bf16.msra.mxu0 0
  %286 = vmatprep.subr.bf16.mxu0 0
  %287 = vmatpush1.bf16.msra.mxu0 0
  %288 = vmatprep.subr.bf16.mxu0 0
  %289 = vmatpush1.bf16.msra.mxu0 0
  %290 = vmatprep.subr.bf16.mxu0 0
  %291 = vmatpush1.bf16.msra.mxu0 0
  %292 = vmatprep.subr.bf16.mxu0 0
  %293 = vmatpush1.bf16.msra.mxu0 0
  %294 = vmatprep.subr.bf16.mxu0 0
  %295 = vmatpush1.bf16.msra.mxu0 0
  %296 = vmatprep.mubr.bf16.mxu0 0
  %297 = vmatmul.mubr.bf16.gmra.mrb[0].mxu0 %v196
  %v298 = vpop.f32.mrb[0].mxu0
  %v299 = vadd.f32 %v161, %v298
  %v300 = vpop.f32.mrb[0].mxu0
  %v301 = vadd.f32 %v163, %v300
  %v302 = vpop.f32.mrb[0].mxu0
  %v303 = vadd.f32 %v165, %v302
  %v304 = vpop.f32.mrb[0].mxu0
  %v305 = vadd.f32 %v167, %v304
  %306 = vmatprep.mubr.bf16.mxu0 0
  %307 = vmatmul.mubr.bf16.gmra.mrb[0].mxu0 %v199
  %v308 = vpop.f32.mrb[0].mxu0
  %v309 = vadd.f32 %v171, %v308
  %v310 = vpop.f32.mrb[0].mxu0
  %v311 = vadd.f32 %v173, %v310
  %v312 = vpop.f32.mrb[0].mxu0
  %v313 = vpop.f32.mrb[0].mxu0
  %314 = vdwg.mxu0
  %v315 = vld [vmem:[%s4] sm:$0xff]
  %v316 = vld [vmem:[%s4 + $0x8] sm:$0xff]
  %v317 = vld [vmem:[%s4 + $0x10] sm:$0x1f]
  %319 = vset.pattern.permute.xlu0 0
  %320 = vperm.xlu0 %319, %v315
  %v321 = vpop.permute.xlu0 %320
  %324 = vset.pattern.permute.xlu0 0
  %325 = vperm.xlu0 %324, %v316
  %v326 = vpop.permute.xlu0 %325
  %329 = vset.pattern.permute.xlu0 0
  %330 = vperm.xlu0 %329, %v317
  %v331 = vpop.permute.xlu0 %330
  %v333 = vadd.f32 %v248, %v321
  %v334 = vadd.f32 %v250, %v321
  %v335 = vadd.f32 %v299, %v321
  %v336 = vadd.f32 %v301, %v321
  %v337 = vadd.f32 %v252, %v326
  %v338 = vadd.f32 %v254, %v326
  %v339 = vadd.f32 %v303, %v326
  %v340 = vadd.f32 %v305, %v326
  %v341 = vadd.f32 %v258, %v331
  %v342 = vadd.f32 %v260, %v331
  %v343 = vadd.f32 %v309, %v331
  %v344 = vadd.f32 %v311, %v331
  %v345 = vxor.u32 %v333, 2147483648
  %v346 = vxor.u32 %v334, 2147483648
  %v347 = vxor.u32 %v335, 2147483648
  %v348 = vxor.u32 %v336, 2147483648
  %v349 = vmul.f32 %v345, 1.442695
  %v350 = vpow.pop %v349
  %v351 = vmul.f32 %v346, 1.442695
  %v352 = vpow.pop %v351
  %v353 = vmul.f32 %v347, 1.442695
  %v354 = vpow.pop %v353
  %v355 = vmul.f32 %v348, 1.442695
  %v356 = vpow.pop %v355
  %v357 = vadd.f32 %v350, 1.0
  %v358 = vadd.f32 %v352, 1.0
  %v359 = vadd.f32 %v354, 1.0
  %v360 = vadd.f32 %v356, 1.0
  %v361 = vrcp.pop %v357
  %v362 = vmul.f32 1.0, %v361
  %v363 = vrcp.pop %v358
  %v364 = vmul.f32 1.0, %v363
  %v365 = vrcp.pop %v359
  %v366 = vmul.f32 1.0, %v365
  %v367 = vrcp.pop %v360
  %v368 = vmul.f32 1.0, %v367
  %v369 = vld [vmem:[%s5] sm:$0x3f]
  %v370 = vld [vmem:[%s5 + $0x8] sm:$0x3f]
  %v371 = vld [vmem:[%s5 + $0x10] sm:$0x3f]
  %v372 = vld [vmem:[%s5 + $0x18] sm:$0x3f]
  %v373 = vadd.f32 %v362, %v369
  %v374 = vadd.f32 %v364, %v370
  %v375 = vadd.f32 %v366, %v371
  %v376 = vadd.f32 %v368, %v372
  %377 = vst [vmem:[%s7] sm:$0x3f] %v373
  %378 = vst [vmem:[%s7 + $0x8] sm:$0x3f] %v374
  %379 = vst [vmem:[%s7 + $0x10] sm:$0x3f] %v375
  %380 = vst [vmem:[%s7 + $0x18] sm:$0x3f] %v376
  %v381 = vmul.f32 %v333, 1.442695
  %v382 = vpow.pop %v381
  %v383 = vmul.f32 %v334, 1.442695
  %v384 = vpow.pop %v383
  %v385 = vmul.f32 %v335, 1.442695
  %v386 = vpow.pop %v385
  %v387 = vmul.f32 %v336, 1.442695
  %v388 = vpow.pop %v387
  %v389 = vmul.f32 %v337, 1.442695
  %v390 = vpow.pop %v389
  %v391 = vmul.f32 %v338, 1.442695
  %v392 = vpow.pop %v391
  %v393 = vmul.f32 %v339, 1.442695
  %v394 = vpow.pop %v393
  %v395 = vmul.f32 %v340, 1.442695
  %v396 = vpow.pop %v395
  %v397 = vld [vmem:[%s6] sm:$0x3f]
  %399 = vset.pattern.permute.xlu0 0
  %400 = vperm.xlu0 %399, %v397
  %v401 = vpop.permute.xlu0 %400
  %v402 = vrot.slane %v401, 2
  %v404 = vmul.f32 %v382, %v402
  %v405 = vmul.f32 %v384, %v402
  %v406 = vmul.f32 %v386, %v402
  %v407 = vmul.f32 %v388, %v402
  %v408 = vmul.f32 %v390, %v402
  %v409 = vmul.f32 %v392, %v402
  %v410 = vmul.f32 %v394, %v402
  %v411 = vmul.f32 %v396, %v402
  %412 = vst [vmem:[%s7] sm:$0xc0] %v404
  %413 = vst [vmem:[%s7 + $0x8] sm:$0xc0] %v405
  %414 = vst [vmem:[%s7 + $0x10] sm:$0xc0] %v406
  %415 = vst [vmem:[%s7 + $0x18] sm:$0xc0] %v407
  %416 = vst [vmem:[%s7 + $0x20] sm:$0xf] %v408
  %417 = vst [vmem:[%s7 + $0x28] sm:$0xf] %v409
  %418 = vst [vmem:[%s7 + $0x30] sm:$0xf] %v410
  %419 = vst [vmem:[%s7 + $0x38] sm:$0xf] %v411
  %v420 = vxor.u32 %v337, 2147483648
  %v421 = vxor.u32 %v338, 2147483648
  %v422 = vxor.u32 %v339, 2147483648
  %v423 = vxor.u32 %v340, 2147483648
  %v424 = vxor.u32 %v341, 2147483648
  %v425 = vxor.u32 %v342, 2147483648
  %v426 = vxor.u32 %v343, 2147483648
  %v427 = vxor.u32 %v344, 2147483648
  %v428 = vmul.f32 %v420, 1.442695
  %v429 = vpow.pop %v428
  %v430 = vmul.f32 %v421, 1.442695
  %v431 = vpow.pop %v430
  %v432 = vmul.f32 %v422, 1.442695
  %v433 = vpow.pop %v432
  %v434 = vmul.f32 %v423, 1.442695
  %v435 = vpow.pop %v434
  %v436 = vmul.f32 %v424, 1.442695
  %v437 = vpow.pop %v436
  %v438 = vmul.f32 %v425, 1.442695
  %v439 = vpow.pop %v438
  %v440 = vmul.f32 %v426, 1.442695
  %v441 = vpow.pop %v440
  %v442 = vmul.f32 %v427, 1.442695
  %v443 = vpow.pop %v442
  %v444 = vadd.f32 %v429, 1.0
  %v445 = vadd.f32 %v431, 1.0
  %v446 = vadd.f32 %v433, 1.0
  %v447 = vadd.f32 %v435, 1.0
  %v448 = vadd.f32 %v437, 1.0
  %v449 = vadd.f32 %v439, 1.0
  %v450 = vadd.f32 %v441, 1.0
  %v451 = vadd.f32 %v443, 1.0
  %v452 = vrcp.pop %v444
  %v453 = vmul.f32 1.0, %v452
  %v454 = vrcp.pop %v445
  %v455 = vmul.f32 1.0, %v454
  %v456 = vrcp.pop %v446
  %v457 = vmul.f32 1.0, %v456
  %v458 = vrcp.pop %v447
  %v459 = vmul.f32 1.0, %v458
  %v460 = vrcp.pop %v448
  %v461 = vmul.f32 1.0, %v460
  %v462 = vrcp.pop %v449
  %v463 = vmul.f32 1.0, %v462
  %v464 = vrcp.pop %v450
  %v465 = vmul.f32 1.0, %v464
  %v466 = vrcp.pop %v451
  %v467 = vmul.f32 1.0, %v466
  %468 = vst [vmem:[%s7 + $0x20] sm:$0xf0] %v453
  %469 = vst [vmem:[%s7 + $0x28] sm:$0xf0] %v455
  %470 = vst [vmem:[%s7 + $0x30] sm:$0xf0] %v457
  %471 = vst [vmem:[%s7 + $0x38] sm:$0xf0] %v459
  %472 = vst [vmem:[%s7 + $0x40] sm:$0x1f] %v461
  %473 = vst [vmem:[%s7 + $0x48] sm:$0x1f] %v463
  %474 = vst [vmem:[%s7 + $0x50] sm:$0x1f] %v465
  %475 = vst [vmem:[%s7 + $0x58] sm:$0x1f] %v467
  // Predicated region
  $region30: #{_lambda_.17} parent=0 // pred_check
    _
  $region31: #{_lambda_.17} parent=0 // pred_check_branch
    %477 = sbr.rel (0) target = $region33
  $region32: #{_lambda_.17} parent=0 // pred_region
    _
  $region33: #{_lambda_.17} parent=0 // pred_fallthru
    _
  // Predicated region
  $region34: #{_lambda_.17} parent=0 // pred_check
    _
  $region35: #{_lambda_.17} parent=0 // pred_check_branch
    %479 = sbr.rel (0) target = $region37
  $region36: #{_lambda_.17} parent=0 // pred_region
    _
  $region37: #{_lambda_.17} parent=0 // pred_fallthru
    _

// kernel: _lambda_.14
$region0: #{_lambda_.14}
  #allocation0 [shape = 'u32[]', space=smem, size = 0x4, offset = 0x4, fixed_abs, tag = 'smem constant byte address 0x4 - core index']
  #allocation1 [shape = 'u32[144,128]{1,0:T(1,128)}', space=vmem, size = 0x12000, scoped, tag = 'internal scratch']
  %s0 = inlined_call_operand.vmem [shape: bf16[16,128], index: 0, kind: input, shape index: {}]
  %s1 = inlined_call_operand.vmem [shape: bf16[21,16], index: 1, kind: input, shape index: {}]
  %s2 = inlined_call_operand.vmem [shape: f32[21,1], index: 2, kind: input, shape index: {}]
  %s3 = inlined_call_operand.vmem [shape: f32[6,128], index: 3, kind: input, shape index: {}]
  %s4 = inlined_call_operand.vmem [shape: f32[6,1], index: 4, kind: input, shape index: {}]
  %s5 = inlined_call_operand.vmem [shape: f32[21,128], index: 5, kind: output, shape index: {}]
  %s6 = sld [smem:[#allocation0]]
  $region30: #{_lambda_.14} parent=0
    _
  %s8 = ssub.s32 1, %s6
  %s9 = scalar_select 0, %s8, %s6
  // Predicated region
  $region2: #{_lambda_.14} parent=0 // pred_check
    _
  $region3: #{_lambda_.14} parent=0 // pred_check_branch
    %11 = sbr.rel (0) target = $region5
  $region4: #{_lambda_.14} parent=0 // pred_region
    _
  $region5: #{_lambda_.14} parent=0 // pred_fallthru
    _
  // Predicated region
  $region6: #{_lambda_.14} parent=0 // pred_check
    _
  $region7: #{_lambda_.14} parent=0 // pred_check_branch
    %13 = sbr.rel (0) target = $region9
  $region8: #{_lambda_.14} parent=0 // pred_region
    _
  $region9: #{_lambda_.14} parent=0 // pred_fallthru
    _
  // Predicated region
  $region10: #{_lambda_.14} parent=0 // pred_check
    _
  $region11: #{_lambda_.14} parent=0 // pred_check_branch
    %15 = sbr.rel (0) target = $region13
  $region12: #{_lambda_.14} parent=0 // pred_region
    _
  $region13: #{_lambda_.14} parent=0 // pred_fallthru
    _
  // Predicated region
  $region14: #{_lambda_.14} parent=0 // pred_check
    _
  $region15: #{_lambda_.14} parent=0 // pred_check_branch
    %17 = sbr.rel (0) target = $region17
  $region16: #{_lambda_.14} parent=0 // pred_region
    _
  $region17: #{_lambda_.14} parent=0 // pred_fallthru
    _
  // Predicated region
  $region18: #{_lambda_.14} parent=0 // pred_check
    _
  $region19: #{_lambda_.14} parent=0 // pred_check_branch
    %19 = sbr.rel (0) target = $region21
  $region20: #{_lambda_.14} parent=0 // pred_region
    _
  $region21: #{_lambda_.14} parent=0 // pred_fallthru
    _
  %v21 = vld [vmem:[%s1] sm:$0xf]
  %v22 = vld [vmem:[%s1 + $0x4] sm:$0xf]
  %v23 = vld [vmem:[%s1 + $0x8] sm:$0x7]
  %v24 = vld [vmem:[%s0] sm:$0xf]
  %v25 = vld [vmem:[%s0 + $0x4] sm:$0xf]
  %v26 = vld [vmem:[%s2] sm:$0xff]
  %v27 = vld [vmem:[%s2 + $0x8] sm:$0xff]
  %v28 = vld [vmem:[%s2 + $0x10] sm:$0x1f]
  %30 = vset.pattern.permute.xlu0 0
  %31 = vperm.xlu0 %30, %v26
  %v32 = vpop.permute.xlu0 %31
  %35 = vset.pattern.permute.xlu0 0
  %36 = vperm.xlu0 %35, %v27
  %v37 = vpop.permute.xlu0 %36
  %40 = vset.pattern.permute.xlu0 0
  %41 = vperm.xlu0 %40, %v28
  %v42 = vpop.permute.xlu0 %41
  %v47 = vunpack.c.l.b16 %v21
  %v48 = vunpack.c.l.b16 %v22
  %v49 = vunpack.c.l.b16 %v23
  %v50 = vpack.c.b16 %v48, %v47
  %v51 = vpack.c.b16 %v49, %v49
  %v54 = vunpack.c.l.b16 %v24
  %v55 = vunpack.c.l.b16 %v25
  %v56 = vpack.c.b16 %v55, %v54
  %vm58 = vcmask 130048
  %v60 = vsel %vm58, %v50, 0
  %v63 = vsel %vm58, %v51, 0
  %65 = vmatprep.subr.bf16.mxu0 0
  %66 = vmatpush1.bf16.msra.mxu0 %v56
  %67 = vmatprep.subr.bf16.mxu0 0
  %68 = vmatpush1.bf16.msra.mxu0 0
  %69 = vmatprep.subr.bf16.mxu0 0
  %70 = vmatpush1.bf16.msra.mxu0 0
  %71 = vmatprep.subr.bf16.mxu0 0
  %72 = vmatpush1.bf16.msra.mxu0 0
  %73 = vmatprep.subr.bf16.mxu0 0
  %74 = vmatpush1.bf16.msra.mxu0 0
  %75 = vmatprep.subr.bf16.mxu0 0
  %76 = vmatpush1.bf16.msra.mxu0 0
  %77 = vmatprep.subr.bf16.mxu0 0
  %78 = vmatpush1.bf16.msra.mxu0 0
  %79 = vmatprep.subr.bf16.mxu0 0
  %80 = vmatpush1.bf16.msra.mxu0 0
  %81 = vmatprep.subr.bf16.mxu0 0
  %82 = vmatpush1.bf16.msra.mxu0 0
  %83 = vmatprep.subr.bf16.mxu0 0
  %84 = vmatpush1.bf16.msra.mxu0 0
  %85 = vmatprep.subr.bf16.mxu0 0
  %86 = vmatpush1.bf16.msra.mxu0 0
  %87 = vmatprep.subr.bf16.mxu0 0
  %88 = vmatpush1.bf16.msra.mxu0 0
  %89 = vmatprep.subr.bf16.mxu0 0
  %90 = vmatpush1.bf16.msra.mxu0 0
  %91 = vmatprep.subr.bf16.mxu0 0
  %92 = vmatpush1.bf16.msra.mxu0 0
  %93 = vmatprep.subr.bf16.mxu0 0
  %94 = vmatpush1.bf16.msra.mxu0 0
  %95 = vmatprep.subr.bf16.mxu0 0
  %96 = vmatpush1.bf16.msra.mxu0 0
  %97 = vmatprep.mubr.bf16.mxu0 0
  %98 = vmatmul.mubr.bf16.gmra.mrb[0].mxu0 %v60
  %v99 = vpop.f32.mrb[0].mxu0
  %v100 = vadd.f32 %v32, %v99
  %v101 = vpop.f32.mrb[0].mxu0
  %v102 = vpop.f32.mrb[0].mxu0
  %v103 = vadd.f32 %v37, %v102
  %v104 = vpop.f32.mrb[0].mxu0
  %105 = vmatprep.mubr.bf16.mxu0 0
  %106 = vmatmul.mubr.bf16.gmra.mrb[0].mxu0 %v63
  %v107 = vpop.f32.mrb[0].mxu0
  %v108 = vadd.f32 %v42, %v107
  %v109 = vpop.f32.mrb[0].mxu0
  %v110 = vpop.f32.mrb[0].mxu0
  %v111 = vpop.f32.mrb[0].mxu0
  %112 = vdwg.mxu0
  %v113 = vxor.u32 %v100, 2147483648
  %v114 = vmul.f32 %v113, 1.442695
  %v115 = vpow.pop %v114
  %v116 = vadd.f32 %v115, 1.0
  %v117 = vrcp.pop %v116
  %v118 = vmul.f32 1.0, %v117
  %v119 = vld [vmem:[%s3] sm:$0x3f]
  %v120 = vadd.f32 %v118, %v119
  %v121 = vmul.f32 %v120, 2.0
  %122 = vst [vmem:[%s5] sm:$0x3f] %v121
  %v123 = vmul.f32 %v100, 1.442695
  %v124 = vpow.pop %v123
  %v125 = vmul.f32 %v103, 1.442695
  %v126 = vpow.pop %v125
  %v127 = vld [vmem:[%s4] sm:$0x3f]
  %129 = vset.pattern.permute.xlu0 0
  %130 = vperm.xlu0 %129, %v127
  %v131 = vpop.permute.xlu0 %130
  %v132 = vrot.slane %v131, 2
  %v134 = vmul.f32 %v124, %v132
  %v135 = vmul.f32 %v126, %v132
  %136 = vst [vmem:[%s5] sm:$0xc0] %v134
  %137 = vst [vmem:[%s5 + $0x8] sm:$0xf] %v135
  %v138 = vxor.u32 %v103, 2147483648
  %v139 = vxor.u32 %v108, 2147483648
  %v140 = vmul.f32 %v138, 1.442695
  %v141 = vpow.pop %v140
  %v142 = vmul.f32 %v139, 1.442695
  %v143 = vpow.pop %v142
  %v144 = vadd.f32 %v141, 1.0
  %v145 = vadd.f32 %v143, 1.0
  %v146 = vrcp.pop %v144
  %v147 = vmul.f32 1.0, %v146
  %v148 = vrcp.pop %v145
  %v149 = vmul.f32 1.0, %v148
  %150 = vst [vmem:[%s5 + $0x8] sm:$0xf0] %v147
  %151 = vst [vmem:[%s5 + $0x10] sm:$0x1f] %v149
  // Predicated region
  $region22: #{_lambda_.14} parent=0 // pred_check
    _
  $region23: #{_lambda_.14} parent=0 // pred_check_branch
    %153 = sbr.rel (0) target = $region25
  $region24: #{_lambda_.14} parent=0 // pred_region
    _
  $region25: #{_lambda_.14} parent=0 // pred_fallthru
    _
  // Predicated region
  $region26: #{_lambda_.14} parent=0 // pred_check
    _
  $region27: #{_lambda_.14} parent=0 // pred_check_branch
    %155 = sbr.rel (0) target = $region29
  $region28: #{_lambda_.14} parent=0 // pred_region
    _
  $region29: #{_lambda_.14} parent=0 // pred_fallthru
    _

</llo_original>
